<compile_context>
chip_gen: v5e
topology: v5e:2x2
jax: 0.10.0
libtpu: 0.0.40
codegen_flags: <defaults>
</compile_context>

<pallas_src>
import functools
import math

import jax
import jax.numpy as jnp
from jax.experimental import pallas as pl
from jax.experimental.pallas import tpu as pltpu


def _layernorm(z, gamma, beta, eps=1e-5):
    # LayerNorm over last axis, PyTorch defaults (eps=1e-5, biased variance).
    # var = E[x^2] - mu^2 collapses two dependent reduction passes into one
    # data read (XLU slots are the scarce resource on v6e/v7x).
    mu = jnp.mean(z, axis=-1, keepdims=True)
    var = jnp.maximum(jnp.mean(z * z, axis=-1, keepdims=True) - mu * mu, 0.0)
    return (z - mu) * jax.lax.rsqrt(var + eps) * gamma + beta


def _split_heads(t2d, num_heads, head_dim):
    # [rows, H*Dh] -> [H, rows, Dh]: one reshape + one transpose pass
    # (replaces the previous 3H unaligned lane slices + stack).
    rows = t2d.shape[0]
    return jnp.transpose(t2d.reshape(rows, num_heads, head_dim), (1, 0, 2))


def _self_attention_kernel(
    xq_ref,        # [1, tq, D]  mxu_dtype   query-tile rows of x
    xkv_ref,       # [1, tk, D]  mxu_dtype   kv-tile rows of x
    wq_ref,        # [D, D]      mxu_dtype
    wkv_ref,       # [D, 2D]     mxu_dtype   (wk | wv packed)
    wo_ref,        # [H, Dh, D]  mxu_dtype
    slab_ref,      # [8, 2D]     f32  rows: bq | bk,bv | bo | qg*s | qb*s | kg | kb | 0
    o_ref,         # [1, tq, D]
    qn_scr,        # [H, tq, Dh] f32  normalized q (resident across kv steps)
    m_scr,         # [H, tq, 1]  f32  running max
    l_scr,         # [H, tq, 1]  f32  running denominator
    acc_scr,       # [H, tq, Dh] f32  running numerator (context accumulator)
    *, num_heads, mxu_dtype,
):
    j = pl.program_id(2)
    n_kv = pl.num_programs(2)
    tq, D = xq_ref.shape[1], xq_ref.shape[2]
    H = num_heads
    Dh = D // H

    @pl.when(j == 0)
    def _init():
        # q projection + per-head LayerNorm, once per (batch, q-tile).
        # Softmax scale is pre-folded into the q-LN affine params (slab rows 3/4).
        q = jnp.dot(xq_ref[0], wq_ref[...],
                    preferred_element_type=jnp.float32) + slab_ref[0:1, :D]
        qh = _split_heads(q, H, Dh)                                # [H, tq, Dh]
        qg = slab_ref[3:4, :Dh].reshape(1, 1, Dh)
        qb = slab_ref[4:5, :Dh].reshape(1, 1, Dh)
        qn_scr[...] = _layernorm(qh, qg, qb)
        m_scr[...] = jnp.full(m_scr.shape, -jnp.inf, dtype=m_scr.dtype)
        l_scr[...] = jnp.zeros(l_scr.shape, l_scr.dtype)
        acc_scr[...] = jnp.zeros(acc_scr.shape, acc_scr.dtype)

    # ---- k/v projection for this kv tile: one packed [D, 2D] MXU matmul ----
    kv = jnp.dot(xkv_ref[0], wkv_ref[...],
                 preferred_element_type=jnp.float32) + slab_ref[1:2, :2 * D]
    kh = _split_heads(kv[:, :D], H, Dh)                            # [H, tk, Dh]
    vh = _split_heads(kv[:, D:], H, Dh)                            # [H, tk, Dh]
    kg = slab_ref[5:6, :Dh].reshape(1, 1, Dh)
    kb = slab_ref[6:7, :Dh].reshape(1, 1, Dh)
    kn = _layernorm(kh, kg, kb)

    # ---- online (flash) softmax update over this kv tile ----
    s = jnp.einsum("hqd,hkd->hqk",
                   qn_scr[...].astype(mxu_dtype), kn.astype(mxu_dtype),
                   preferred_element_type=jnp.float32)             # [H, tq, tk]
    m_prev = m_scr[...]
    m_new = jnp.maximum(m_prev, jnp.max(s, axis=-1, keepdims=True))
    alpha = jnp.exp(m_prev - m_new)                                # [H, tq, 1]
    p = jnp.exp(s - m_new)                                         # [H, tq, tk]
    l_scr[...] = alpha * l_scr[...] + jnp.sum(p, axis=-1, keepdims=True)
    pv = jnp.einsum("hqk,hkd->hqd",
                    p.astype(mxu_dtype), vh.astype(mxu_dtype),
                    preferred_element_type=jnp.float32)            # [H, tq, Dh]
    acc_scr[...] = alpha * acc_scr[...] + pv
    m_scr[...] = m_new

    @pl.when(j == n_kv - 1)
    def _finalize():
        # Exact normalization (once per q tile), then output projection with
        # the head reduction fused into a single [tq, D] matmul accumulator.
        ctx = (acc_scr[...] / l_scr[...]).astype(mxu_dtype)        # [H, tq, Dh]
        out = jnp.zeros((tq, D), jnp.float32)
        for h in range(H):                                         # static unroll
            out = out + jnp.dot(ctx[h], wo_ref[h],
                                preferred_element_type=jnp.float32)
        o_ref[0] = (out + slab_ref[2:3, :D]).astype(o_ref.dtype)


def _pick_vmem_limit_bytes():
    # Per-generation VMEM budget: ~3/4 of physical when the query is available,
    # otherwise 48 MiB (safe on v5e/v6e 128 MiB and v7x 64 MiB).
    try:
        cap = int(getattr(pltpu.get_tpu_info(), "vmem_capacity_bytes", 0))
    except Exception:
        cap = 0
    if cap <= 0:
        return 48 * 1024 * 1024
    return int(min(cap * 3 // 4, 100 * 1024 * 1024))


def self_attention_forward(x, params, num_heads, *, q_tile=None, kv_tile=None,
                           mxu_dtype=jnp.bfloat16, single_buffer_params=True):
    """x: [B, S, D] float32.  params: dict of weights (see init_params)."""
    B, S, D = x.shape
    assert D % num_heads == 0
    H = num_heads
    Dh = D // H
    scale = Dh ** (-0.5)
    f32 = jnp.float32

    def pick_tile(t):
        if t is not None:
            return t
        if S <= 256:            # short sequences: one tile covers everything
            return S
        for cand in (256, 128, 64, 32, 16, 8):
            if S % cand == 0:
                return cand
        return S

    tq = pick_tile(q_tile)
    tk = pick_tile(kv_tile)
    assert S % tq == 0 and S % tk == 0
    nq, nk = S // tq, S // tk

    # ---- trace-time parameter packing ----
    wq = params["wq"].astype(mxu_dtype)                                  # [D, D]
    wkv = jnp.concatenate([params["wk"], params["wv"]], axis=1).astype(mxu_dtype)  # [D, 2D]
    wo_h = params["wo"].reshape(H, Dh, D).astype(mxu_dtype)              # [H, Dh, D]

    W = 2 * D

    def row(v):
        v = jnp.asarray(v, f32).reshape(-1)
        return jnp.pad(v, (0, W - v.shape[0]))

    # One small slab for all biases / LN params (one DMA + one VMEM tile).
    slab = jnp.stack([
        row(params["bq"]),
        row(jnp.concatenate([params["bk"].reshape(-1), params["bv"].reshape(-1)])),
        row(params["bo"]),
        row(params["q_gamma"] * scale),   # softmax scale folded into q-LN gamma
        row(params["q_beta"] * scale),    # ... and beta
        row(params["k_gamma"]),
        row(params["k_beta"]),
        jnp.zeros((W,), f32),
    ], axis=0)                                                           # [8, 2D]

    x_in = x.astype(mxu_dtype)   # halve streamed HBM->VMEM bytes for x

    def const_spec(p):
        zeros = (0,) * p.ndim
        index_map = lambda b, i, j, _z=zeros: _z
        if single_buffer_params:
            # Constant index_map -> no re-DMA; single buffer saves VMEM.
            return pl.BlockSpec(p.shape, index_map, pipeline_mode=pl.Buffered(1))
        return pl.BlockSpec(p.shape, index_map)

    kernel = functools.partial(_self_attention_kernel,
                               num_heads=H, mxu_dtype=mxu_dtype)

    return pl.pallas_call(
        kernel,
        out_shape=jax.ShapeDtypeStruct((B, S, D), x.dtype),
        grid_spec=pltpu.PrefetchScalarGridSpec(
            num_scalar_prefetch=0,
            grid=(B, nq, nk),
            in_specs=[
                pl.BlockSpec((1, tq, D), lambda b, i, j: (b, i, 0)),   # x (query rows)
                pl.BlockSpec((1, tk, D), lambda b, i, j: (b, j, 0)),   # x (kv rows)
                const_spec(wq),
                const_spec(wkv),
                const_spec(wo_h),
                const_spec(slab),
            ],
            out_specs=pl.BlockSpec((1, tq, D), lambda b, i, j: (b, i, 0)),
            scratch_shapes=[
                pltpu.VMEM((H, tq, Dh), f32),   # normalized q
                pltpu.VMEM((H, tq, 1), f32),    # running max
                pltpu.VMEM((H, tq, 1), f32),    # running denominator
                pltpu.VMEM((H, tq, Dh), f32),   # running numerator
            ]),
        compiler_params=pltpu.CompilerParams(
            dimension_semantics=("parallel", "parallel", "arbitrary"),
            vmem_limit_bytes=_pick_vmem_limit_bytes(),
        ),
    )(x_in, x_in, wq, wkv, wo_h, slab)


def _reference(x, params, num_heads):
    """Pure-JAX f32 reference mirroring the PyTorch forward (eval, no mask)."""
    B, S, D = x.shape
    Dh = D // num_heads
    scale = Dh ** (-0.5)

    q = x @ params["wq"] + params["bq"]
    k = x @ params["wk"] + params["bk"]
    v = x @ params["wv"] + params["bv"]

    def split(t):  # [B,S,D] -> [B,H,S,Dh]
        return t.reshape(B, S, num_heads, Dh).transpose(0, 2, 1, 3)

    q, k, v = split(q), split(k), split(v)
    q = _layernorm(q, params["q_gamma"][0], params["q_beta"][0])
    k = _layernorm(k, params["k_gamma"][0], params["k_beta"][0])

    scores = jnp.einsum("bhqd,bhkd->bhqk", q, k) * scale
    p = jax.nn.softmax(scores, axis=-1)
    o = jnp.einsum("bhqk,bhkd->bhqd", p, v)
    o = o.transpose(0, 2, 1, 3).reshape(B, S, D)
    return o @ params["wo"] + params["bo"]


def _reference_matched(x, params, num_heads, mxu_dtype):
    """Pure-JAX mirror of the kernel's math (bf16 MXU operands, f32 accumulation,
    scale folded into the q-LN affine, exact softmax normalization)."""
    B, S, D = x.shape
    H = num_heads
    Dh = D // H
    scale = Dh ** (-0.5)
    c = lambda a: a.astype(mxu_dtype)

    xq = c(x)
    q = jnp.einsum("bsd,de->bse", xq, c(params["wq"]),
                   preferred_element_type=jnp.float32) + params["bq"]
    wkv = jnp.concatenate([params["wk"], params["wv"]], axis=1)
    bkv = jnp.concatenate([params["bk"], params["bv"]], axis=1)
    kvp = jnp.einsum("bsd,de->bse", xq, c(wkv),
                     preferred_element_type=jnp.float32) + bkv
    k = kvp[..., :D]
    v = kvp[..., D:]

    def heads(t):  # [B,S,D] -> [B,H,S,Dh]
        return t.reshape(B, S, H, Dh).transpose(0, 2, 1, 3)

    q, k, v = heads(q), heads(k), heads(v)
    q = _layernorm(q, params["q_gamma"][0] * scale, params["q_beta"][0] * scale)
    k = _layernorm(k, params["k_gamma"][0], params["k_beta"][0])

    s = jnp.einsum("bhsd,bhtd->bhst", c(q), c(k), preferred_element_type=jnp.float32)
    p = jax.nn.softmax(s, axis=-1)
    ctx = jnp.einsum("bhst,bhtd->bhsd", c(p), c(v), preferred_element_type=jnp.float32)
    wo_h = params["wo"].reshape(H, Dh, D)
    out = jnp.einsum("bhsd,hdo->bso", c(ctx), c(wo_h), preferred_element_type=jnp.float32)
    return out + params["bo"]


def init_params(key, dim, num_heads):
    head_dim = dim // num_heads
    ks = jax.random.split(key, 8)
    s = 1.0 / math.sqrt(dim)
    return {
        "wq": jax.random.uniform(ks[0], (dim, dim), jnp.float32, -s, s),
        "bq": jax.random.uniform(ks[1], (1, dim), jnp.float32, -s, s),
        "wk": jax.random.uniform(ks[2], (dim, dim), jnp.float32, -s, s),
        "bk": jax.random.uniform(ks[3], (1, dim), jnp.float32, -s, s),
        "wv": jax.random.uniform(ks[4], (dim, dim), jnp.float32, -s, s),
        "bv": jax.random.uniform(ks[5], (1, dim), jnp.float32, -s, s),
        "wo": jax.random.uniform(ks[6], (dim, dim), jnp.float32, -s, s),
        "bo": jax.random.uniform(ks[7], (1, dim), jnp.float32, -s, s),
        # LayerNorm affine params (PyTorch default init: ones / zeros)
        "q_gamma": jnp.ones((1, head_dim), jnp.float32),
        "q_beta": jnp.zeros((1, head_dim), jnp.float32),
        "k_gamma": jnp.ones((1, head_dim), jnp.float32),
        "k_beta": jnp.zeros((1, head_dim), jnp.float32),
    }


if __name__ == "__main__":
    B, S, D, H = 2, 16, 32, 4   # batch, seq_len, dim, num_heads  (head_dim = 8)

    key = jax.random.PRNGKey(0)
    kx, kp = jax.random.split(key)
    x = jax.random.normal(kx, (B, S, D), jnp.float32)
    params = init_params(kp, D, H)

    try:
        out = jax.block_until_ready(
            self_attention_forward(x, params, H, single_buffer_params=True))
    except Exception:
        # pl.Buffered(1) not accepted by this jax version -> default double buffering.
        out = jax.block_until_ready(
            self_attention_forward(x, params, H, single_buffer_params=False))

    assert out.shape == (B, S, D)

    # Tight check against the matched-precision (bf16 MXU operands) oracle.
    ref_match = _reference_matched(x, params, H, jnp.bfloat16)
    err_match = float(jnp.max(jnp.abs(out - ref_match)))
    assert jnp.allclose(out, ref_match, atol=1e-2, rtol=1e-2), \
        f"matched-precision max abs err = {err_match}"

    # Sanity check against the exact-f32 PyTorch-mirror reference
    # (difference dominated by bf16 rounding of the matmul operands).
    ref_f32 = _reference(x, params, H)
    err_f32 = float(jnp.max(jnp.abs(out - ref_f32)))
    assert jnp.allclose(out, ref_f32, atol=5e-2, rtol=5e-2), \
        f"f32-reference max abs err = {err_f32}"

    print("KERNEL_OK")
</pallas_src>

<mosaic_0001>
module attributes {stable_mosaic.version = 11 : i64} {
  func.func @_self_attention_kernel(%arg0: i32, %arg1: i32, %arg2: i32, %arg3: memref<1x16x32xbf16, #tpu.memory_space<vmem>>, %arg4: memref<1x16x32xbf16, #tpu.memory_space<vmem>>, %arg5: memref<32x32xbf16, #tpu.memory_space<vmem>>, %arg6: memref<32x64xbf16, #tpu.memory_space<vmem>>, %arg7: memref<4x8x32xbf16, #tpu.memory_space<vmem>>, %arg8: memref<8x64xf32, #tpu.memory_space<vmem>>, %arg9: memref<1x16x32xf32, #tpu.memory_space<vmem>>, %arg10: memref<4x16x8xf32, #tpu.memory_space<vmem>>, %arg11: memref<4x16x1xf32, #tpu.memory_space<vmem>>, %arg12: memref<4x16x1xf32, #tpu.memory_space<vmem>>, %arg13: memref<4x16x8xf32, #tpu.memory_space<vmem>>) attributes {dimension_semantics = [#tpu.dimension_semantics<parallel>, #tpu.dimension_semantics<parallel>, #tpu.dimension_semantics<arbitrary>], iteration_bounds = array<i64: 2, 1, 1>, scalar_prefetch = 0 : i64, scratch_operands = 4 : i64, tpu.core_type = #tpu.core_type<tc>, window_params = [{transform_indices = @transform_0, window_bounds = array<i64: 1, 16, 32>}, {transform_indices = @transform_1, window_bounds = array<i64: 1, 16, 32>}, {pipeline_mode = #tpu.pipeline_mode<synchronous>, transform_indices = @transform_2, window_bounds = array<i64: 32, 32>}, {pipeline_mode = #tpu.pipeline_mode<synchronous>, transform_indices = @transform_3, window_bounds = array<i64: 32, 64>}, {pipeline_mode = #tpu.pipeline_mode<synchronous>, transform_indices = @transform_4, window_bounds = array<i64: 4, 8, 32>}, {pipeline_mode = #tpu.pipeline_mode<synchronous>, transform_indices = @transform_5, window_bounds = array<i64: 8, 64>}, {transform_indices = @transform_6, window_bounds = array<i64: 1, 16, 32>}]} {
    %c0_i32 = arith.constant 0 : i32
    %0 = arith.cmpi eq, %arg2, %c0_i32 : i32
    %1 = arith.extui %0 : i1 to i32
    %c0_i32_0 = arith.constant 0 : i32
    %2 = arith.cmpi ne, %1, %c0_i32_0 : i32
    scf.if %2 {
      %c0_41 = arith.constant 0 : index
      %c0_42 = arith.constant 0 : index
      %c0_43 = arith.constant 0 : index
      %75 = vector.load %arg3[%c0_41, %c0_42, %c0_43] : memref<1x16x32xbf16, #tpu.memory_space<vmem>>, vector<1x16x32xbf16>
      %76 = vector.shape_cast %75 : vector<1x16x32xbf16> to vector<16x32xbf16>
      %c0_44 = arith.constant 0 : index
      %c0_45 = arith.constant 0 : index
      %77 = vector.load %arg5[%c0_44, %c0_45] : memref<32x32xbf16, #tpu.memory_space<vmem>>, vector<32x32xbf16>
      %cst_46 = arith.constant dense<0.000000e+00> : vector<16x32xf32>
      %78 = tpu.matmul %76, %77, %cst_46 {dimension_numbers = #tpu.dot_dimension_numbers<[1], [0], [0], [1], [0, 0, 1, 1], [], []>} : vector<16x32xbf16>, vector<32x32xbf16>, vector<16x32xf32> -> vector<16x32xf32>
      %c0_47 = arith.constant 0 : index
      %c0_48 = arith.constant 0 : index
      %79 = vector.load %arg8[%c0_47, %c0_48] : memref<8x64xf32, #tpu.memory_space<vmem>>, vector<1x32xf32>
      %80 = vector.broadcast %79 : vector<1x32xf32> to vector<16x32xf32>
      %81 = arith.addf %78, %80 : vector<16x32xf32>
      %82 = vector.shape_cast %81 : vector<16x32xf32> to vector<16x4x8xf32>
      %83 = tpu.transpose %82, [1, 0, 2] : vector<16x4x8xf32> -> vector<4x16x8xf32>
      %c3 = arith.constant 3 : index
      %c0_49 = arith.constant 0 : index
      %84 = vector.load %arg8[%c3, %c0_49] : memref<8x64xf32, #tpu.memory_space<vmem>>, vector<1x8xf32>
      %85 = vector.shape_cast %84 : vector<1x8xf32> to vector<1x1x8xf32>
      %c4 = arith.constant 4 : index
      %c0_50 = arith.constant 0 : index
      %86 = vector.load %arg8[%c4, %c0_50] : memref<8x64xf32, #tpu.memory_space<vmem>>, vector<1x8xf32>
      %87 = vector.shape_cast %86 : vector<1x8xf32> to vector<1x1x8xf32>
      %cst_51 = arith.constant dense<0.000000e+00> : vector<4x16xf32>
      %88 = vector.multi_reduction <add>, %83, %cst_51 [2] : vector<4x16x8xf32> to vector<4x16xf32>
      %89 = vector.shape_cast %88 : vector<4x16xf32> to vector<4x16x1xf32>
      %cst_52 = arith.constant 8.000000e+00 : f32
      %90 = vector.broadcast %cst_52 : f32 to vector<4x16x1xf32>
      %91 = arith.divf %89, %90 : vector<4x16x1xf32>
      %92 = arith.mulf %83, %83 : vector<4x16x8xf32>
      %cst_53 = arith.constant dense<0.000000e+00> : vector<4x16xf32>
      %93 = vector.multi_reduction <add>, %92, %cst_53 [2] : vector<4x16x8xf32> to vector<4x16xf32>
      %94 = vector.shape_cast %93 : vector<4x16xf32> to vector<4x16x1xf32>
      %cst_54 = arith.constant 8.000000e+00 : f32
      %95 = vector.broadcast %cst_54 : f32 to vector<4x16x1xf32>
      %96 = arith.divf %94, %95 : vector<4x16x1xf32>
      %97 = arith.mulf %91, %91 : vector<4x16x1xf32>
      %98 = arith.subf %96, %97 : vector<4x16x1xf32>
      %cst_55 = arith.constant 0.000000e+00 : f32
      %99 = vector.broadcast %cst_55 : f32 to vector<4x16x1xf32>
      %100 = arith.maximumf %98, %99 : vector<4x16x1xf32>
      %101 = vector.broadcast %91 : vector<4x16x1xf32> to vector<4x16x8xf32>
      %102 = arith.subf %83, %101 : vector<4x16x8xf32>
      %cst_56 = arith.constant 9.99999974E-6 : f32
      %103 = vector.broadcast %cst_56 : f32 to vector<4x16x1xf32>
      %104 = arith.addf %100, %103 : vector<4x16x1xf32>
      %105 = math.rsqrt %104 : vector<4x16x1xf32>
      %106 = vector.broadcast %105 : vector<4x16x1xf32> to vector<4x16x8xf32>
      %107 = arith.mulf %102, %106 : vector<4x16x8xf32>
      %108 = vector.broadcast %85 : vector<1x1x8xf32> to vector<4x16x8xf32>
      %109 = arith.mulf %107, %108 : vector<4x16x8xf32>
      %110 = vector.broadcast %87 : vector<1x1x8xf32> to vector<4x16x8xf32>
      %111 = arith.addf %109, %110 : vector<4x16x8xf32>
      %c0_57 = arith.constant 0 : index
      %c0_58 = arith.constant 0 : index
      %c0_59 = arith.constant 0 : index
      %112 = vector.load %arg10[%c0_57, %c0_58, %c0_59] : memref<4x16x8xf32, #tpu.memory_space<vmem>>, vector<4x16x8xf32>
      tpu.vector_store %arg10[%c0_57, %c0_58, %c0_59], %111 {strides = array<i32>} : memref<4x16x8xf32, #tpu.memory_space<vmem>>, vector<4x16x8xf32>,
      %cst_60 = arith.constant 0xFF800000 : f32
      %113 = vector.broadcast %cst_60 : f32 to vector<4x16x1xf32>
      %c0_61 = arith.constant 0 : index
      %c0_62 = arith.constant 0 : index
      %c0_63 = arith.constant 0 : index
      %114 = vector.load %arg11[%c0_61, %c0_62, %c0_63] : memref<4x16x1xf32, #tpu.memory_space<vmem>>, vector<4x16x1xf32>
      tpu.vector_store %arg11[%c0_61, %c0_62, %c0_63], %113 {strides = array<i32>} : memref<4x16x1xf32, #tpu.memory_space<vmem>>, vector<4x16x1xf32>,
      %cst_64 = arith.constant 0.000000e+00 : f32
      %115 = vector.broadcast %cst_64 : f32 to vector<4x16x1xf32>
      %c0_65 = arith.constant 0 : index
      %c0_66 = arith.constant 0 : index
      %c0_67 = arith.constant 0 : index
      %116 = vector.load %arg12[%c0_65, %c0_66, %c0_67] : memref<4x16x1xf32, #tpu.memory_space<vmem>>, vector<4x16x1xf32>
      tpu.vector_store %arg12[%c0_65, %c0_66, %c0_67], %115 {strides = array<i32>} : memref<4x16x1xf32, #tpu.memory_space<vmem>>, vector<4x16x1xf32>,
      %cst_68 = arith.constant 0.000000e+00 : f32
      %117 = vector.broadcast %cst_68 : f32 to vector<4x16x8xf32>
      %c0_69 = arith.constant 0 : index
      %c0_70 = arith.constant 0 : index
      %c0_71 = arith.constant 0 : index
      %118 = vector.load %arg13[%c0_69, %c0_70, %c0_71] : memref<4x16x8xf32, #tpu.memory_space<vmem>>, vector<4x16x8xf32>
      tpu.vector_store %arg13[%c0_69, %c0_70, %c0_71], %117 {strides = array<i32>} : memref<4x16x8xf32, #tpu.memory_space<vmem>>, vector<4x16x8xf32>,
    } else {
    }
    %c0 = arith.constant 0 : index
    %c0_1 = arith.constant 0 : index
    %c0_2 = arith.constant 0 : index
    %3 = vector.load %arg4[%c0, %c0_1, %c0_2] : memref<1x16x32xbf16, #tpu.memory_space<vmem>>, vector<1x16x32xbf16>
    %4 = vector.shape_cast %3 : vector<1x16x32xbf16> to vector<16x32xbf16>
    %c0_3 = arith.constant 0 : index
    %c0_4 = arith.constant 0 : index
    %5 = vector.load %arg6[%c0_3, %c0_4] : memref<32x64xbf16, #tpu.memory_space<vmem>>, vector<32x64xbf16>
    %cst = arith.constant dense<0.000000e+00> : vector<16x64xf32>
    %6 = tpu.matmul %4, %5, %cst {dimension_numbers = #tpu.dot_dimension_numbers<[1], [0], [0], [1], [0, 0, 1, 1], [], []>} : vector<16x32xbf16>, vector<32x64xbf16>, vector<16x64xf32> -> vector<16x64xf32>
    %c1 = arith.constant 1 : index
    %c0_5 = arith.constant 0 : index
    %7 = vector.load %arg8[%c1, %c0_5] : memref<8x64xf32, #tpu.memory_space<vmem>>, vector<1x64xf32>
    %8 = vector.broadcast %7 : vector<1x64xf32> to vector<16x64xf32>
    %9 = arith.addf %6, %8 : vector<16x64xf32>
    %10 = vector.extract_strided_slice %9 {offsets = [0, 0], sizes = [16, 32], strides = [1, 1]} : vector<16x64xf32> to vector<16x32xf32>
    %11 = vector.shape_cast %10 : vector<16x32xf32> to vector<16x4x8xf32>
    %12 = tpu.transpose %11, [1, 0, 2] : vector<16x4x8xf32> -> vector<4x16x8xf32>
    %13 = vector.extract_strided_slice %9 {offsets = [0, 32], sizes = [16, 32], strides = [1, 1]} : vector<16x64xf32> to vector<16x32xf32>
    %14 = vector.shape_cast %13 : vector<16x32xf32> to vector<16x4x8xf32>
    %15 = tpu.transpose %14, [1, 0, 2] : vector<16x4x8xf32> -> vector<4x16x8xf32>
    %c5 = arith.constant 5 : index
    %c0_6 = arith.constant 0 : index
    %16 = vector.load %arg8[%c5, %c0_6] : memref<8x64xf32, #tpu.memory_space<vmem>>, vector<1x8xf32>
    %17 = vector.shape_cast %16 : vector<1x8xf32> to vector<1x1x8xf32>
    %c6 = arith.constant 6 : index
    %c0_7 = arith.constant 0 : index
    %18 = vector.load %arg8[%c6, %c0_7] : memref<8x64xf32, #tpu.memory_space<vmem>>, vector<1x8xf32>
    %19 = vector.shape_cast %18 : vector<1x8xf32> to vector<1x1x8xf32>
    %cst_8 = arith.constant dense<0.000000e+00> : vector<4x16xf32>
    %20 = vector.multi_reduction <add>, %12, %cst_8 [2] : vector<4x16x8xf32> to vector<4x16xf32>
    %21 = vector.shape_cast %20 : vector<4x16xf32> to vector<4x16x1xf32>
    %cst_9 = arith.constant 8.000000e+00 : f32
    %22 = vector.broadcast %cst_9 : f32 to vector<4x16x1xf32>
    %23 = arith.divf %21, %22 : vector<4x16x1xf32>
    %24 = arith.mulf %12, %12 : vector<4x16x8xf32>
    %cst_10 = arith.constant dense<0.000000e+00> : vector<4x16xf32>
    %25 = vector.multi_reduction <add>, %24, %cst_10 [2] : vector<4x16x8xf32> to vector<4x16xf32>
    %26 = vector.shape_cast %25 : vector<4x16xf32> to vector<4x16x1xf32>
    %cst_11 = arith.constant 8.000000e+00 : f32
    %27 = vector.broadcast %cst_11 : f32 to vector<4x16x1xf32>
    %28 = arith.divf %26, %27 : vector<4x16x1xf32>
    %29 = arith.mulf %23, %23 : vector<4x16x1xf32>
    %30 = arith.subf %28, %29 : vector<4x16x1xf32>
    %cst_12 = arith.constant 0.000000e+00 : f32
    %31 = vector.broadcast %cst_12 : f32 to vector<4x16x1xf32>
    %32 = arith.maximumf %30, %31 : vector<4x16x1xf32>
    %33 = vector.broadcast %23 : vector<4x16x1xf32> to vector<4x16x8xf32>
    %34 = arith.subf %12, %33 : vector<4x16x8xf32>
    %cst_13 = arith.constant 9.99999974E-6 : f32
    %35 = vector.broadcast %cst_13 : f32 to vector<4x16x1xf32>
    %36 = arith.addf %32, %35 : vector<4x16x1xf32>
    %37 = math.rsqrt %36 : vector<4x16x1xf32>
    %38 = vector.broadcast %37 : vector<4x16x1xf32> to vector<4x16x8xf32>
    %39 = arith.mulf %34, %38 : vector<4x16x8xf32>
    %40 = vector.broadcast %17 : vector<1x1x8xf32> to vector<4x16x8xf32>
    %41 = arith.mulf %39, %40 : vector<4x16x8xf32>
    %42 = vector.broadcast %19 : vector<1x1x8xf32> to vector<4x16x8xf32>
    %43 = arith.addf %41, %42 : vector<4x16x8xf32>
    %c0_14 = arith.constant 0 : index
    %c0_15 = arith.constant 0 : index
    %c0_16 = arith.constant 0 : index
    %44 = vector.load %arg10[%c0_14, %c0_15, %c0_16] : memref<4x16x8xf32, #tpu.memory_space<vmem>>, vector<4x16x8xf32>
    %45 = arith.truncf %44 : vector<4x16x8xf32> to vector<4x16x8xbf16>
    %46 = arith.truncf %43 : vector<4x16x8xf32> to vector<4x16x8xbf16>
    "tpu.trace_start"() <{level = 10 : i32, message = "hqd,hkd->hqk"}> : () -> ()
    %cst_17 = arith.constant dense<0.000000e+00> : vector<4x16x16xf32>
    %47 = tpu.matmul %45, %46, %cst_17 {dimension_numbers = #tpu.dot_dimension_numbers<[2], [2], [1], [1], [0, 0, 0, 1, 1, 1], [0], [0]>} : vector<4x16x8xbf16>, vector<4x16x8xbf16>, vector<4x16x16xf32> -> vector<4x16x16xf32>
    "tpu.trace_stop"() : () -> ()
    %c0_18 = arith.constant 0 : index
    %c0_19 = arith.constant 0 : index
    %c0_20 = arith.constant 0 : index
    %48 = vector.load %arg11[%c0_18, %c0_19, %c0_20] : memref<4x16x1xf32, #tpu.memory_space<vmem>>, vector<4x16x1xf32>
    %cst_21 = arith.constant dense<0xFF800000> : vector<4x16xf32>
    %49 = vector.multi_reduction <maximumf>, %47, %cst_21 [2] : vector<4x16x16xf32> to vector<4x16xf32>
    %50 = vector.shape_cast %49 : vector<4x16xf32> to vector<4x16x1xf32>
    %51 = arith.maximumf %48, %50 : vector<4x16x1xf32>
    %52 = arith.subf %48, %51 : vector<4x16x1xf32>
    %53 = math.exp %52 : vector<4x16x1xf32>
    %54 = vector.broadcast %51 : vector<4x16x1xf32> to vector<4x16x16xf32>
    %55 = arith.subf %47, %54 : vector<4x16x16xf32>
    %56 = math.exp %55 : vector<4x16x16xf32>
    %c0_22 = arith.constant 0 : index
    %c0_23 = arith.constant 0 : index
    %c0_24 = arith.constant 0 : index
    %57 = vector.load %arg12[%c0_22, %c0_23, %c0_24] : memref<4x16x1xf32, #tpu.memory_space<vmem>>, vector<4x16x1xf32>
    %58 = arith.mulf %53, %57 : vector<4x16x1xf32>
    %cst_25 = arith.constant dense<0.000000e+00> : vector<4x16xf32>
    %59 = vector.multi_reduction <add>, %56, %cst_25 [2] : vector<4x16x16xf32> to vector<4x16xf32>
    %60 = vector.shape_cast %59 : vector<4x16xf32> to vector<4x16x1xf32>
    %61 = arith.addf %58, %60 : vector<4x16x1xf32>
    %c0_26 = arith.constant 0 : index
    %c0_27 = arith.constant 0 : index
    %c0_28 = arith.constant 0 : index
    %62 = vector.load %arg12[%c0_26, %c0_27, %c0_28] : memref<4x16x1xf32, #tpu.memory_space<vmem>>, vector<4x16x1xf32>
    tpu.vector_store %arg12[%c0_26, %c0_27, %c0_28], %61 {strides = array<i32>} : memref<4x16x1xf32, #tpu.memory_space<vmem>>, vector<4x16x1xf32>,
    %63 = arith.truncf %56 : vector<4x16x16xf32> to vector<4x16x16xbf16>
    %64 = arith.truncf %15 : vector<4x16x8xf32> to vector<4x16x8xbf16>
    "tpu.trace_start"() <{level = 10 : i32, message = "hqk,hkd->hqd"}> : () -> ()
    %cst_29 = arith.constant dense<0.000000e+00> : vector<4x16x8xf32>
    %65 = tpu.matmul %63, %64, %cst_29 {dimension_numbers = #tpu.dot_dimension_numbers<[2], [1], [1], [2], [0, 0, 0, 1, 1, 2], [0], [0]>} : vector<4x16x16xbf16>, vector<4x16x8xbf16>, vector<4x16x8xf32> -> vector<4x16x8xf32>
    "tpu.trace_stop"() : () -> ()
    %c0_30 = arith.constant 0 : index
    %c0_31 = arith.constant 0 : index
    %c0_32 = arith.constant 0 : index
    %66 = vector.load %arg13[%c0_30, %c0_31, %c0_32] : memref<4x16x8xf32, #tpu.memory_space<vmem>>, vector<4x16x8xf32>
    %67 = vector.broadcast %53 : vector<4x16x1xf32> to vector<4x16x8xf32>
    %68 = arith.mulf %67, %66 : vector<4x16x8xf32>
    %69 = arith.addf %68, %65 : vector<4x16x8xf32>
    %c0_33 = arith.constant 0 : index
    %c0_34 = arith.constant 0 : index
    %c0_35 = arith.constant 0 : index
    %70 = vector.load %arg13[%c0_33, %c0_34, %c0_35] : memref<4x16x8xf32, #tpu.memory_space<vmem>>, vector<4x16x8xf32>
    tpu.vector_store %arg13[%c0_33, %c0_34, %c0_35], %69 {strides = array<i32>} : memref<4x16x8xf32, #tpu.memory_space<vmem>>, vector<4x16x8xf32>,
    %c0_36 = arith.constant 0 : index
    %c0_37 = arith.constant 0 : index
    %c0_38 = arith.constant 0 : index
    %71 = vector.load %arg11[%c0_36, %c0_37, %c0_38] : memref<4x16x1xf32, #tpu.memory_space<vmem>>, vector<4x16x1xf32>
    tpu.vector_store %arg11[%c0_36, %c0_37, %c0_38], %51 {strides = array<i32>} : memref<4x16x1xf32, #tpu.memory_space<vmem>>, vector<4x16x1xf32>,
    %c0_i32_39 = arith.constant 0 : i32
    %72 = arith.cmpi eq, %arg2, %c0_i32_39 : i32
    %73 = arith.extui %72 : i1 to i32
    %c0_i32_40 = arith.constant 0 : i32
    %74 = arith.cmpi ne, %73, %c0_i32_40 : i32
    scf.if %74 {
      %c0_41 = arith.constant 0 : index
      %c0_42 = arith.constant 0 : index
      %c0_43 = arith.constant 0 : index
      %75 = vector.load %arg13[%c0_41, %c0_42, %c0_43] : memref<4x16x8xf32, #tpu.memory_space<vmem>>, vector<4x16x8xf32>
      %c0_44 = arith.constant 0 : index
      %c0_45 = arith.constant 0 : index
      %c0_46 = arith.constant 0 : index
      %76 = vector.load %arg12[%c0_44, %c0_45, %c0_46] : memref<4x16x1xf32, #tpu.memory_space<vmem>>, vector<4x16x1xf32>
      %77 = vector.broadcast %76 : vector<4x16x1xf32> to vector<4x16x8xf32>
      %78 = arith.divf %75, %77 : vector<4x16x8xf32>
      %79 = arith.truncf %78 : vector<4x16x8xf32> to vector<4x16x8xbf16>
      %cst_47 = arith.constant 0.000000e+00 : f32
      %80 = vector.broadcast %cst_47 : f32 to vector<16x32xf32>
      %81 = vector.extract_strided_slice %79 {offsets = [0, 0, 0], sizes = [1, 16, 8], strides = [1, 1, 1]} : vector<4x16x8xbf16> to vector<1x16x8xbf16>
      %82 = vector.shape_cast %81 : vector<1x16x8xbf16> to vector<16x8xbf16>
      %c0_48 = arith.constant 0 : index
      %c0_49 = arith.constant 0 : index
      %c0_50 = arith.constant 0 : index
      %83 = vector.load %arg7[%c0_48, %c0_49, %c0_50] : memref<4x8x32xbf16, #tpu.memory_space<vmem>>, vector<1x8x32xbf16>
      %84 = vector.shape_cast %83 : vector<1x8x32xbf16> to vector<8x32xbf16>
      %cst_51 = arith.constant dense<0.000000e+00> : vector<16x32xf32>
      %85 = tpu.matmul %82, %84, %cst_51 {dimension_numbers = #tpu.dot_dimension_numbers<[1], [0], [0], [1], [0, 0, 1, 1], [], []>} : vector<16x8xbf16>, vector<8x32xbf16>, vector<16x32xf32> -> vector<16x32xf32>
      %86 = arith.addf %80, %85 : vector<16x32xf32>
      %87 = vector.extract_strided_slice %79 {offsets = [1, 0, 0], sizes = [1, 16, 8], strides = [1, 1, 1]} : vector<4x16x8xbf16> to vector<1x16x8xbf16>
      %88 = vector.shape_cast %87 : vector<1x16x8xbf16> to vector<16x8xbf16>
      %c1_52 = arith.constant 1 : index
      %c0_53 = arith.constant 0 : index
      %c0_54 = arith.constant 0 : index
      %89 = vector.load %arg7[%c1_52, %c0_53, %c0_54] : memref<4x8x32xbf16, #tpu.memory_space<vmem>>, vector<1x8x32xbf16>
      %90 = vector.shape_cast %89 : vector<1x8x32xbf16> to vector<8x32xbf16>
      %cst_55 = arith.constant dense<0.000000e+00> : vector<16x32xf32>
      %91 = tpu.matmul %88, %90, %cst_55 {dimension_numbers = #tpu.dot_dimension_numbers<[1], [0], [0], [1], [0, 0, 1, 1], [], []>} : vector<16x8xbf16>, vector<8x32xbf16>, vector<16x32xf32> -> vector<16x32xf32>
      %92 = arith.addf %86, %91 : vector<16x32xf32>
      %93 = vector.extract_strided_slice %79 {offsets = [2, 0, 0], sizes = [1, 16, 8], strides = [1, 1, 1]} : vector<4x16x8xbf16> to vector<1x16x8xbf16>
      %94 = vector.shape_cast %93 : vector<1x16x8xbf16> to vector<16x8xbf16>
      %c2 = arith.constant 2 : index
      %c0_56 = arith.constant 0 : index
      %c0_57 = arith.constant 0 : index
      %95 = vector.load %arg7[%c2, %c0_56, %c0_57] : memref<4x8x32xbf16, #tpu.memory_space<vmem>>, vector<1x8x32xbf16>
      %96 = vector.shape_cast %95 : vector<1x8x32xbf16> to vector<8x32xbf16>
      %cst_58 = arith.constant dense<0.000000e+00> : vector<16x32xf32>
      %97 = tpu.matmul %94, %96, %cst_58 {dimension_numbers = #tpu.dot_dimension_numbers<[1], [0], [0], [1], [0, 0, 1, 1], [], []>} : vector<16x8xbf16>, vector<8x32xbf16>, vector<16x32xf32> -> vector<16x32xf32>
      %98 = arith.addf %92, %97 : vector<16x32xf32>
      %99 = vector.extract_strided_slice %79 {offsets = [3, 0, 0], sizes = [1, 16, 8], strides = [1, 1, 1]} : vector<4x16x8xbf16> to vector<1x16x8xbf16>
      %100 = vector.shape_cast %99 : vector<1x16x8xbf16> to vector<16x8xbf16>
      %c3 = arith.constant 3 : index
      %c0_59 = arith.constant 0 : index
      %c0_60 = arith.constant 0 : index
      %101 = vector.load %arg7[%c3, %c0_59, %c0_60] : memref<4x8x32xbf16, #tpu.memory_space<vmem>>, vector<1x8x32xbf16>
      %102 = vector.shape_cast %101 : vector<1x8x32xbf16> to vector<8x32xbf16>
      %cst_61 = arith.constant dense<0.000000e+00> : vector<16x32xf32>
      %103 = tpu.matmul %100, %102, %cst_61 {dimension_numbers = #tpu.dot_dimension_numbers<[1], [0], [0], [1], [0, 0, 1, 1], [], []>} : vector<16x8xbf16>, vector<8x32xbf16>, vector<16x32xf32> -> vector<16x32xf32>
      %104 = arith.addf %98, %103 : vector<16x32xf32>
      %c2_62 = arith.constant 2 : index
      %c0_63 = arith.constant 0 : index
      %105 = vector.load %arg8[%c2_62, %c0_63] : memref<8x64xf32, #tpu.memory_space<vmem>>, vector<1x32xf32>
      %106 = vector.broadcast %105 : vector<1x32xf32> to vector<16x32xf32>
      %107 = arith.addf %104, %106 : vector<16x32xf32>
      %c0_64 = arith.constant 0 : index
      %c0_65 = arith.constant 0 : index
      %c0_66 = arith.constant 0 : index
      %108 = vector.load %arg9[%c0_64, %c0_65, %c0_66] : memref<1x16x32xf32, #tpu.memory_space<vmem>>, vector<1x16x32xf32>
      %109 = vector.shape_cast %108 : vector<1x16x32xf32> to vector<16x32xf32>
      %110 = vector.shape_cast %107 : vector<16x32xf32> to vector<1x16x32xf32>
      tpu.vector_store %arg9[%c0_64, %c0_65, %c0_66], %110 {strides = array<i32>} : memref<1x16x32xf32, #tpu.memory_space<vmem>>, vector<1x16x32xf32>,
    } else {
    }
    return
  }
  func.func @transform_0(%arg0: i32, %arg1: i32, %arg2: i32) -> (i32, i32, i32) {
    %c0_i32 = arith.constant 0 : i32
    %c0_i32_0 = arith.constant 0 : i32
    return %arg0, %arg1, %c0_i32 : i32, i32, i32
  }
  func.func @transform_1(%arg0: i32, %arg1: i32, %arg2: i32) -> (i32, i32, i32) {
    %c0_i32 = arith.constant 0 : i32
    %c0_i32_0 = arith.constant 0 : i32
    return %arg0, %arg2, %c0_i32 : i32, i32, i32
  }
  func.func @transform_2(%arg0: i32, %arg1: i32, %arg2: i32) -> (i32, i32) {
    %c0_i32 = arith.constant 0 : i32
    %c0_i32_0 = arith.constant 0 : i32
    %c0_i32_1 = arith.constant 0 : i32
    return %c0_i32, %c0_i32_0 : i32, i32
  }
  func.func @transform_3(%arg0: i32, %arg1: i32, %arg2: i32) -> (i32, i32) {
    %c0_i32 = arith.constant 0 : i32
    %c0_i32_0 = arith.constant 0 : i32
    %c0_i32_1 = arith.constant 0 : i32
    return %c0_i32, %c0_i32_0 : i32, i32
  }
  func.func @transform_4(%arg0: i32, %arg1: i32, %arg2: i32) -> (i32, i32, i32) {
    %c0_i32 = arith.constant 0 : i32
    %c0_i32_0 = arith.constant 0 : i32
    %c0_i32_1 = arith.constant 0 : i32
    %c0_i32_2 = arith.constant 0 : i32
    return %c0_i32, %c0_i32_0, %c0_i32_1 : i32, i32, i32
  }
  func.func @transform_5(%arg0: i32, %arg1: i32, %arg2: i32) -> (i32, i32) {
    %c0_i32 = arith.constant 0 : i32
    %c0_i32_0 = arith.constant 0 : i32
    %c0_i32_1 = arith.constant 0 : i32
    return %c0_i32, %c0_i32_0 : i32, i32
  }
  func.func @transform_6(%arg0: i32, %arg1: i32, %arg2: i32) -> (i32, i32, i32) {
    %c0_i32 = arith.constant 0 : i32
    %c0_i32_0 = arith.constant 0 : i32
    return %arg0, %arg1, %c0_i32 : i32, i32, i32
  }
}

module attributes {stable_mosaic.version = 11 : i64} {
  func.func @_self_attention_kernel(%arg0: i32, %arg1: i32, %arg2: i32, %arg3: memref<1x16x32xbf16, #tpu.memory_space<vmem>>, %arg4: memref<1x16x32xbf16, #tpu.memory_space<vmem>>, %arg5: memref<32x32xbf16, #tpu.memory_space<vmem>>, %arg6: memref<32x64xbf16, #tpu.memory_space<vmem>>, %arg7: memref<4x8x32xbf16, #tpu.memory_space<vmem>>, %arg8: memref<8x64xf32, #tpu.memory_space<vmem>>, %arg9: memref<1x16x32xf32, #tpu.memory_space<vmem>>, %arg10: memref<4x16x8xf32, #tpu.memory_space<vmem>>, %arg11: memref<4x16x1xf32, #tpu.memory_space<vmem>>, %arg12: memref<4x16x1xf32, #tpu.memory_space<vmem>>, %arg13: memref<4x16x8xf32, #tpu.memory_space<vmem>>) attributes {dimension_semantics = [#tpu.dimension_semantics<parallel>, #tpu.dimension_semantics<parallel>, #tpu.dimension_semantics<arbitrary>], iteration_bounds = array<i64: 2, 1, 1>, scalar_prefetch = 0 : i64, scratch_operands = 4 : i64, tpu.core_type = #tpu.core_type<tc>, window_params = [{transform_indices = @transform_0, window_bounds = array<i64: 1, 16, 32>}, {transform_indices = @transform_1, window_bounds = array<i64: 1, 16, 32>}, {pipeline_mode = #tpu.pipeline_mode<synchronous>, transform_indices = @transform_2, window_bounds = array<i64: 32, 32>}, {pipeline_mode = #tpu.pipeline_mode<synchronous>, transform_indices = @transform_3, window_bounds = array<i64: 32, 64>}, {pipeline_mode = #tpu.pipeline_mode<synchronous>, transform_indices = @transform_4, window_bounds = array<i64: 4, 8, 32>}, {pipeline_mode = #tpu.pipeline_mode<synchronous>, transform_indices = @transform_5, window_bounds = array<i64: 8, 64>}, {transform_indices = @transform_6, window_bounds = array<i64: 1, 16, 32>}]} {
    %c0_i32 = arith.constant 0 : i32
    %0 = arith.cmpi eq, %arg2, %c0_i32 : i32
    %1 = arith.extui %0 : i1 to i32
    %c0_i32_0 = arith.constant 0 : i32
    %2 = arith.cmpi ne, %1, %c0_i32_0 : i32
    scf.if %2 {
      %c0_41 = arith.constant 0 : index
      %c0_42 = arith.constant 0 : index
      %c0_43 = arith.constant 0 : index
      %75 = vector.load %arg3[%c0_41, %c0_42, %c0_43] : memref<1x16x32xbf16, #tpu.memory_space<vmem>>, vector<1x16x32xbf16>
      %76 = vector.shape_cast %75 : vector<1x16x32xbf16> to vector<16x32xbf16>
      %c0_44 = arith.constant 0 : index
      %c0_45 = arith.constant 0 : index
      %77 = vector.load %arg5[%c0_44, %c0_45] : memref<32x32xbf16, #tpu.memory_space<vmem>>, vector<32x32xbf16>
      %cst_46 = arith.constant dense<0.000000e+00> : vector<16x32xf32>
      %78 = tpu.matmul %76, %77, %cst_46 {dimension_numbers = #tpu.dot_dimension_numbers<[1], [0], [0], [1], [0, 0, 1, 1], [], []>} : vector<16x32xbf16>, vector<32x32xbf16>, vector<16x32xf32> -> vector<16x32xf32>
      %c0_47 = arith.constant 0 : index
      %c0_48 = arith.constant 0 : index
      %79 = vector.load %arg8[%c0_47, %c0_48] : memref<8x64xf32, #tpu.memory_space<vmem>>, vector<1x32xf32>
      %80 = vector.broadcast %79 : vector<1x32xf32> to vector<16x32xf32>
      %81 = arith.addf %78, %80 : vector<16x32xf32>
      %82 = vector.shape_cast %81 : vector<16x32xf32> to vector<16x4x8xf32>
      %83 = tpu.transpose %82, [1, 0, 2] : vector<16x4x8xf32> -> vector<4x16x8xf32>
      %c3 = arith.constant 3 : index
      %c0_49 = arith.constant 0 : index
      %84 = vector.load %arg8[%c3, %c0_49] : memref<8x64xf32, #tpu.memory_space<vmem>>, vector<1x8xf32>
      %85 = vector.shape_cast %84 : vector<1x8xf32> to vector<1x1x8xf32>
      %c4 = arith.constant 4 : index
      %c0_50 = arith.constant 0 : index
      %86 = vector.load %arg8[%c4, %c0_50] : memref<8x64xf32, #tpu.memory_space<vmem>>, vector<1x8xf32>
      %87 = vector.shape_cast %86 : vector<1x8xf32> to vector<1x1x8xf32>
      %cst_51 = arith.constant dense<0.000000e+00> : vector<4x16xf32>
      %88 = vector.multi_reduction <add>, %83, %cst_51 [2] : vector<4x16x8xf32> to vector<4x16xf32>
      %89 = vector.shape_cast %88 : vector<4x16xf32> to vector<4x16x1xf32>
      %cst_52 = arith.constant 8.000000e+00 : f32
      %90 = vector.broadcast %cst_52 : f32 to vector<4x16x1xf32>
      %91 = arith.divf %89, %90 : vector<4x16x1xf32>
      %92 = arith.mulf %83, %83 : vector<4x16x8xf32>
      %cst_53 = arith.constant dense<0.000000e+00> : vector<4x16xf32>
      %93 = vector.multi_reduction <add>, %92, %cst_53 [2] : vector<4x16x8xf32> to vector<4x16xf32>
      %94 = vector.shape_cast %93 : vector<4x16xf32> to vector<4x16x1xf32>
      %cst_54 = arith.constant 8.000000e+00 : f32
      %95 = vector.broadcast %cst_54 : f32 to vector<4x16x1xf32>
      %96 = arith.divf %94, %95 : vector<4x16x1xf32>
      %97 = arith.mulf %91, %91 : vector<4x16x1xf32>
      %98 = arith.subf %96, %97 : vector<4x16x1xf32>
      %cst_55 = arith.constant 0.000000e+00 : f32
      %99 = vector.broadcast %cst_55 : f32 to vector<4x16x1xf32>
      %100 = arith.maximumf %98, %99 : vector<4x16x1xf32>
      %101 = vector.broadcast %91 : vector<4x16x1xf32> to vector<4x16x8xf32>
      %102 = arith.subf %83, %101 : vector<4x16x8xf32>
      %cst_56 = arith.constant 9.99999974E-6 : f32
      %103 = vector.broadcast %cst_56 : f32 to vector<4x16x1xf32>
      %104 = arith.addf %100, %103 : vector<4x16x1xf32>
      %105 = math.rsqrt %104 : vector<4x16x1xf32>
      %106 = vector.broadcast %105 : vector<4x16x1xf32> to vector<4x16x8xf32>
      %107 = arith.mulf %102, %106 : vector<4x16x8xf32>
      %108 = vector.broadcast %85 : vector<1x1x8xf32> to vector<4x16x8xf32>
      %109 = arith.mulf %107, %108 : vector<4x16x8xf32>
      %110 = vector.broadcast %87 : vector<1x1x8xf32> to vector<4x16x8xf32>
      %111 = arith.addf %109, %110 : vector<4x16x8xf32>
      %c0_57 = arith.constant 0 : index
      %c0_58 = arith.constant 0 : index
      %c0_59 = arith.constant 0 : index
      %112 = vector.load %arg10[%c0_57, %c0_58, %c0_59] : memref<4x16x8xf32, #tpu.memory_space<vmem>>, vector<4x16x8xf32>
      tpu.vector_store %arg10[%c0_57, %c0_58, %c0_59], %111 {strides = array<i32>} : memref<4x16x8xf32, #tpu.memory_space<vmem>>, vector<4x16x8xf32>,
      %cst_60 = arith.constant 0xFF800000 : f32
      %113 = vector.broadcast %cst_60 : f32 to vector<4x16x1xf32>
      %c0_61 = arith.constant 0 : index
      %c0_62 = arith.constant 0 : index
      %c0_63 = arith.constant 0 : index
      %114 = vector.load %arg11[%c0_61, %c0_62, %c0_63] : memref<4x16x1xf32, #tpu.memory_space<vmem>>, vector<4x16x1xf32>
      tpu.vector_store %arg11[%c0_61, %c0_62, %c0_63], %113 {strides = array<i32>} : memref<4x16x1xf32, #tpu.memory_space<vmem>>, vector<4x16x1xf32>,
      %cst_64 = arith.constant 0.000000e+00 : f32
      %115 = vector.broadcast %cst_64 : f32 to vector<4x16x1xf32>
      %c0_65 = arith.constant 0 : index
      %c0_66 = arith.constant 0 : index
      %c0_67 = arith.constant 0 : index
      %116 = vector.load %arg12[%c0_65, %c0_66, %c0_67] : memref<4x16x1xf32, #tpu.memory_space<vmem>>, vector<4x16x1xf32>
      tpu.vector_store %arg12[%c0_65, %c0_66, %c0_67], %115 {strides = array<i32>} : memref<4x16x1xf32, #tpu.memory_space<vmem>>, vector<4x16x1xf32>,
      %cst_68 = arith.constant 0.000000e+00 : f32
      %117 = vector.broadcast %cst_68 : f32 to vector<4x16x8xf32>
      %c0_69 = arith.constant 0 : index
      %c0_70 = arith.constant 0 : index
      %c0_71 = arith.constant 0 : index
      %118 = vector.load %arg13[%c0_69, %c0_70, %c0_71] : memref<4x16x8xf32, #tpu.memory_space<vmem>>, vector<4x16x8xf32>
      tpu.vector_store %arg13[%c0_69, %c0_70, %c0_71], %117 {strides = array<i32>} : memref<4x16x8xf32, #tpu.memory_space<vmem>>, vector<4x16x8xf32>,
    } else {
    }
    %c0 = arith.constant 0 : index
    %c0_1 = arith.constant 0 : index
    %c0_2 = arith.constant 0 : index
    %3 = vector.load %arg4[%c0, %c0_1, %c0_2] : memref<1x16x32xbf16, #tpu.memory_space<vmem>>, vector<1x16x32xbf16>
    %4 = vector.shape_cast %3 : vector<1x16x32xbf16> to vector<16x32xbf16>
    %c0_3 = arith.constant 0 : index
    %c0_4 = arith.constant 0 : index
    %5 = vector.load %arg6[%c0_3, %c0_4] : memref<32x64xbf16, #tpu.memory_space<vmem>>, vector<32x64xbf16>
    %cst = arith.constant dense<0.000000e+00> : vector<16x64xf32>
    %6 = tpu.matmul %4, %5, %cst {dimension_numbers = #tpu.dot_dimension_numbers<[1], [0], [0], [1], [0, 0, 1, 1], [], []>} : vector<16x32xbf16>, vector<32x64xbf16>, vector<16x64xf32> -> vector<16x64xf32>
    %c1 = arith.constant 1 : index
    %c0_5 = arith.constant 0 : index
    %7 = vector.load %arg8[%c1, %c0_5] : memref<8x64xf32, #tpu.memory_space<vmem>>, vector<1x64xf32>
    %8 = vector.broadcast %7 : vector<1x64xf32> to vector<16x64xf32>
    %9 = arith.addf %6, %8 : vector<16x64xf32>
    %10 = vector.extract_strided_slice %9 {offsets = [0, 0], sizes = [16, 32], strides = [1, 1]} : vector<16x64xf32> to vector<16x32xf32>
    %11 = vector.shape_cast %10 : vector<16x32xf32> to vector<16x4x8xf32>
    %12 = tpu.transpose %11, [1, 0, 2] : vector<16x4x8xf32> -> vector<4x16x8xf32>
    %13 = vector.extract_strided_slice %9 {offsets = [0, 32], sizes = [16, 32], strides = [1, 1]} : vector<16x64xf32> to vector<16x32xf32>
    %14 = vector.shape_cast %13 : vector<16x32xf32> to vector<16x4x8xf32>
    %15 = tpu.transpose %14, [1, 0, 2] : vector<16x4x8xf32> -> vector<4x16x8xf32>
    %c5 = arith.constant 5 : index
    %c0_6 = arith.constant 0 : index
    %16 = vector.load %arg8[%c5, %c0_6] : memref<8x64xf32, #tpu.memory_space<vmem>>, vector<1x8xf32>
    %17 = vector.shape_cast %16 : vector<1x8xf32> to vector<1x1x8xf32>
    %c6 = arith.constant 6 : index
    %c0_7 = arith.constant 0 : index
    %18 = vector.load %arg8[%c6, %c0_7] : memref<8x64xf32, #tpu.memory_space<vmem>>, vector<1x8xf32>
    %19 = vector.shape_cast %18 : vector<1x8xf32> to vector<1x1x8xf32>
    %cst_8 = arith.constant dense<0.000000e+00> : vector<4x16xf32>
    %20 = vector.multi_reduction <add>, %12, %cst_8 [2] : vector<4x16x8xf32> to vector<4x16xf32>
    %21 = vector.shape_cast %20 : vector<4x16xf32> to vector<4x16x1xf32>
    %cst_9 = arith.constant 8.000000e+00 : f32
    %22 = vector.broadcast %cst_9 : f32 to vector<4x16x1xf32>
    %23 = arith.divf %21, %22 : vector<4x16x1xf32>
    %24 = arith.mulf %12, %12 : vector<4x16x8xf32>
    %cst_10 = arith.constant dense<0.000000e+00> : vector<4x16xf32>
    %25 = vector.multi_reduction <add>, %24, %cst_10 [2] : vector<4x16x8xf32> to vector<4x16xf32>
    %26 = vector.shape_cast %25 : vector<4x16xf32> to vector<4x16x1xf32>
    %cst_11 = arith.constant 8.000000e+00 : f32
    %27 = vector.broadcast %cst_11 : f32 to vector<4x16x1xf32>
    %28 = arith.divf %26, %27 : vector<4x16x1xf32>
    %29 = arith.mulf %23, %23 : vector<4x16x1xf32>
    %30 = arith.subf %28, %29 : vector<4x16x1xf32>
    %cst_12 = arith.constant 0.000000e+00 : f32
    %31 = vector.broadcast %cst_12 : f32 to vector<4x16x1xf32>
    %32 = arith.maximumf %30, %31 : vector<4x16x1xf32>
    %33 = vector.broadcast %23 : vector<4x16x1xf32> to vector<4x16x8xf32>
    %34 = arith.subf %12, %33 : vector<4x16x8xf32>
    %cst_13 = arith.constant 9.99999974E-6 : f32
    %35 = vector.broadcast %cst_13 : f32 to vector<4x16x1xf32>
    %36 = arith.addf %32, %35 : vector<4x16x1xf32>
    %37 = math.rsqrt %36 : vector<4x16x1xf32>
    %38 = vector.broadcast %37 : vector<4x16x1xf32> to vector<4x16x8xf32>
    %39 = arith.mulf %34, %38 : vector<4x16x8xf32>
    %40 = vector.broadcast %17 : vector<1x1x8xf32> to vector<4x16x8xf32>
    %41 = arith.mulf %39, %40 : vector<4x16x8xf32>
    %42 = vector.broadcast %19 : vector<1x1x8xf32> to vector<4x16x8xf32>
    %43 = arith.addf %41, %42 : vector<4x16x8xf32>
    %c0_14 = arith.constant 0 : index
    %c0_15 = arith.constant 0 : index
    %c0_16 = arith.constant 0 : index
    %44 = vector.load %arg10[%c0_14, %c0_15, %c0_16] : memref<4x16x8xf32, #tpu.memory_space<vmem>>, vector<4x16x8xf32>
    %45 = arith.truncf %44 : vector<4x16x8xf32> to vector<4x16x8xbf16>
    %46 = arith.truncf %43 : vector<4x16x8xf32> to vector<4x16x8xbf16>
    "tpu.trace_start"() <{level = 10 : i32, message = "hqd,hkd->hqk"}> : () -> ()
    %cst_17 = arith.constant dense<0.000000e+00> : vector<4x16x16xf32>
    %47 = tpu.matmul %45, %46, %cst_17 {dimension_numbers = #tpu.dot_dimension_numbers<[2], [2], [1], [1], [0, 0, 0, 1, 1, 1], [0], [0]>} : vector<4x16x8xbf16>, vector<4x16x8xbf16>, vector<4x16x16xf32> -> vector<4x16x16xf32>
    "tpu.trace_stop"() : () -> ()
    %c0_18 = arith.constant 0 : index
    %c0_19 = arith.constant 0 : index
    %c0_20 = arith.constant 0 : index
    %48 = vector.load %arg11[%c0_18, %c0_19, %c0_20] : memref<4x16x1xf32, #tpu.memory_space<vmem>>, vector<4x16x1xf32>
    %cst_21 = arith.constant dense<0xFF800000> : vector<4x16xf32>
    %49 = vector.multi_reduction <maximumf>, %47, %cst_21 [2] : vector<4x16x16xf32> to vector<4x16xf32>
    %50 = vector.shape_cast %49 : vector<4x16xf32> to vector<4x16x1xf32>
    %51 = arith.maximumf %48, %50 : vector<4x16x1xf32>
    %52 = arith.subf %48, %51 : vector<4x16x1xf32>
    %53 = math.exp %52 : vector<4x16x1xf32>
    %54 = vector.broadcast %51 : vector<4x16x1xf32> to vector<4x16x16xf32>
    %55 = arith.subf %47, %54 : vector<4x16x16xf32>
    %56 = math.exp %55 : vector<4x16x16xf32>
    %c0_22 = arith.constant 0 : index
    %c0_23 = arith.constant 0 : index
    %c0_24 = arith.constant 0 : index
    %57 = vector.load %arg12[%c0_22, %c0_23, %c0_24] : memref<4x16x1xf32, #tpu.memory_space<vmem>>, vector<4x16x1xf32>
    %58 = arith.mulf %53, %57 : vector<4x16x1xf32>
    %cst_25 = arith.constant dense<0.000000e+00> : vector<4x16xf32>
    %59 = vector.multi_reduction <add>, %56, %cst_25 [2] : vector<4x16x16xf32> to vector<4x16xf32>
    %60 = vector.shape_cast %59 : vector<4x16xf32> to vector<4x16x1xf32>
    %61 = arith.addf %58, %60 : vector<4x16x1xf32>
    %c0_26 = arith.constant 0 : index
    %c0_27 = arith.constant 0 : index
    %c0_28 = arith.constant 0 : index
    %62 = vector.load %arg12[%c0_26, %c0_27, %c0_28] : memref<4x16x1xf32, #tpu.memory_space<vmem>>, vector<4x16x1xf32>
    tpu.vector_store %arg12[%c0_26, %c0_27, %c0_28], %61 {strides = array<i32>} : memref<4x16x1xf32, #tpu.memory_space<vmem>>, vector<4x16x1xf32>,
    %63 = arith.truncf %56 : vector<4x16x16xf32> to vector<4x16x16xbf16>
    %64 = arith.truncf %15 : vector<4x16x8xf32> to vector<4x16x8xbf16>
    "tpu.trace_start"() <{level = 10 : i32, message = "hqk,hkd->hqd"}> : () -> ()
    %cst_29 = arith.constant dense<0.000000e+00> : vector<4x16x8xf32>
    %65 = tpu.matmul %63, %64, %cst_29 {dimension_numbers = #tpu.dot_dimension_numbers<[2], [1], [1], [2], [0, 0, 0, 1, 1, 2], [0], [0]>} : vector<4x16x16xbf16>, vector<4x16x8xbf16>, vector<4x16x8xf32> -> vector<4x16x8xf32>
    "tpu.trace_stop"() : () -> ()
    %c0_30 = arith.constant 0 : index
    %c0_31 = arith.constant 0 : index
    %c0_32 = arith.constant 0 : index
    %66 = vector.load %arg13[%c0_30, %c0_31, %c0_32] : memref<4x16x8xf32, #tpu.memory_space<vmem>>, vector<4x16x8xf32>
    %67 = vector.broadcast %53 : vector<4x16x1xf32> to vector<4x16x8xf32>
    %68 = arith.mulf %67, %66 : vector<4x16x8xf32>
    %69 = arith.addf %68, %65 : vector<4x16x8xf32>
    %c0_33 = arith.constant 0 : index
    %c0_34 = arith.constant 0 : index
    %c0_35 = arith.constant 0 : index
    %70 = vector.load %arg13[%c0_33, %c0_34, %c0_35] : memref<4x16x8xf32, #tpu.memory_space<vmem>>, vector<4x16x8xf32>
    tpu.vector_store %arg13[%c0_33, %c0_34, %c0_35], %69 {strides = array<i32>} : memref<4x16x8xf32, #tpu.memory_space<vmem>>, vector<4x16x8xf32>,
    %c0_36 = arith.constant 0 : index
    %c0_37 = arith.constant 0 : index
    %c0_38 = arith.constant 0 : index
    %71 = vector.load %arg11[%c0_36, %c0_37, %c0_38] : memref<4x16x1xf32, #tpu.memory_space<vmem>>, vector<4x16x1xf32>
    tpu.vector_store %arg11[%c0_36, %c0_37, %c0_38], %51 {strides = array<i32>} : memref<4x16x1xf32, #tpu.memory_space<vmem>>, vector<4x16x1xf32>,
    %c0_i32_39 = arith.constant 0 : i32
    %72 = arith.cmpi eq, %arg2, %c0_i32_39 : i32
    %73 = arith.extui %72 : i1 to i32
    %c0_i32_40 = arith.constant 0 : i32
    %74 = arith.cmpi ne, %73, %c0_i32_40 : i32
    scf.if %74 {
      %c0_41 = arith.constant 0 : index
      %c0_42 = arith.constant 0 : index
      %c0_43 = arith.constant 0 : index
      %75 = vector.load %arg13[%c0_41, %c0_42, %c0_43] : memref<4x16x8xf32, #tpu.memory_space<vmem>>, vector<4x16x8xf32>
      %c0_44 = arith.constant 0 : index
      %c0_45 = arith.constant 0 : index
      %c0_46 = arith.constant 0 : index
      %76 = vector.load %arg12[%c0_44, %c0_45, %c0_46] : memref<4x16x1xf32, #tpu.memory_space<vmem>>, vector<4x16x1xf32>
      %77 = vector.broadcast %76 : vector<4x16x1xf32> to vector<4x16x8xf32>
      %78 = arith.divf %75, %77 : vector<4x16x8xf32>
      %79 = arith.truncf %78 : vector<4x16x8xf32> to vector<4x16x8xbf16>
      %cst_47 = arith.constant 0.000000e+00 : f32
      %80 = vector.broadcast %cst_47 : f32 to vector<16x32xf32>
      %81 = vector.extract_strided_slice %79 {offsets = [0, 0, 0], sizes = [1, 16, 8], strides = [1, 1, 1]} : vector<4x16x8xbf16> to vector<1x16x8xbf16>
      %82 = vector.shape_cast %81 : vector<1x16x8xbf16> to vector<16x8xbf16>
      %c0_48 = arith.constant 0 : index
      %c0_49 = arith.constant 0 : index
      %c0_50 = arith.constant 0 : index
      %83 = vector.load %arg7[%c0_48, %c0_49, %c0_50] : memref<4x8x32xbf16, #tpu.memory_space<vmem>>, vector<1x8x32xbf16>
      %84 = vector.shape_cast %83 : vector<1x8x32xbf16> to vector<8x32xbf16>
      %cst_51 = arith.constant dense<0.000000e+00> : vector<16x32xf32>
      %85 = tpu.matmul %82, %84, %cst_51 {dimension_numbers = #tpu.dot_dimension_numbers<[1], [0], [0], [1], [0, 0, 1, 1], [], []>} : vector<16x8xbf16>, vector<8x32xbf16>, vector<16x32xf32> -> vector<16x32xf32>
      %86 = arith.addf %80, %85 : vector<16x32xf32>
      %87 = vector.extract_strided_slice %79 {offsets = [1, 0, 0], sizes = [1, 16, 8], strides = [1, 1, 1]} : vector<4x16x8xbf16> to vector<1x16x8xbf16>
      %88 = vector.shape_cast %87 : vector<1x16x8xbf16> to vector<16x8xbf16>
      %c1_52 = arith.constant 1 : index
      %c0_53 = arith.constant 0 : index
      %c0_54 = arith.constant 0 : index
      %89 = vector.load %arg7[%c1_52, %c0_53, %c0_54] : memref<4x8x32xbf16, #tpu.memory_space<vmem>>, vector<1x8x32xbf16>
      %90 = vector.shape_cast %89 : vector<1x8x32xbf16> to vector<8x32xbf16>
      %cst_55 = arith.constant dense<0.000000e+00> : vector<16x32xf32>
      %91 = tpu.matmul %88, %90, %cst_55 {dimension_numbers = #tpu.dot_dimension_numbers<[1], [0], [0], [1], [0, 0, 1, 1], [], []>} : vector<16x8xbf16>, vector<8x32xbf16>, vector<16x32xf32> -> vector<16x32xf32>
      %92 = arith.addf %86, %91 : vector<16x32xf32>
      %93 = vector.extract_strided_slice %79 {offsets = [2, 0, 0], sizes = [1, 16, 8], strides = [1, 1, 1]} : vector<4x16x8xbf16> to vector<1x16x8xbf16>
      %94 = vector.shape_cast %93 : vector<1x16x8xbf16> to vector<16x8xbf16>
      %c2 = arith.constant 2 : index
      %c0_56 = arith.constant 0 : index
      %c0_57 = arith.constant 0 : index
      %95 = vector.load %arg7[%c2, %c0_56, %c0_57] : memref<4x8x32xbf16, #tpu.memory_space<vmem>>, vector<1x8x32xbf16>
      %96 = vector.shape_cast %95 : vector<1x8x32xbf16> to vector<8x32xbf16>
      %cst_58 = arith.constant dense<0.000000e+00> : vector<16x32xf32>
      %97 = tpu.matmul %94, %96, %cst_58 {dimension_numbers = #tpu.dot_dimension_numbers<[1], [0], [0], [1], [0, 0, 1, 1], [], []>} : vector<16x8xbf16>, vector<8x32xbf16>, vector<16x32xf32> -> vector<16x32xf32>
      %98 = arith.addf %92, %97 : vector<16x32xf32>
      %99 = vector.extract_strided_slice %79 {offsets = [3, 0, 0], sizes = [1, 16, 8], strides = [1, 1, 1]} : vector<4x16x8xbf16> to vector<1x16x8xbf16>
      %100 = vector.shape_cast %99 : vector<1x16x8xbf16> to vector<16x8xbf16>
      %c3 = arith.constant 3 : index
      %c0_59 = arith.constant 0 : index
      %c0_60 = arith.constant 0 : index
      %101 = vector.load %arg7[%c3, %c0_59, %c0_60] : memref<4x8x32xbf16, #tpu.memory_space<vmem>>, vector<1x8x32xbf16>
      %102 = vector.shape_cast %101 : vector<1x8x32xbf16> to vector<8x32xbf16>
      %cst_61 = arith.constant dense<0.000000e+00> : vector<16x32xf32>
      %103 = tpu.matmul %100, %102, %cst_61 {dimension_numbers = #tpu.dot_dimension_numbers<[1], [0], [0], [1], [0, 0, 1, 1], [], []>} : vector<16x8xbf16>, vector<8x32xbf16>, vector<16x32xf32> -> vector<16x32xf32>
      %104 = arith.addf %98, %103 : vector<16x32xf32>
      %c2_62 = arith.constant 2 : index
      %c0_63 = arith.constant 0 : index
      %105 = vector.load %arg8[%c2_62, %c0_63] : memref<8x64xf32, #tpu.memory_space<vmem>>, vector<1x32xf32>
      %106 = vector.broadcast %105 : vector<1x32xf32> to vector<16x32xf32>
      %107 = arith.addf %104, %106 : vector<16x32xf32>
      %c0_64 = arith.constant 0 : index
      %c0_65 = arith.constant 0 : index
      %c0_66 = arith.constant 0 : index
      %108 = vector.load %arg9[%c0_64, %c0_65, %c0_66] : memref<1x16x32xf32, #tpu.memory_space<vmem>>, vector<1x16x32xf32>
      %109 = vector.shape_cast %108 : vector<1x16x32xf32> to vector<16x32xf32>
      %110 = vector.shape_cast %107 : vector<16x32xf32> to vector<1x16x32xf32>
      tpu.vector_store %arg9[%c0_64, %c0_65, %c0_66], %110 {strides = array<i32>} : memref<1x16x32xf32, #tpu.memory_space<vmem>>, vector<1x16x32xf32>,
    } else {
    }
    return
  }
  func.func @transform_0(%arg0: i32, %arg1: i32, %arg2: i32) -> (i32, i32, i32) {
    %c0_i32 = arith.constant 0 : i32
    %c0_i32_0 = arith.constant 0 : i32
    return %arg0, %arg1, %c0_i32 : i32, i32, i32
  }
  func.func @transform_1(%arg0: i32, %arg1: i32, %arg2: i32) -> (i32, i32, i32) {
    %c0_i32 = arith.constant 0 : i32
    %c0_i32_0 = arith.constant 0 : i32
    return %arg0, %arg2, %c0_i32 : i32, i32, i32
  }
  func.func @transform_2(%arg0: i32, %arg1: i32, %arg2: i32) -> (i32, i32) {
    %c0_i32 = arith.constant 0 : i32
    %c0_i32_0 = arith.constant 0 : i32
    %c0_i32_1 = arith.constant 0 : i32
    return %c0_i32, %c0_i32_0 : i32, i32
  }
  func.func @transform_3(%arg0: i32, %arg1: i32, %arg2: i32) -> (i32, i32) {
    %c0_i32 = arith.constant 0 : i32
    %c0_i32_0 = arith.constant 0 : i32
    %c0_i32_1 = arith.constant 0 : i32
    return %c0_i32, %c0_i32_0 : i32, i32
  }
  func.func @transform_4(%arg0: i32, %arg1: i32, %arg2: i32) -> (i32, i32, i32) {
    %c0_i32 = arith.constant 0 : i32
    %c0_i32_0 = arith.constant 0 : i32
    %c0_i32_1 = arith.constant 0 : i32
    %c0_i32_2 = arith.constant 0 : i32
    return %c0_i32, %c0_i32_0, %c0_i32_1 : i32, i32, i32
  }
  func.func @transform_5(%arg0: i32, %arg1: i32, %arg2: i32) -> (i32, i32) {
    %c0_i32 = arith.constant 0 : i32
    %c0_i32_0 = arith.constant 0 : i32
    %c0_i32_1 = arith.constant 0 : i32
    return %c0_i32, %c0_i32_0 : i32, i32
  }
  func.func @transform_6(%arg0: i32, %arg1: i32, %arg2: i32) -> (i32, i32, i32) {
    %c0_i32 = arith.constant 0 : i32
    %c0_i32_0 = arith.constant 0 : i32
    return %arg0, %arg1, %c0_i32 : i32, i32, i32
  }
}

</mosaic_0001>

<llo_original>
// kernel: tpu_custom_call.1
$region0: #{tpu_custom_call.1}
  #allocation0 [shape = 'u32[]', space=smem, size = 0x4, offset = 0x4, fixed_abs, tag = 'smem constant byte address 0x4 - core index']
  #allocation1 [shape = 'u32[72,128]{1,0:T(1,128)}', space=vmem, size = 0x9000, scoped, tag = 'internal scratch']
  #allocation2 [shape = 'f32[4,16,8]{2,1,0:T(8,128)}', space=vmem, size = 0x8000, scoped, tag = 'scratch operand']
  #allocation3 [shape = 'f32[4,16,1]{2,1,0:T(8,128)}', space=vmem, size = 0x8000, scoped, tag = 'scratch operand']
  #allocation4 [shape = 'f32[4,16,1]{2,1,0:T(8,128)}', space=vmem, size = 0x8000, scoped, tag = 'scratch operand']
  #allocation5 [shape = 'f32[4,16,8]{2,1,0:T(8,128)}', space=vmem, size = 0x8000, scoped, tag = 'scratch operand']
  %s0 = inlined_call_operand.hbm [shape: bf16[2,16,32], index: 0, kind: input, shape index: {}]
  %s1 = inlined_call_operand.hbm [shape: bf16[2,16,32], index: 1, kind: input, shape index: {}]
  %s2 = inlined_call_operand.hbm [shape: bf16[32,32], index: 2, kind: input, shape index: {}]
  %s3 = inlined_call_operand.hbm [shape: bf16[32,64], index: 3, kind: input, shape index: {}]
  %s4 = inlined_call_operand.hbm [shape: bf16[4,8,32], index: 4, kind: input, shape index: {}]
  %s5 = inlined_call_operand.hbm [shape: f32[8,64], index: 5, kind: input, shape index: {}]
  %s6 = inlined_call_operand.hbm [shape: f32[2,16,32], index: 6, kind: output, shape index: {}]
  %s7 = sld [smem:[#allocation0]]
  $region89: #{tpu_custom_call.1} parent=0
    _
  %s9 = ssub.s32 1, %s7
  %s10 = scalar_select 0, %s9, %s7
  $region1: #{tpu_custom_call.1} parent=0
    #allocation6 [shape = 'u8[8192]{0}', space=vmem, size = 0x2000, scoped, tag = 'input window, operand 0']
    #allocation7 [shape = 's32[2]{0}', space=sflag, size = 0x8, scoped, tag = 'scoped memory for tpu_custom_call.1']
    #allocation8 [shape = 's32[2]{0}', space=sflag, size = 0x8, scoped, tag = 'scoped memory for tpu_custom_call.1']
    #allocation9 [shape = 'u8[8192]{0}', space=vmem, size = 0x2000, scoped, tag = 'input window, operand 1']
    #allocation10 [shape = 's32[2]{0}', space=sflag, size = 0x8, scoped, tag = 'scoped memory for tpu_custom_call.1']
    #allocation11 [shape = 'u8[8192]{0}', space=vmem, size = 0x2000, scoped, tag = 'input window, operand 2, single buffered']
    #allocation12 [shape = 'u8[8192]{0}', space=vmem, size = 0x2000, scoped, tag = 'input window, operand 3, single buffered']
    #allocation13 [shape = 's32[1]{0}', space=sflag, size = 0x4, scoped, tag = 'scoped memory for tpu_custom_call.1']
    #allocation14 [shape = 'u8[8192]{0}', space=vmem, size = 0x2000, scoped, tag = 'input window, operand 4, single buffered']
    #allocation15 [shape = 'u8[4096]{0}', space=vmem, size = 0x1000, scoped, tag = 'input window, operand 5, single buffered']
    #allocation16 [shape = 's32[1]{0}', space=sflag, size = 0x4, scoped, tag = 'scoped memory for tpu_custom_call.1']
    #allocation17 [shape = 'u8[16384]{0}', space=vmem, size = 0x4000, scoped, tag = 'output window, operand 0']
    %11 = vsyncpa [#allocation7], 0
    %s12 = scalar_lea.sflag [#allocation7], 1
    %13 = vsyncpa %s12, 0
    %14 = vsyncpa [#allocation10], 0
    %s15 = scalar_lea.sflag [#allocation10], 1
    %16 = vsyncpa %s15, 0
    %17 = vsyncpa [#allocation13], 0
    %18 = vsyncpa [#allocation16], 0
    %19 = vsyncpa [#allocation8], 0
    %s20 = scalar_lea.sflag [#allocation8], 1
    %21 = vsyncpa %s20, 0
    loop: start=0, step=1, limit=4
    $region2: #{tpu_custom_call.1} parent=1 // loop_pre_header
      _
    $region3: #{tpu_custom_call.1} parent=1 // loop_header
      %s23 = sphi 0, %s27
      %p24 = scmp.ge.s32.totalorder %s23, 4
      %s30 = sphi 0, %s49
      %s31 = sphi 0, %s45
      %s32 = sphi 0, %s41
      %s33 = sphi 0, %s30
      %s34 = sphi 0, %s31
      %s35 = sphi 0, %s32
      %s36 = sphi 0, %s33
      %s37 = sphi 0, %s34
      %s38 = sphi 0, %s35
      %s54 = sphi 0, %s56
      %s57 = sphi 0, %s54
      %s58 = sphi 0, %s57
      %s74 = sphi 0, %s58
      %s82 = sphi 0, %s84
      %s85 = sphi 0, %s82
      %s86 = sphi 0, %s85
      %s102 = sphi 0, %s86
      %s106 = sphi 0, %s106
      %s108 = sphi 0, %s106
      %s109 = sphi 0, %s108
      %s123 = sphi 0, %s109
      %s127 = sphi 0, %s127
      %s129 = sphi 0, %s127
      %s130 = sphi 0, %s129
      %s144 = sphi 0, %s130
      %s148 = sphi 0, %s148
      %s150 = sphi 0, %s148
      %s151 = sphi 0, %s150
      %s165 = sphi 0, %s151
      %s169 = sphi 0, %s169
      %s171 = sphi 0, %s169
      %s172 = sphi 0, %s171
      %s186 = sphi 0, %s172
      %s194 = sphi 0, %s196
      %s197 = sphi 0, %s194
      %s198 = sphi 0, %s197
      %s214 = sphi 0, %s198
    $region4: #{tpu_custom_call.1} parent=1 // loop_header_branch
      %26 = sbr.rel (%p24) target = $region8
    $region5: #{tpu_custom_call.1} parent=1 // loop_body
      %s28 = ssub.s32 %s23, 1
      %s29 = ssub.s32 %s23, 2
      %s39 = sadd.s32 1, %s32
      %p40 = scmp.ge.s32.totalorder %s39, 1
      %s41 = scalar_select %p40, 0, %s39
      %s42 = sadd.s32 1, %s31
      %s43 = scalar_select %p40, %s42, %s31
      %p44 = scmp.ge.s32.totalorder %s43, 1
      %s45 = scalar_select %p44, 0, %s43
      %s46 = sadd.s32 1, %s30
      %s47 = scalar_select %p44, %s46, %s30
      %p48 = scmp.ge.s32.totalorder %s47, 2
      %s49 = scalar_select %p48, 0, %s47
      %s50 = ssub.s32 %s30, %s49
      %s51 = ssub.s32 %s31, %s45
      %s52 = sor.u32 %s50, %s51
      %p53 = scmp.eq.s32.totalorder %s52, 0
      %s55 = sadd.s32 %s54, 1
      %s56 = scalar_select %p53, %s54, %s55
      %p59 = pneg %p53
      %p60 = scmp.eq.s32.totalorder %s23, 1
      %p61 = por %p59, %p60
      %p62 = scmp.ne.s32.totalorder %s54, %s57
      %p63 = scmp.eq.s32.totalorder %s23, 0
      %p64 = por %p62, %p63
      %p65 = scmp.ne.s32.totalorder %s54, %s57
      %p66 = scmp.eq.s32.totalorder %s28, 1
      %p67 = por %p65, %p66
      %p68 = scmp.ne.s32.totalorder %s57, %s58
      %p69 = scmp.eq.s32.totalorder %s28, 0
      %p70 = por %p68, %p69
      %p71 = scmp.ne.s32.totalorder %s57, %s58
      %p72 = scmp.eq.s32.totalorder %s29, 1
      %p73 = por %p71, %p72
      %p75 = scmp.ne.s32.totalorder %s58, %s74
      %p76 = scmp.eq.s32.totalorder %s29, 0
      %p77 = por %p75, %p76
      %s78 = ssub.s32 %s30, %s49
      %s79 = ssub.s32 %s32, %s41
      %s80 = sor.u32 %s78, %s79
      %p81 = scmp.eq.s32.totalorder %s80, 0
      %s83 = sadd.s32 %s82, 1
      %s84 = scalar_select %p81, %s82, %s83
      %p87 = pneg %p81
      %p88 = scmp.eq.s32.totalorder %s23, 1
      %p89 = por %p87, %p88
      %p90 = scmp.ne.s32.totalorder %s82, %s85
      %p91 = scmp.eq.s32.totalorder %s23, 0
      %p92 = por %p90, %p91
      %p93 = scmp.ne.s32.totalorder %s82, %s85
      %p94 = scmp.eq.s32.totalorder %s28, 1
      %p95 = por %p93, %p94
      %p96 = scmp.ne.s32.totalorder %s85, %s86
      %p97 = scmp.eq.s32.totalorder %s28, 0
      %p98 = por %p96, %p97
      %p99 = scmp.ne.s32.totalorder %s85, %s86
      %p100 = scmp.eq.s32.totalorder %s29, 1
      %p101 = por %p99, %p100
      %p103 = scmp.ne.s32.totalorder %s86, %s102
      %p104 = scmp.eq.s32.totalorder %s29, 0
      %p105 = por %p103, %p104
      %s107 = sadd.s32 %s106, 1
      %p110 = scmp.eq.s32.totalorder %s23, 1
      %p111 = scmp.ne.s32.totalorder %s106, %s108
      %p112 = scmp.eq.s32.totalorder %s23, 0
      %p113 = por %p111, %p112
      %p114 = scmp.ne.s32.totalorder %s106, %s108
      %p115 = scmp.eq.s32.totalorder %s28, 1
      %p116 = por %p114, %p115
      %p117 = scmp.ne.s32.totalorder %s108, %s109
      %p118 = scmp.eq.s32.totalorder %s28, 0
      %p119 = por %p117, %p118
      %p120 = scmp.ne.s32.totalorder %s108, %s109
      %p121 = scmp.eq.s32.totalorder %s29, 1
      %p122 = por %p120, %p121
      %p124 = scmp.ne.s32.totalorder %s109, %s123
      %p125 = scmp.eq.s32.totalorder %s29, 0
      %p126 = por %p124, %p125
      %s128 = sadd.s32 %s127, 1
      %p131 = scmp.eq.s32.totalorder %s23, 1
      %p132 = scmp.ne.s32.totalorder %s127, %s129
      %p133 = scmp.eq.s32.totalorder %s23, 0
      %p134 = por %p132, %p133
      %p135 = scmp.ne.s32.totalorder %s127, %s129
      %p136 = scmp.eq.s32.totalorder %s28, 1
      %p137 = por %p135, %p136
      %p138 = scmp.ne.s32.totalorder %s129, %s130
      %p139 = scmp.eq.s32.totalorder %s28, 0
      %p140 = por %p138, %p139
      %p141 = scmp.ne.s32.totalorder %s129, %s130
      %p142 = scmp.eq.s32.totalorder %s29, 1
      %p143 = por %p141, %p142
      %p145 = scmp.ne.s32.totalorder %s130, %s144
      %p146 = scmp.eq.s32.totalorder %s29, 0
      %p147 = por %p145, %p146
      %s149 = sadd.s32 %s148, 1
      %p152 = scmp.eq.s32.totalorder %s23, 1
      %p153 = scmp.ne.s32.totalorder %s148, %s150
      %p154 = scmp.eq.s32.totalorder %s23, 0
      %p155 = por %p153, %p154
      %p156 = scmp.ne.s32.totalorder %s148, %s150
      %p157 = scmp.eq.s32.totalorder %s28, 1
      %p158 = por %p156, %p157
      %p159 = scmp.ne.s32.totalorder %s150, %s151
      %p160 = scmp.eq.s32.totalorder %s28, 0
      %p161 = por %p159, %p160
      %p162 = scmp.ne.s32.totalorder %s150, %s151
      %p163 = scmp.eq.s32.totalorder %s29, 1
      %p164 = por %p162, %p163
      %p166 = scmp.ne.s32.totalorder %s151, %s165
      %p167 = scmp.eq.s32.totalorder %s29, 0
      %p168 = por %p166, %p167
      %s170 = sadd.s32 %s169, 1
      %p173 = scmp.eq.s32.totalorder %s23, 1
      %p174 = scmp.ne.s32.totalorder %s169, %s171
      %p175 = scmp.eq.s32.totalorder %s23, 0
      %p176 = por %p174, %p175
      %p177 = scmp.ne.s32.totalorder %s169, %s171
      %p178 = scmp.eq.s32.totalorder %s28, 1
      %p179 = por %p177, %p178
      %p180 = scmp.ne.s32.totalorder %s171, %s172
      %p181 = scmp.eq.s32.totalorder %s28, 0
      %p182 = por %p180, %p181
      %p183 = scmp.ne.s32.totalorder %s171, %s172
      %p184 = scmp.eq.s32.totalorder %s29, 1
      %p185 = por %p183, %p184
      %p187 = scmp.ne.s32.totalorder %s172, %s186
      %p188 = scmp.eq.s32.totalorder %s29, 0
      %p189 = por %p187, %p188
      %s190 = ssub.s32 %s30, %s49
      %s191 = ssub.s32 %s31, %s45
      %s192 = sor.u32 %s190, %s191
      %p193 = scmp.eq.s32.totalorder %s192, 0
      %s195 = sadd.s32 %s194, 1
      %s196 = scalar_select %p193, %s194, %s195
      %p199 = pneg %p193
      %p200 = scmp.eq.s32.totalorder %s23, 1
      %p201 = por %p199, %p200
      %p202 = scmp.ne.s32.totalorder %s194, %s197
      %p203 = scmp.eq.s32.totalorder %s23, 0
      %p204 = por %p202, %p203
      %p205 = scmp.ne.s32.totalorder %s194, %s197
      %p206 = scmp.eq.s32.totalorder %s28, 1
      %p207 = por %p205, %p206
      %p208 = scmp.ne.s32.totalorder %s197, %s198
      %p209 = scmp.eq.s32.totalorder %s28, 0
      %p210 = por %p208, %p209
      %p211 = scmp.ne.s32.totalorder %s197, %s198
      %p212 = scmp.eq.s32.totalorder %s29, 1
      %p213 = por %p211, %p212
      %p215 = scmp.ne.s32.totalorder %s198, %s214
      %p216 = scmp.eq.s32.totalorder %s29, 0
      %p217 = por %p215, %p216
      %p218 = scmp.le.s32.totalorder 1, %s23
      %p219 = scmp.lt.s32.totalorder %s23, 3
      %p220 = pnand %p218, %p219
      %p221 = pneg %p220
      // Predicated region
      $region9: #{tpu_custom_call.1} parent=5 // pred_check
        _
      $region10: #{tpu_custom_call.1} parent=5 // pred_check_branch
        %223 = sbr.rel (%p220) target = $region12
      $region11: #{tpu_custom_call.1} parent=5 // pred_region
        %s224 = ssub.s32 %s23, 1
        // Predicated region
        $region13: #{tpu_custom_call.1} parent=11 // pred_check
          %p225 = pneg %p119
        $region14: #{tpu_custom_call.1} parent=11 // pred_check_branch
          %227 = sbr.rel (%p225) target = $region16
        $region15: #{tpu_custom_call.1} parent=11 // pred_region
          %229 = vsyncadd [#allocation10], 0
          %s230 = sshll.u32 %s2, 4
          %s231 = int_to_ptr.hbm [resolvable:$true] %s230
          %s232 = sshll.u32 [#allocation11], 4
          %s233 = int_to_ptr.vmem [resolvable:$true] %s232
          %238 = dma.hbm_to_vmem [thread:$0]  %s231, 256, %s233, [#allocation10], 64, 64, 4
        $region16: #{tpu_custom_call.1} parent=11 // pred_fallthru
          _
        // Predicated region
        $region17: #{tpu_custom_call.1} parent=11 // pred_check
          %p239 = pneg %p140
        $region18: #{tpu_custom_call.1} parent=11 // pred_check_branch
          %241 = sbr.rel (%p239) target = $region20
        $region19: #{tpu_custom_call.1} parent=11 // pred_region
          %243 = vsyncadd [#allocation13], 0
          %s244 = sshll.u32 %s3, 4
          %s245 = int_to_ptr.hbm [resolvable:$true] %s244
          %s246 = sshll.u32 [#allocation12], 4
          %s247 = int_to_ptr.vmem [resolvable:$true] %s246
          %252 = dma.hbm_to_vmem [thread:$0]  %s245, 256, %s247, [#allocation13], 64, 64, 4
        $region20: #{tpu_custom_call.1} parent=11 // pred_fallthru
          _
        // Predicated region
        $region21: #{tpu_custom_call.1} parent=11 // pred_check
          %p253 = pneg %p161
        $region22: #{tpu_custom_call.1} parent=11 // pred_check_branch
          %255 = sbr.rel (%p253) target = $region24
        $region23: #{tpu_custom_call.1} parent=11 // pred_region
          %257 = vsyncadd [#allocation13], 0
          %s258 = sshll.u32 %s4, 4
          %s259 = int_to_ptr.hbm [resolvable:$true] %s258
          %s260 = sshll.u32 [#allocation14], 4
          %s261 = int_to_ptr.vmem [resolvable:$true] %s260
          %266 = dma.hbm_to_vmem [thread:$0]  %s259, 256, %s261, [#allocation13], 64, 64, 4
        $region24: #{tpu_custom_call.1} parent=11 // pred_fallthru
          _
        // Predicated region
        $region25: #{tpu_custom_call.1} parent=11 // pred_check
          %p267 = pneg %p182
        $region26: #{tpu_custom_call.1} parent=11 // pred_check_branch
          %269 = sbr.rel (%p267) target = $region28
        $region27: #{tpu_custom_call.1} parent=11 // pred_region
          %271 = vsyncadd [#allocation16], 0
          %s273 = sshll.u32 %s5, 4
          %s274 = int_to_ptr.hbm [resolvable:$true] %s273
          %s275 = sshll.u32 [#allocation15], 4
          %s276 = int_to_ptr.vmem [resolvable:$true] %s275
          %278 = dma.hbm_to_vmem [thread:$0]  %s274, 128, %s276, [#allocation16]
        $region28: #{tpu_custom_call.1} parent=11 // pred_fallthru
          _
      $region12: #{tpu_custom_call.1} parent=5 // pred_fallthru
        _
      %p279 = scmp.lt.s32.totalorder %s23, 2
      // Predicated region
      $region29: #{tpu_custom_call.1} parent=5 // pred_check
        %p280 = pneg %p279
      $region30: #{tpu_custom_call.1} parent=5 // pred_check_branch
        %282 = sbr.rel (%p280) target = $region32
      $region31: #{tpu_custom_call.1} parent=5 // pred_region
        // Predicated region
        $region33: #{tpu_custom_call.1} parent=31 // pred_check
          %p283 = pneg %p64
        $region34: #{tpu_custom_call.1} parent=31 // pred_check_branch
          %285 = sbr.rel (%p283) target = $region36
        $region35: #{tpu_custom_call.1} parent=31 // pred_region
          %s286 = sand.u32 %s54, 1
          %s287 = scalar_lea.sflag [#allocation7], %s286
          %s288 = sand.u32 %s54, 1
          %s289 = smul.addr %s288, 8
          %s290 = scalar_lea.vmem [#allocation6], %s289
          %s291 = smul.u32 2, %s31
          %293 = vsyncadd %s287, 0
          %s294 = smul.addr %s30, 2
          %s295 = sadd.s32 %s291, %s294
          %s296 = smul.addr %s295, 4
          %s297 = scalar_lea.hbm %s0, %s296
          %s298 = sshll.u32 %s297, 4
          %s299 = int_to_ptr.hbm [resolvable:$true] %s298
          %s300 = sshll.u32 %s290, 4
          %s301 = int_to_ptr.vmem [resolvable:$true] %s300
          %306 = dma.hbm_to_vmem [thread:$0]  %s299, 128, %s301, %s287, 64, 64, 4
        $region36: #{tpu_custom_call.1} parent=31 // pred_fallthru
          _
        // Predicated region
        $region37: #{tpu_custom_call.1} parent=31 // pred_check
          %p307 = pneg %p92
        $region38: #{tpu_custom_call.1} parent=31 // pred_check_branch
          %309 = sbr.rel (%p307) target = $region40
        $region39: #{tpu_custom_call.1} parent=31 // pred_region
          %s310 = sand.u32 %s23, 1
          %s311 = scalar_lea.sflag [#allocation10], %s310
          %s312 = sand.u32 %s82, 1
          %s313 = smul.addr %s312, 8
          %s314 = scalar_lea.vmem [#allocation9], %s313
          %s315 = smul.u32 2, %s32
          %317 = vsyncadd %s311, 0
          %s318 = smul.addr %s30, 2
          %s319 = sadd.s32 %s315, %s318
          %s320 = smul.addr %s319, 4
          %s321 = scalar_lea.hbm %s1, %s320
          %s322 = sshll.u32 %s321, 4
          %s323 = int_to_ptr.hbm [resolvable:$true] %s322
          %s324 = sshll.u32 %s314, 4
          %s325 = int_to_ptr.vmem [resolvable:$true] %s324
          %330 = dma.hbm_to_vmem [thread:$0]  %s323, 128, %s325, %s311, 64, 64, 4
        $region40: #{tpu_custom_call.1} parent=31 // pred_fallthru
          _
      $region32: #{tpu_custom_call.1} parent=5 // pred_fallthru
        _
      %p331 = scmp.le.s32.totalorder 1, %s23
      %p332 = scmp.lt.s32.totalorder %s23, 3
      %p333 = pnand %p331, %p332
      %p334 = pneg %p333
      // Predicated region
      $region41: #{tpu_custom_call.1} parent=5 // pred_check
        _
      $region42: #{tpu_custom_call.1} parent=5 // pred_check_branch
        %336 = sbr.rel (%p333) target = $region44
      $region43: #{tpu_custom_call.1} parent=5 // pred_region
        %s337 = ssub.s32 %s23, 1
        %s338 = sand.u32 %s57, 1
        %s339 = scalar_lea.sflag [#allocation7], %s338
        %s340 = sand.u32 %s57, 1
        %s341 = smul.addr %s340, 8
        %s342 = scalar_lea.vmem [#allocation6], %s341
        // Predicated region
        $region45: #{tpu_custom_call.1} parent=43 // pred_check
          %p343 = pneg %p70
        $region46: #{tpu_custom_call.1} parent=43 // pred_check_branch
          %345 = sbr.rel (%p343) target = $region48
        $region47: #{tpu_custom_call.1} parent=43 // pred_region
          %347 = dma.done %s339, 128
        $region48: #{tpu_custom_call.1} parent=43 // pred_fallthru
          _
        %s348 = sand.u32 %s28, 1
        %s349 = scalar_lea.sflag [#allocation10], %s348
        %s350 = sand.u32 %s85, 1
        %s351 = smul.addr %s350, 8
        %s352 = scalar_lea.vmem [#allocation9], %s351
        // Predicated region
        $region49: #{tpu_custom_call.1} parent=43 // pred_check
          %p353 = pneg %p98
        $region50: #{tpu_custom_call.1} parent=43 // pred_check_branch
          %355 = sbr.rel (%p353) target = $region52
        $region51: #{tpu_custom_call.1} parent=43 // pred_region
          %357 = dma.done %s349, 128
        $region52: #{tpu_custom_call.1} parent=43 // pred_fallthru
          _
        // Predicated region
        $region53: #{tpu_custom_call.1} parent=43 // pred_check
          %p358 = pneg %p119
        $region54: #{tpu_custom_call.1} parent=43 // pred_check_branch
          %360 = sbr.rel (%p358) target = $region56
        $region55: #{tpu_custom_call.1} parent=43 // pred_region
          %362 = dma.done [#allocation10], 256
        $region56: #{tpu_custom_call.1} parent=43 // pred_fallthru
          _
        // Predicated region
        $region57: #{tpu_custom_call.1} parent=43 // pred_check
          %p363 = pneg %p140
        $region58: #{tpu_custom_call.1} parent=43 // pred_check_branch
          %365 = sbr.rel (%p363) target = $region60
        $region59: #{tpu_custom_call.1} parent=43 // pred_region
          %367 = dma.done [#allocation13], 256
        $region60: #{tpu_custom_call.1} parent=43 // pred_fallthru
          _
        // Predicated region
        $region61: #{tpu_custom_call.1} parent=43 // pred_check
          %p368 = pneg %p161
        $region62: #{tpu_custom_call.1} parent=43 // pred_check_branch
          %370 = sbr.rel (%p368) target = $region64
        $region63: #{tpu_custom_call.1} parent=43 // pred_region
          %372 = dma.done [#allocation13], 256
        $region64: #{tpu_custom_call.1} parent=43 // pred_fallthru
          _
        // Predicated region
        $region65: #{tpu_custom_call.1} parent=43 // pred_check
          %p373 = pneg %p182
        $region66: #{tpu_custom_call.1} parent=43 // pred_check_branch
          %375 = sbr.rel (%p373) target = $region68
        $region67: #{tpu_custom_call.1} parent=43 // pred_region
          %377 = dma.done [#allocation16], 128
        $region68: #{tpu_custom_call.1} parent=43 // pred_fallthru
          _
        %s378 = sand.u32 %s57, 1
        %s379 = scalar_lea.sflag [#allocation7], %s378
        %s380 = sand.u32 %s57, 1
        %s381 = smul.addr %s380, 8
        %s382 = scalar_lea.vmem [#allocation6], %s381
        %p383 = pneg %p70
        %p384 = pneg %p67
        %s385 = sand.u32 %s28, 1
        %s386 = scalar_lea.sflag [#allocation10], %s385
        %s387 = sand.u32 %s85, 1
        %s388 = smul.addr %s387, 8
        %s389 = scalar_lea.vmem [#allocation9], %s388
        %p390 = pneg %p98
        %p391 = pneg %p95
        %p392 = pneg %p119
        %p393 = pneg %p116
        %p394 = pneg %p140
        %p395 = pneg %p137
        %p396 = pneg %p161
        %p397 = pneg %p158
        %p398 = pneg %p182
        %p399 = pneg %p179
        %p400 = pneg %p210
        %p401 = pneg %p207
        %s402 = sand.u32 %s197, 1
        %s403 = scalar_lea.sflag [#allocation8], %s402
        %s404 = sand.u32 %s197, 1
        %s405 = smul.addr %s404, 16
        %s406 = scalar_lea.vmem [#allocation17], %s405
        %s407 = smul.u32 2, %s34
        %s408 = smul.u32 2, %s35
        %s409 = smul.u32 2, %s34
        %p411 = scmp.eq.s32.totalorder %s35, 0
        // Predicated region
        $region69: #{tpu_custom_call.1} parent=43 // pred_check
          %p412 = pneg %p411
        $region70: #{tpu_custom_call.1} parent=43 // pred_check_branch
          %414 = sbr.rel (%p412) target = $region72
        $region71: #{tpu_custom_call.1} parent=43 // pred_region
          %v415 = vld [vmem:[%s342] sm:$0xf]
          %v416 = vld [vmem:[%s342 + $0x4] sm:$0xf]
          %v417 = vld [vmem:[#allocation11] sm:$0xf]
          %v418 = vld [vmem:[#allocation11 + $0x4] sm:$0xf]
          %v419 = vld [vmem:[#allocation11 + $0x8] sm:$0xf]
          %v420 = vld [vmem:[#allocation11 + $0xc] sm:$0xf]
          %v421 = vld [vmem:[#allocation15] sm:$0x1]
          %v422 = vperm.slane %v421, 0
          %v425 = vunpack.c.l.b16 %v415
          %v426 = vunpack.c.l.b16 %v416
          %v427 = vpack.c.b16 %v426, %v425
          %v432 = vunpack.c.l.b16 %v417
          %v433 = vunpack.c.l.b16 %v418
          %v434 = vunpack.c.l.b16 %v419
          %v435 = vunpack.c.l.b16 %v420
          %v436 = vpack.c.b16 %v433, %v432
          %v437 = vpack.c.b16 %v435, %v434
          %vm440 = vcmask 261120
          %v442 = vsel %vm440, %v427, 0
          %444 = vmatpush.bf16.msra.mxu0 0
          %445 = vmatpush.bf16.msra.mxu0 0
          %446 = vmatpush.bf16.msra.mxu0 0
          %447 = vmatpush.bf16.msra.mxu0 0
          %448 = vmatpush.bf16.msra.mxu0 0
          %449 = vmatpush.bf16.msra.mxu0 0
          %450 = vmatpush.bf16.msra.mxu0 %v437
          %451 = vmatpush.bf16.msra.mxu0 %v436
          %452 = vmatmul.bf16.gmra.mxu0 %v442
          %v453 = vpop.f32.mrf.mxu0
          %v454 = vadd.f32 %v422, %v453
          %v455 = vpop.f32.mrf.mxu0
          %v456 = vadd.f32 %v422, %v455
          %457 = vdwg.mxu0
          %460 = vrot.lane.b32.xlu0 %v454, 120
          %v461 = vpop.permute.xlu0 %460
          %462 = vrot.lane.b32.xlu0 %v456, 120
          %v463 = vpop.permute.xlu0 %462
          %466 = vrot.lane.b32.xlu0 %v454, 112
          %v467 = vpop.permute.xlu0 %466
          %468 = vrot.lane.b32.xlu0 %v456, 112
          %v469 = vpop.permute.xlu0 %468
          %472 = vrot.lane.b32.xlu0 %v454, 104
          %v473 = vpop.permute.xlu0 %472
          %474 = vrot.lane.b32.xlu0 %v456, 104
          %v475 = vpop.permute.xlu0 %474
          %v478 = vrot.slane %v467, 4
          %vm479 = vcmask 1047556
          %v480 = vsel %vm479, %v478, %v454
          %v481 = vrot.slane %v454, 4
          %v482 = vsel %vm479, %v467, %v481
          %v484 = vunpack.c.l.s4 1983009808
          %v485 = vunpack.c.0.s8 %v484
          %v486 = vperm.slane %v480, %v485
          %v488 = vunpack.c.l.s4 1983009808
          %v489 = vunpack.c.0.s8 %v488
          %v490 = vperm.slane %v482, %v489
          %v491 = vrot.slane %v473, 4
          %v492 = vsel %vm479, %v491, %v461
          %v493 = vrot.slane %v461, 4
          %v494 = vsel %vm479, %v473, %v493
          %v496 = vunpack.c.l.s4 1983009808
          %v497 = vunpack.c.0.s8 %v496
          %v498 = vperm.slane %v492, %v497
          %v500 = vunpack.c.l.s4 1983009808
          %v501 = vunpack.c.0.s8 %v500
          %v502 = vperm.slane %v494, %v501
          %v503 = vrot.slane %v498, 4
          %v504 = vsel %vm479, %v503, %v486
          %v505 = vrot.slane %v486, 4
          %v506 = vsel %vm479, %v498, %v505
          %v508 = vunpack.c.l.s4 1934713408
          %v509 = vunpack.c.0.s8 %v508
          %v510 = vperm.slane %v504, %v509
          %v512 = vunpack.c.l.s4 1934713408
          %v513 = vunpack.c.0.s8 %v512
          %v514 = vperm.slane %v506, %v513
          %v515 = vrot.slane %v502, 4
          %v516 = vsel %vm479, %v515, %v490
          %v517 = vrot.slane %v490, 4
          %v518 = vsel %vm479, %v502, %v517
          %v520 = vunpack.c.l.s4 1934713408
          %v521 = vunpack.c.0.s8 %v520
          %v522 = vperm.slane %v516, %v521
          %v524 = vunpack.c.l.s4 1934713408
          %v525 = vunpack.c.0.s8 %v524
          %v526 = vperm.slane %v518, %v525
          %v527 = vrot.slane %v510, 4
          %v528 = vsel %vm479, 0.0, %v527
          %v529 = vrot.slane %v514, 4
          %v530 = vsel %vm479, 0.0, %v529
          %v531 = vrot.slane %v522, 4
          %v532 = vsel %vm479, 0.0, %v531
          %v533 = vrot.slane %v526, 4
          %v534 = vsel %vm479, 0.0, %v533
          %v535 = vrot.slane %v469, 4
          %v536 = vsel %vm479, %v535, %v456
          %v537 = vrot.slane %v456, 4
          %v538 = vsel %vm479, %v469, %v537
          %v540 = vunpack.c.l.s4 1983009808
          %v541 = vunpack.c.0.s8 %v540
          %v542 = vperm.slane %v536, %v541
          %v544 = vunpack.c.l.s4 1983009808
          %v545 = vunpack.c.0.s8 %v544
          %v546 = vperm.slane %v538, %v545
          %v547 = vrot.slane %v475, 4
          %v548 = vsel %vm479, %v547, %v463
          %v549 = vrot.slane %v463, 4
          %v550 = vsel %vm479, %v475, %v549
          %v552 = vunpack.c.l.s4 1983009808
          %v553 = vunpack.c.0.s8 %v552
          %v554 = vperm.slane %v548, %v553
          %v556 = vunpack.c.l.s4 1983009808
          %v557 = vunpack.c.0.s8 %v556
          %v558 = vperm.slane %v550, %v557
          %v559 = vrot.slane %v554, 4
          %v560 = vsel %vm479, %v559, %v542
          %v561 = vrot.slane %v542, 4
          %v562 = vsel %vm479, %v554, %v561
          %v564 = vunpack.c.l.s4 1934713408
          %v565 = vunpack.c.0.s8 %v564
          %v566 = vperm.slane %v560, %v565
          %v568 = vunpack.c.l.s4 1934713408
          %v569 = vunpack.c.0.s8 %v568
          %v570 = vperm.slane %v562, %v569
          %v571 = vrot.slane %v558, 4
          %v572 = vsel %vm479, %v571, %v546
          %v573 = vrot.slane %v546, 4
          %v574 = vsel %vm479, %v558, %v573
          %v576 = vunpack.c.l.s4 1934713408
          %v577 = vunpack.c.0.s8 %v576
          %v578 = vperm.slane %v572, %v577
          %v580 = vunpack.c.l.s4 1934713408
          %v581 = vunpack.c.0.s8 %v580
          %v582 = vperm.slane %v574, %v581
          %v583 = vrot.slane %v566, 4
          %v584 = vsel %vm479, 0.0, %v583
          %v585 = vrot.slane %v570, 4
          %v586 = vsel %vm479, 0.0, %v585
          %v587 = vrot.slane %v578, 4
          %v588 = vsel %vm479, 0.0, %v587
          %v589 = vrot.slane %v582, 4
          %v590 = vsel %vm479, 0.0, %v589
          %v591 = vsel %vm479, %v529, %v510
          %v593 = vunpack.c.l.s4 1983009808
          %v594 = vunpack.c.0.s8 %v593
          %v595 = vperm.slane %v591, %v594
          %v596 = vrot.slane %v530, 4
          %v597 = vsel %vm479, %v596, %v528
          %v599 = vunpack.c.l.s4 1983009808
          %v600 = vunpack.c.0.s8 %v599
          %v601 = vperm.slane %v597, %v600
          %v602 = vsel %vm479, %v533, %v522
          %v604 = vunpack.c.l.s4 1983009808
          %v605 = vunpack.c.0.s8 %v604
          %v606 = vperm.slane %v602, %v605
          %v607 = vrot.slane %v534, 4
          %v608 = vsel %vm479, %v607, %v532
          %v610 = vunpack.c.l.s4 1983009808
          %v611 = vunpack.c.0.s8 %v610
          %v612 = vperm.slane %v608, %v611
          %v613 = vrot.slane %v601, 4
          %v614 = vsel %vm479, %v613, %v595
          %v615 = vrot.slane %v595, 4
          %v616 = vsel %vm479, %v601, %v615
          %v618 = vunpack.c.l.s4 1934713408
          %v619 = vunpack.c.0.s8 %v618
          %v620 = vperm.slane %v614, %v619
          %v622 = vunpack.c.l.s4 1934713408
          %v623 = vunpack.c.0.s8 %v622
          %v624 = vperm.slane %v616, %v623
          %v625 = vrot.slane %v612, 4
          %v626 = vsel %vm479, %v625, %v606
          %v627 = vrot.slane %v606, 4
          %v628 = vsel %vm479, %v612, %v627
          %v630 = vunpack.c.l.s4 1934713408
          %v631 = vunpack.c.0.s8 %v630
          %v632 = vperm.slane %v626, %v631
          %v634 = vunpack.c.l.s4 1934713408
          %v635 = vunpack.c.0.s8 %v634
          %v636 = vperm.slane %v628, %v635
          %v637 = vrot.slane %v632, 4
          %v638 = vsel %vm479, %v637, %v620
          %v639 = vrot.slane %v620, 4
          %v640 = vsel %vm479, %v632, %v639
          %v641 = vrot.slane %v636, 4
          %v642 = vsel %vm479, %v641, %v624
          %v643 = vrot.slane %v624, 4
          %v644 = vsel %vm479, %v636, %v643
          %v645 = vsel %vm479, %v585, %v566
          %v647 = vunpack.c.l.s4 1983009808
          %v648 = vunpack.c.0.s8 %v647
          %v649 = vperm.slane %v645, %v648
          %v650 = vrot.slane %v586, 4
          %v651 = vsel %vm479, %v650, %v584
          %v653 = vunpack.c.l.s4 1983009808
          %v654 = vunpack.c.0.s8 %v653
          %v655 = vperm.slane %v651, %v654
          %v656 = vsel %vm479, %v589, %v578
          %v658 = vunpack.c.l.s4 1983009808
          %v659 = vunpack.c.0.s8 %v658
          %v660 = vperm.slane %v656, %v659
          %v661 = vrot.slane %v590, 4
          %v662 = vsel %vm479, %v661, %v588
          %v664 = vunpack.c.l.s4 1983009808
          %v665 = vunpack.c.0.s8 %v664
          %v666 = vperm.slane %v662, %v665
          %v667 = vrot.slane %v655, 4
          %v668 = vsel %vm479, %v667, %v649
          %v669 = vrot.slane %v649, 4
          %v670 = vsel %vm479, %v655, %v669
          %v672 = vunpack.c.l.s4 1934713408
          %v673 = vunpack.c.0.s8 %v672
          %v674 = vperm.slane %v668, %v673
          %v676 = vunpack.c.l.s4 1934713408
          %v677 = vunpack.c.0.s8 %v676
          %v678 = vperm.slane %v670, %v677
          %v679 = vrot.slane %v666, 4
          %v680 = vsel %vm479, %v679, %v660
          %v681 = vrot.slane %v660, 4
          %v682 = vsel %vm479, %v666, %v681
          %v684 = vunpack.c.l.s4 1934713408
          %v685 = vunpack.c.0.s8 %v684
          %v686 = vperm.slane %v680, %v685
          %v688 = vunpack.c.l.s4 1934713408
          %v689 = vunpack.c.0.s8 %v688
          %v690 = vperm.slane %v682, %v689
          %v691 = vrot.slane %v686, 4
          %v692 = vsel %vm479, %v691, %v674
          %v693 = vrot.slane %v674, 4
          %v694 = vsel %vm479, %v686, %v693
          %v695 = vrot.slane %v690, 4
          %v696 = vsel %vm479, %v695, %v678
          %v697 = vrot.slane %v678, 4
          %v698 = vsel %vm479, %v690, %v697
          %v699 = vld [vmem:[#allocation15 + $0x3] sm:$0x1]
          %v700 = vld [vmem:[#allocation15 + $0x4] sm:$0x1]
          %vm701 = vcmask 64512
          %v702 = vsel %vm701, %v638, 0.0
          %703 = vadd.xlane.f32.xlu0 %v702
          %v704 = vpop.xlane.xlu0 %703
          %v705 = vsel %vm701, %v692, 0.0
          %706 = vadd.xlane.f32.xlu0 %v705
          %v707 = vpop.xlane.xlu0 %706
          %v708 = vsel %vm701, %v640, 0.0
          %709 = vadd.xlane.f32.xlu0 %v708
          %v710 = vpop.xlane.xlu0 %709
          %v711 = vsel %vm701, %v694, 0.0
          %712 = vadd.xlane.f32.xlu0 %v711
          %v713 = vpop.xlane.xlu0 %712
          %v714 = vsel %vm701, %v642, 0.0
          %715 = vadd.xlane.f32.xlu0 %v714
          %v716 = vpop.xlane.xlu0 %715
          %v717 = vsel %vm701, %v696, 0.0
          %718 = vadd.xlane.f32.xlu0 %v717
          %v719 = vpop.xlane.xlu0 %718
          %v720 = vsel %vm701, %v644, 0.0
          %721 = vadd.xlane.f32.xlu0 %v720
          %v722 = vpop.xlane.xlu0 %721
          %v723 = vsel %vm701, %v698, 0.0
          %724 = vadd.xlane.f32.xlu0 %v723
          %v725 = vpop.xlane.xlu0 %724
          %v726 = vrcp.pop 8.0
          %v727 = vmul.f32 8.0, %v726
          %v728 = vsub.f32 1.0, %v727
          %v729 = vmul.f32 %v726, %v728
          %v730 = vadd.f32 %v726, %v729
          %vm731 = vweird.f32 %v726
          %v732 = vsel %vm731, %v726, %v730
          %v733 = vmul.f32 %v704, %v732
          %v734 = vmul.f32 %v707, %v732
          %v735 = vmul.f32 %v710, %v732
          %v736 = vmul.f32 %v713, %v732
          %v737 = vmul.f32 %v716, %v732
          %v738 = vmul.f32 %v719, %v732
          %v739 = vmul.f32 %v722, %v732
          %v740 = vmul.f32 %v725, %v732
          %v741 = vmul.f32 %v638, %v638
          %v742 = vmul.f32 %v692, %v692
          %v743 = vmul.f32 %v640, %v640
          %v744 = vmul.f32 %v694, %v694
          %v745 = vmul.f32 %v642, %v642
          %v746 = vmul.f32 %v696, %v696
          %v747 = vmul.f32 %v644, %v644
          %v748 = vmul.f32 %v698, %v698
          %v749 = vsel %vm701, %v741, 0.0
          %750 = vadd.xlane.f32.xlu0 %v749
          %v751 = vpop.xlane.xlu0 %750
          %v752 = vsel %vm701, %v742, 0.0
          %753 = vadd.xlane.f32.xlu0 %v752
          %v754 = vpop.xlane.xlu0 %753
          %v755 = vsel %vm701, %v743, 0.0
          %756 = vadd.xlane.f32.xlu0 %v755
          %v757 = vpop.xlane.xlu0 %756
          %v758 = vsel %vm701, %v744, 0.0
          %759 = vadd.xlane.f32.xlu0 %v758
          %v760 = vpop.xlane.xlu0 %759
          %v761 = vsel %vm701, %v745, 0.0
          %762 = vadd.xlane.f32.xlu0 %v761
          %v763 = vpop.xlane.xlu0 %762
          %v764 = vsel %vm701, %v746, 0.0
          %765 = vadd.xlane.f32.xlu0 %v764
          %v766 = vpop.xlane.xlu0 %765
          %v767 = vsel %vm701, %v747, 0.0
          %768 = vadd.xlane.f32.xlu0 %v767
          %v769 = vpop.xlane.xlu0 %768
          %v770 = vsel %vm701, %v748, 0.0
          %771 = vadd.xlane.f32.xlu0 %v770
          %v772 = vpop.xlane.xlu0 %771
          %v773 = vmul.f32 %v751, %v732
          %v774 = vmul.f32 %v754, %v732
          %v775 = vmul.f32 %v757, %v732
          %v776 = vmul.f32 %v760, %v732
          %v777 = vmul.f32 %v763, %v732
          %v778 = vmul.f32 %v766, %v732
          %v779 = vmul.f32 %v769, %v732
          %v780 = vmul.f32 %v772, %v732
          %v781 = vmul.f32 %v733, %v733
          %v782 = vmul.f32 %v734, %v734
          %v783 = vmul.f32 %v735, %v735
          %v784 = vmul.f32 %v736, %v736
          %v785 = vmul.f32 %v737, %v737
          %v786 = vmul.f32 %v738, %v738
          %v787 = vmul.f32 %v739, %v739
          %v788 = vmul.f32 %v740, %v740
          %v789 = vsub.f32 %v773, %v781
          %v790 = vsub.f32 %v774, %v782
          %v791 = vsub.f32 %v775, %v783
          %v792 = vsub.f32 %v776, %v784
          %v793 = vsub.f32 %v777, %v785
          %v794 = vsub.f32 %v778, %v786
          %v795 = vsub.f32 %v779, %v787
          %v796 = vsub.f32 %v780, %v788
          %v797 = vmax.f32 %v789, 0.0
          %v798 = vmax.f32 %v790, 0.0
          %v799 = vmax.f32 %v791, 0.0
          %v800 = vmax.f32 %v792, 0.0
          %v801 = vmax.f32 %v793, 0.0
          %v802 = vmax.f32 %v794, 0.0
          %v803 = vmax.f32 %v795, 0.0
          %v804 = vmax.f32 %v796, 0.0
          %v805 = vsub.f32 %v638, %v733
          %v806 = vsub.f32 %v692, %v734
          %v807 = vsub.f32 %v640, %v735
          %v808 = vsub.f32 %v694, %v736
          %v809 = vsub.f32 %v642, %v737
          %v810 = vsub.f32 %v696, %v738
          %v811 = vsub.f32 %v644, %v739
          %v812 = vsub.f32 %v698, %v740
          %v813 = vadd.f32 %v797, 1e-05
          %v814 = vadd.f32 %v798, 1e-05
          %v815 = vadd.f32 %v799, 1e-05
          %v816 = vadd.f32 %v800, 1e-05
          %v817 = vadd.f32 %v801, 1e-05
          %v818 = vadd.f32 %v802, 1e-05
          %v819 = vadd.f32 %v803, 1e-05
          %v820 = vadd.f32 %v804, 1e-05
          %v821 = vrsqrt.pop %v813
          %v822 = vmul.f32 %v821, %v813
          %v823 = vmul.f32 %v822, %v821
          %v824 = vmul.f32 0.5, %v823
          %v825 = vsub.f32 1.5, %v824
          %v826 = vmul.f32 %v821, %v825
          %vm827 = vweird.f32 %v813
          %vm828 = vweird.f32 %v821
          %vm829 = vmor %vm827, %vm828
          %v830 = vsel %vm829, %v821, %v826
          %v831 = vrsqrt.pop %v814
          %v832 = vmul.f32 %v831, %v814
          %v833 = vmul.f32 %v832, %v831
          %v834 = vmul.f32 0.5, %v833
          %v835 = vsub.f32 1.5, %v834
          %v836 = vmul.f32 %v831, %v835
          %vm837 = vweird.f32 %v814
          %vm838 = vweird.f32 %v831
          %vm839 = vmor %vm837, %vm838
          %v840 = vsel %vm839, %v831, %v836
          %v841 = vrsqrt.pop %v815
          %v842 = vmul.f32 %v841, %v815
          %v843 = vmul.f32 %v842, %v841
          %v844 = vmul.f32 0.5, %v843
          %v845 = vsub.f32 1.5, %v844
          %v846 = vmul.f32 %v841, %v845
          %vm847 = vweird.f32 %v815
          %vm848 = vweird.f32 %v841
          %vm849 = vmor %vm847, %vm848
          %v850 = vsel %vm849, %v841, %v846
          %v851 = vrsqrt.pop %v816
          %v852 = vmul.f32 %v851, %v816
          %v853 = vmul.f32 %v852, %v851
          %v854 = vmul.f32 0.5, %v853
          %v855 = vsub.f32 1.5, %v854
          %v856 = vmul.f32 %v851, %v855
          %vm857 = vweird.f32 %v816
          %vm858 = vweird.f32 %v851
          %vm859 = vmor %vm857, %vm858
          %v860 = vsel %vm859, %v851, %v856
          %v861 = vrsqrt.pop %v817
          %v862 = vmul.f32 %v861, %v817
          %v863 = vmul.f32 %v862, %v861
          %v864 = vmul.f32 0.5, %v863
          %v865 = vsub.f32 1.5, %v864
          %v866 = vmul.f32 %v861, %v865
          %vm867 = vweird.f32 %v817
          %vm868 = vweird.f32 %v861
          %vm869 = vmor %vm867, %vm868
          %v870 = vsel %vm869, %v861, %v866
          %v871 = vrsqrt.pop %v818
          %v872 = vmul.f32 %v871, %v818
          %v873 = vmul.f32 %v872, %v871
          %v874 = vmul.f32 0.5, %v873
          %v875 = vsub.f32 1.5, %v874
          %v876 = vmul.f32 %v871, %v875
          %vm877 = vweird.f32 %v818
          %vm878 = vweird.f32 %v871
          %vm879 = vmor %vm877, %vm878
          %v880 = vsel %vm879, %v871, %v876
          %v881 = vrsqrt.pop %v819
          %v882 = vmul.f32 %v881, %v819
          %v883 = vmul.f32 %v882, %v881
          %v884 = vmul.f32 0.5, %v883
          %v885 = vsub.f32 1.5, %v884
          %v886 = vmul.f32 %v881, %v885
          %vm887 = vweird.f32 %v819
          %vm888 = vweird.f32 %v881
          %vm889 = vmor %vm887, %vm888
          %v890 = vsel %vm889, %v881, %v886
          %v891 = vrsqrt.pop %v820
          %v892 = vmul.f32 %v891, %v820
          %v893 = vmul.f32 %v892, %v891
          %v894 = vmul.f32 0.5, %v893
          %v895 = vsub.f32 1.5, %v894
          %v896 = vmul.f32 %v891, %v895
          %vm897 = vweird.f32 %v820
          %vm898 = vweird.f32 %v891
          %vm899 = vmor %vm897, %vm898
          %v900 = vsel %vm899, %v891, %v896
          %v901 = vmul.f32 %v805, %v830
          %v902 = vmul.f32 %v806, %v840
          %v903 = vmul.f32 %v807, %v850
          %v904 = vmul.f32 %v808, %v860
          %v905 = vmul.f32 %v809, %v870
          %v906 = vmul.f32 %v810, %v880
          %v907 = vmul.f32 %v811, %v890
          %v908 = vmul.f32 %v812, %v900
          %v909 = vperm.slane %v699, 0
          %v910 = vmul.f32 %v901, %v909
          %v911 = vmul.f32 %v902, %v909
          %v912 = vmul.f32 %v903, %v909
          %v913 = vmul.f32 %v904, %v909
          %v914 = vmul.f32 %v905, %v909
          %v915 = vmul.f32 %v906, %v909
          %v916 = vmul.f32 %v907, %v909
          %v917 = vmul.f32 %v908, %v909
          %v918 = vperm.slane %v700, 0
          %v919 = vadd.f32 %v910, %v918
          %v920 = vadd.f32 %v911, %v918
          %v921 = vadd.f32 %v912, %v918
          %v922 = vadd.f32 %v913, %v918
          %v923 = vadd.f32 %v914, %v918
          %v924 = vadd.f32 %v915, %v918
          %v925 = vadd.f32 %v916, %v918
          %v926 = vadd.f32 %v917, %v918
          %927 = vst.msk [vmem:[#allocation2] sm:$0xff] %vm701, %v919
          %928 = vst.msk [vmem:[#allocation2 + $0x8] sm:$0xff] %vm701, %v920
          %929 = vst.msk [vmem:[#allocation2 + $0x10] sm:$0xff] %vm701, %v921
          %930 = vst.msk [vmem:[#allocation2 + $0x18] sm:$0xff] %vm701, %v922
          %931 = vst.msk [vmem:[#allocation2 + $0x20] sm:$0xff] %vm701, %v923
          %932 = vst.msk [vmem:[#allocation2 + $0x28] sm:$0xff] %vm701, %v924
          %933 = vst.msk [vmem:[#allocation2 + $0x30] sm:$0xff] %vm701, %v925
          %934 = vst.msk [vmem:[#allocation2 + $0x38] sm:$0xff] %vm701, %v926
          %vm935 = vcmask 7168
          %936 = vst.msk [vmem:[#allocation3] sm:$0xff] %vm935, -inf
          %937 = vst.msk [vmem:[#allocation3 + $0x8] sm:$0xff] %vm935, -inf
          %938 = vst.msk [vmem:[#allocation3 + $0x10] sm:$0xff] %vm935, -inf
          %939 = vst.msk [vmem:[#allocation3 + $0x18] sm:$0xff] %vm935, -inf
          %940 = vst.msk [vmem:[#allocation3 + $0x20] sm:$0xff] %vm935, -inf
          %941 = vst.msk [vmem:[#allocation3 + $0x28] sm:$0xff] %vm935, -inf
          %942 = vst.msk [vmem:[#allocation3 + $0x30] sm:$0xff] %vm935, -inf
          %943 = vst.msk [vmem:[#allocation3 + $0x38] sm:$0xff] %vm935, -inf
          %944 = vst.msk [vmem:[#allocation4] sm:$0xff] %vm935, 0.0
          %945 = vst.msk [vmem:[#allocation4 + $0x8] sm:$0xff] %vm935, 0.0
          %946 = vst.msk [vmem:[#allocation4 + $0x10] sm:$0xff] %vm935, 0.0
          %947 = vst.msk [vmem:[#allocation4 + $0x18] sm:$0xff] %vm935, 0.0
          %948 = vst.msk [vmem:[#allocation4 + $0x20] sm:$0xff] %vm935, 0.0
          %949 = vst.msk [vmem:[#allocation4 + $0x28] sm:$0xff] %vm935, 0.0
          %950 = vst.msk [vmem:[#allocation4 + $0x30] sm:$0xff] %vm935, 0.0
          %951 = vst.msk [vmem:[#allocation4 + $0x38] sm:$0xff] %vm935, 0.0
          %952 = vst.msk [vmem:[#allocation5] sm:$0xff] %vm701, 0.0
          %953 = vst.msk [vmem:[#allocation5 + $0x8] sm:$0xff] %vm701, 0.0
          %954 = vst.msk [vmem:[#allocation5 + $0x10] sm:$0xff] %vm701, 0.0
          %955 = vst.msk [vmem:[#allocation5 + $0x18] sm:$0xff] %vm701, 0.0
          %956 = vst.msk [vmem:[#allocation5 + $0x20] sm:$0xff] %vm701, 0.0
          %957 = vst.msk [vmem:[#allocation5 + $0x28] sm:$0xff] %vm701, 0.0
          %958 = vst.msk [vmem:[#allocation5 + $0x30] sm:$0xff] %vm701, 0.0
          %959 = vst.msk [vmem:[#allocation5 + $0x38] sm:$0xff] %vm701, 0.0
        $region72: #{tpu_custom_call.1} parent=43 // pred_fallthru
          _
        %v960 = vld [vmem:[%s352] sm:$0xf]
        %v961 = vld [vmem:[%s352 + $0x4] sm:$0xf]
        %v962 = vld [vmem:[#allocation12] sm:$0xf]
        %v963 = vld [vmem:[#allocation12 + $0x4] sm:$0xf]
        %v964 = vld [vmem:[#allocation12 + $0x8] sm:$0xf]
        %v965 = vld [vmem:[#allocation12 + $0xc] sm:$0xf]
        %v966 = vld [vmem:[#allocation15 + $0x1] sm:$0x1]
        %v967 = vperm.slane %v966, 0
        %v970 = vunpack.c.l.b16 %v960
        %v971 = vunpack.c.l.b16 %v961
        %v972 = vpack.c.b16 %v971, %v970
        %v977 = vunpack.c.l.b16 %v962
        %v978 = vunpack.c.l.b16 %v963
        %v979 = vunpack.c.l.b16 %v964
        %v980 = vunpack.c.l.b16 %v965
        %v981 = vpack.c.b16 %v978, %v977
        %v982 = vpack.c.b16 %v980, %v979
        %vm985 = vcmask 261120
        %v987 = vsel %vm985, %v972, 0
        %989 = vmatpush.bf16.msra.mxu0 0
        %990 = vmatpush.bf16.msra.mxu0 0
        %991 = vmatpush.bf16.msra.mxu0 0
        %992 = vmatpush.bf16.msra.mxu0 0
        %993 = vmatpush.bf16.msra.mxu0 0
        %994 = vmatpush.bf16.msra.mxu0 0
        %995 = vmatpush.bf16.msra.mxu0 %v982
        %996 = vmatpush.bf16.msra.mxu0 %v981
        %997 = vmatmul.bf16.gmra.mxu0 %v987
        %v998 = vpop.f32.mrf.mxu0
        %v999 = vadd.f32 %v967, %v998
        %v1000 = vpop.f32.mrf.mxu0
        %v1001 = vadd.f32 %v967, %v1000
        %1002 = vdwg.mxu0
        %1005 = vrot.lane.b32.xlu0 %v999, 120
        %v1006 = vpop.permute.xlu0 %1005
        %1007 = vrot.lane.b32.xlu0 %v1001, 120
        %v1008 = vpop.permute.xlu0 %1007
        %1011 = vrot.lane.b32.xlu0 %v999, 112
        %v1012 = vpop.permute.xlu0 %1011
        %1013 = vrot.lane.b32.xlu0 %v1001, 112
        %v1014 = vpop.permute.xlu0 %1013
        %1017 = vrot.lane.b32.xlu0 %v999, 104
        %v1018 = vpop.permute.xlu0 %1017
        %1019 = vrot.lane.b32.xlu0 %v1001, 104
        %v1020 = vpop.permute.xlu0 %1019
        %v1023 = vrot.slane %v1012, 4
        %vm1024 = vcmask 1047556
        %v1025 = vsel %vm1024, %v1023, %v999
        %v1026 = vrot.slane %v999, 4
        %v1027 = vsel %vm1024, %v1012, %v1026
        %v1029 = vunpack.c.l.s4 1983009808
        %v1030 = vunpack.c.0.s8 %v1029
        %v1031 = vperm.slane %v1025, %v1030
        %v1033 = vunpack.c.l.s4 1983009808
        %v1034 = vunpack.c.0.s8 %v1033
        %v1035 = vperm.slane %v1027, %v1034
        %v1036 = vrot.slane %v1018, 4
        %v1037 = vsel %vm1024, %v1036, %v1006
        %v1038 = vrot.slane %v1006, 4
        %v1039 = vsel %vm1024, %v1018, %v1038
        %v1041 = vunpack.c.l.s4 1983009808
        %v1042 = vunpack.c.0.s8 %v1041
        %v1043 = vperm.slane %v1037, %v1042
        %v1045 = vunpack.c.l.s4 1983009808
        %v1046 = vunpack.c.0.s8 %v1045
        %v1047 = vperm.slane %v1039, %v1046
        %v1048 = vrot.slane %v1043, 4
        %v1049 = vsel %vm1024, %v1048, %v1031
        %v1050 = vrot.slane %v1031, 4
        %v1051 = vsel %vm1024, %v1043, %v1050
        %v1053 = vunpack.c.l.s4 1934713408
        %v1054 = vunpack.c.0.s8 %v1053
        %v1055 = vperm.slane %v1049, %v1054
        %v1057 = vunpack.c.l.s4 1934713408
        %v1058 = vunpack.c.0.s8 %v1057
        %v1059 = vperm.slane %v1051, %v1058
        %v1060 = vrot.slane %v1047, 4
        %v1061 = vsel %vm1024, %v1060, %v1035
        %v1062 = vrot.slane %v1035, 4
        %v1063 = vsel %vm1024, %v1047, %v1062
        %v1065 = vunpack.c.l.s4 1934713408
        %v1066 = vunpack.c.0.s8 %v1065
        %v1067 = vperm.slane %v1061, %v1066
        %v1069 = vunpack.c.l.s4 1934713408
        %v1070 = vunpack.c.0.s8 %v1069
        %v1071 = vperm.slane %v1063, %v1070
        %v1072 = vrot.slane %v1055, 4
        %v1073 = vsel %vm1024, 0.0, %v1072
        %v1074 = vrot.slane %v1059, 4
        %v1075 = vsel %vm1024, 0.0, %v1074
        %v1076 = vrot.slane %v1067, 4
        %v1077 = vsel %vm1024, 0.0, %v1076
        %v1078 = vrot.slane %v1071, 4
        %v1079 = vsel %vm1024, 0.0, %v1078
        %v1080 = vrot.slane %v1014, 4
        %v1081 = vsel %vm1024, %v1080, %v1001
        %v1082 = vrot.slane %v1001, 4
        %v1083 = vsel %vm1024, %v1014, %v1082
        %v1085 = vunpack.c.l.s4 1983009808
        %v1086 = vunpack.c.0.s8 %v1085
        %v1087 = vperm.slane %v1081, %v1086
        %v1089 = vunpack.c.l.s4 1983009808
        %v1090 = vunpack.c.0.s8 %v1089
        %v1091 = vperm.slane %v1083, %v1090
        %v1092 = vrot.slane %v1020, 4
        %v1093 = vsel %vm1024, %v1092, %v1008
        %v1094 = vrot.slane %v1008, 4
        %v1095 = vsel %vm1024, %v1020, %v1094
        %v1097 = vunpack.c.l.s4 1983009808
        %v1098 = vunpack.c.0.s8 %v1097
        %v1099 = vperm.slane %v1093, %v1098
        %v1101 = vunpack.c.l.s4 1983009808
        %v1102 = vunpack.c.0.s8 %v1101
        %v1103 = vperm.slane %v1095, %v1102
        %v1104 = vrot.slane %v1099, 4
        %v1105 = vsel %vm1024, %v1104, %v1087
        %v1106 = vrot.slane %v1087, 4
        %v1107 = vsel %vm1024, %v1099, %v1106
        %v1109 = vunpack.c.l.s4 1934713408
        %v1110 = vunpack.c.0.s8 %v1109
        %v1111 = vperm.slane %v1105, %v1110
        %v1113 = vunpack.c.l.s4 1934713408
        %v1114 = vunpack.c.0.s8 %v1113
        %v1115 = vperm.slane %v1107, %v1114
        %v1116 = vrot.slane %v1103, 4
        %v1117 = vsel %vm1024, %v1116, %v1091
        %v1118 = vrot.slane %v1091, 4
        %v1119 = vsel %vm1024, %v1103, %v1118
        %v1121 = vunpack.c.l.s4 1934713408
        %v1122 = vunpack.c.0.s8 %v1121
        %v1123 = vperm.slane %v1117, %v1122
        %v1125 = vunpack.c.l.s4 1934713408
        %v1126 = vunpack.c.0.s8 %v1125
        %v1127 = vperm.slane %v1119, %v1126
        %v1128 = vrot.slane %v1111, 4
        %v1129 = vsel %vm1024, 0.0, %v1128
        %v1130 = vrot.slane %v1115, 4
        %v1131 = vsel %vm1024, 0.0, %v1130
        %v1132 = vrot.slane %v1123, 4
        %v1133 = vsel %vm1024, 0.0, %v1132
        %v1134 = vrot.slane %v1127, 4
        %v1135 = vsel %vm1024, 0.0, %v1134
        %v1136 = vsel %vm1024, %v1074, %v1055
        %v1138 = vunpack.c.l.s4 1983009808
        %v1139 = vunpack.c.0.s8 %v1138
        %v1140 = vperm.slane %v1136, %v1139
        %v1141 = vrot.slane %v1075, 4
        %v1142 = vsel %vm1024, %v1141, %v1073
        %v1144 = vunpack.c.l.s4 1983009808
        %v1145 = vunpack.c.0.s8 %v1144
        %v1146 = vperm.slane %v1142, %v1145
        %v1147 = vsel %vm1024, %v1078, %v1067
        %v1149 = vunpack.c.l.s4 1983009808
        %v1150 = vunpack.c.0.s8 %v1149
        %v1151 = vperm.slane %v1147, %v1150
        %v1152 = vrot.slane %v1079, 4
        %v1153 = vsel %vm1024, %v1152, %v1077
        %v1155 = vunpack.c.l.s4 1983009808
        %v1156 = vunpack.c.0.s8 %v1155
        %v1157 = vperm.slane %v1153, %v1156
        %v1158 = vrot.slane %v1146, 4
        %v1159 = vsel %vm1024, %v1158, %v1140
        %v1160 = vrot.slane %v1140, 4
        %v1161 = vsel %vm1024, %v1146, %v1160
        %v1163 = vunpack.c.l.s4 1934713408
        %v1164 = vunpack.c.0.s8 %v1163
        %v1165 = vperm.slane %v1159, %v1164
        %v1167 = vunpack.c.l.s4 1934713408
        %v1168 = vunpack.c.0.s8 %v1167
        %v1169 = vperm.slane %v1161, %v1168
        %v1170 = vrot.slane %v1157, 4
        %v1171 = vsel %vm1024, %v1170, %v1151
        %v1172 = vrot.slane %v1151, 4
        %v1173 = vsel %vm1024, %v1157, %v1172
        %v1175 = vunpack.c.l.s4 1934713408
        %v1176 = vunpack.c.0.s8 %v1175
        %v1177 = vperm.slane %v1171, %v1176
        %v1179 = vunpack.c.l.s4 1934713408
        %v1180 = vunpack.c.0.s8 %v1179
        %v1181 = vperm.slane %v1173, %v1180
        %v1182 = vrot.slane %v1177, 4
        %v1183 = vsel %vm1024, %v1182, %v1165
        %v1184 = vrot.slane %v1165, 4
        %v1185 = vsel %vm1024, %v1177, %v1184
        %v1186 = vrot.slane %v1181, 4
        %v1187 = vsel %vm1024, %v1186, %v1169
        %v1188 = vrot.slane %v1169, 4
        %v1189 = vsel %vm1024, %v1181, %v1188
        %v1190 = vsel %vm1024, %v1130, %v1111
        %v1192 = vunpack.c.l.s4 1983009808
        %v1193 = vunpack.c.0.s8 %v1192
        %v1194 = vperm.slane %v1190, %v1193
        %v1195 = vrot.slane %v1131, 4
        %v1196 = vsel %vm1024, %v1195, %v1129
        %v1198 = vunpack.c.l.s4 1983009808
        %v1199 = vunpack.c.0.s8 %v1198
        %v1200 = vperm.slane %v1196, %v1199
        %v1201 = vsel %vm1024, %v1134, %v1123
        %v1203 = vunpack.c.l.s4 1983009808
        %v1204 = vunpack.c.0.s8 %v1203
        %v1205 = vperm.slane %v1201, %v1204
        %v1206 = vrot.slane %v1135, 4
        %v1207 = vsel %vm1024, %v1206, %v1133
        %v1209 = vunpack.c.l.s4 1983009808
        %v1210 = vunpack.c.0.s8 %v1209
        %v1211 = vperm.slane %v1207, %v1210
        %v1212 = vrot.slane %v1200, 4
        %v1213 = vsel %vm1024, %v1212, %v1194
        %v1214 = vrot.slane %v1194, 4
        %v1215 = vsel %vm1024, %v1200, %v1214
        %v1217 = vunpack.c.l.s4 1934713408
        %v1218 = vunpack.c.0.s8 %v1217
        %v1219 = vperm.slane %v1213, %v1218
        %v1221 = vunpack.c.l.s4 1934713408
        %v1222 = vunpack.c.0.s8 %v1221
        %v1223 = vperm.slane %v1215, %v1222
        %v1224 = vrot.slane %v1211, 4
        %v1225 = vsel %vm1024, %v1224, %v1205
        %v1226 = vrot.slane %v1205, 4
        %v1227 = vsel %vm1024, %v1211, %v1226
        %v1229 = vunpack.c.l.s4 1934713408
        %v1230 = vunpack.c.0.s8 %v1229
        %v1231 = vperm.slane %v1225, %v1230
        %v1233 = vunpack.c.l.s4 1934713408
        %v1234 = vunpack.c.0.s8 %v1233
        %v1235 = vperm.slane %v1227, %v1234
        %v1236 = vrot.slane %v1231, 4
        %v1237 = vsel %vm1024, %v1236, %v1219
        %v1238 = vrot.slane %v1219, 4
        %v1239 = vsel %vm1024, %v1231, %v1238
        %v1240 = vrot.slane %v1235, 4
        %v1241 = vsel %vm1024, %v1240, %v1223
        %v1242 = vrot.slane %v1223, 4
        %v1243 = vsel %vm1024, %v1235, %v1242
        %1244 = vrot.lane.b32.xlu0 %v999, 96
        %v1245 = vpop.permute.xlu0 %1244
        %1246 = vrot.lane.b32.xlu0 %v1001, 96
        %v1247 = vpop.permute.xlu0 %1246
        %1248 = vrot.lane.b32.xlu0 %v1006, 96
        %v1249 = vpop.permute.xlu0 %1248
        %1250 = vrot.lane.b32.xlu0 %v1008, 96
        %v1251 = vpop.permute.xlu0 %1250
        %1252 = vrot.lane.b32.xlu0 %v1012, 96
        %v1253 = vpop.permute.xlu0 %1252
        %1254 = vrot.lane.b32.xlu0 %v1014, 96
        %v1255 = vpop.permute.xlu0 %1254
        %1256 = vrot.lane.b32.xlu0 %v1018, 96
        %v1257 = vpop.permute.xlu0 %1256
        %1258 = vrot.lane.b32.xlu0 %v1020, 96
        %v1259 = vpop.permute.xlu0 %1258
        %v1268 = vrot.slane %v1253, 4
        %v1269 = vsel %vm1024, %v1268, %v1245
        %v1270 = vrot.slane %v1245, 4
        %v1271 = vsel %vm1024, %v1253, %v1270
        %v1273 = vunpack.c.l.s4 1983009808
        %v1274 = vunpack.c.0.s8 %v1273
        %v1275 = vperm.slane %v1269, %v1274
        %v1277 = vunpack.c.l.s4 1983009808
        %v1278 = vunpack.c.0.s8 %v1277
        %v1279 = vperm.slane %v1271, %v1278
        %v1280 = vrot.slane %v1257, 4
        %v1281 = vsel %vm1024, %v1280, %v1249
        %v1282 = vrot.slane %v1249, 4
        %v1283 = vsel %vm1024, %v1257, %v1282
        %v1285 = vunpack.c.l.s4 1983009808
        %v1286 = vunpack.c.0.s8 %v1285
        %v1287 = vperm.slane %v1281, %v1286
        %v1289 = vunpack.c.l.s4 1983009808
        %v1290 = vunpack.c.0.s8 %v1289
        %v1291 = vperm.slane %v1283, %v1290
        %v1292 = vrot.slane %v1287, 4
        %v1293 = vsel %vm1024, %v1292, %v1275
        %v1294 = vrot.slane %v1275, 4
        %v1295 = vsel %vm1024, %v1287, %v1294
        %v1297 = vunpack.c.l.s4 1934713408
        %v1298 = vunpack.c.0.s8 %v1297
        %v1299 = vperm.slane %v1293, %v1298
        %v1301 = vunpack.c.l.s4 1934713408
        %v1302 = vunpack.c.0.s8 %v1301
        %v1303 = vperm.slane %v1295, %v1302
        %v1304 = vrot.slane %v1291, 4
        %v1305 = vsel %vm1024, %v1304, %v1279
        %v1306 = vrot.slane %v1279, 4
        %v1307 = vsel %vm1024, %v1291, %v1306
        %v1309 = vunpack.c.l.s4 1934713408
        %v1310 = vunpack.c.0.s8 %v1309
        %v1311 = vperm.slane %v1305, %v1310
        %v1313 = vunpack.c.l.s4 1934713408
        %v1314 = vunpack.c.0.s8 %v1313
        %v1315 = vperm.slane %v1307, %v1314
        %v1316 = vrot.slane %v1299, 4
        %v1317 = vsel %vm1024, 0.0, %v1316
        %v1318 = vrot.slane %v1303, 4
        %v1319 = vsel %vm1024, 0.0, %v1318
        %v1320 = vrot.slane %v1311, 4
        %v1321 = vsel %vm1024, 0.0, %v1320
        %v1322 = vrot.slane %v1315, 4
        %v1323 = vsel %vm1024, 0.0, %v1322
        %v1324 = vrot.slane %v1255, 4
        %v1325 = vsel %vm1024, %v1324, %v1247
        %v1326 = vrot.slane %v1247, 4
        %v1327 = vsel %vm1024, %v1255, %v1326
        %v1329 = vunpack.c.l.s4 1983009808
        %v1330 = vunpack.c.0.s8 %v1329
        %v1331 = vperm.slane %v1325, %v1330
        %v1333 = vunpack.c.l.s4 1983009808
        %v1334 = vunpack.c.0.s8 %v1333
        %v1335 = vperm.slane %v1327, %v1334
        %v1336 = vrot.slane %v1259, 4
        %v1337 = vsel %vm1024, %v1336, %v1251
        %v1338 = vrot.slane %v1251, 4
        %v1339 = vsel %vm1024, %v1259, %v1338
        %v1341 = vunpack.c.l.s4 1983009808
        %v1342 = vunpack.c.0.s8 %v1341
        %v1343 = vperm.slane %v1337, %v1342
        %v1345 = vunpack.c.l.s4 1983009808
        %v1346 = vunpack.c.0.s8 %v1345
        %v1347 = vperm.slane %v1339, %v1346
        %v1348 = vrot.slane %v1343, 4
        %v1349 = vsel %vm1024, %v1348, %v1331
        %v1350 = vrot.slane %v1331, 4
        %v1351 = vsel %vm1024, %v1343, %v1350
        %v1353 = vunpack.c.l.s4 1934713408
        %v1354 = vunpack.c.0.s8 %v1353
        %v1355 = vperm.slane %v1349, %v1354
        %v1357 = vunpack.c.l.s4 1934713408
        %v1358 = vunpack.c.0.s8 %v1357
        %v1359 = vperm.slane %v1351, %v1358
        %v1360 = vrot.slane %v1347, 4
        %v1361 = vsel %vm1024, %v1360, %v1335
        %v1362 = vrot.slane %v1335, 4
        %v1363 = vsel %vm1024, %v1347, %v1362
        %v1365 = vunpack.c.l.s4 1934713408
        %v1366 = vunpack.c.0.s8 %v1365
        %v1367 = vperm.slane %v1361, %v1366
        %v1369 = vunpack.c.l.s4 1934713408
        %v1370 = vunpack.c.0.s8 %v1369
        %v1371 = vperm.slane %v1363, %v1370
        %v1372 = vrot.slane %v1355, 4
        %v1373 = vsel %vm1024, 0.0, %v1372
        %v1374 = vrot.slane %v1359, 4
        %v1375 = vsel %vm1024, 0.0, %v1374
        %v1376 = vrot.slane %v1367, 4
        %v1377 = vsel %vm1024, 0.0, %v1376
        %v1378 = vrot.slane %v1371, 4
        %v1379 = vsel %vm1024, 0.0, %v1378
        %v1380 = vsel %vm1024, %v1318, %v1299
        %v1382 = vunpack.c.l.s4 1983009808
        %v1383 = vunpack.c.0.s8 %v1382
        %v1384 = vperm.slane %v1380, %v1383
        %v1385 = vrot.slane %v1319, 4
        %v1386 = vsel %vm1024, %v1385, %v1317
        %v1388 = vunpack.c.l.s4 1983009808
        %v1389 = vunpack.c.0.s8 %v1388
        %v1390 = vperm.slane %v1386, %v1389
        %v1391 = vsel %vm1024, %v1322, %v1311
        %v1393 = vunpack.c.l.s4 1983009808
        %v1394 = vunpack.c.0.s8 %v1393
        %v1395 = vperm.slane %v1391, %v1394
        %v1396 = vrot.slane %v1323, 4
        %v1397 = vsel %vm1024, %v1396, %v1321
        %v1399 = vunpack.c.l.s4 1983009808
        %v1400 = vunpack.c.0.s8 %v1399
        %v1401 = vperm.slane %v1397, %v1400
        %v1402 = vrot.slane %v1390, 4
        %v1403 = vsel %vm1024, %v1402, %v1384
        %v1404 = vrot.slane %v1384, 4
        %v1405 = vsel %vm1024, %v1390, %v1404
        %v1407 = vunpack.c.l.s4 1934713408
        %v1408 = vunpack.c.0.s8 %v1407
        %v1409 = vperm.slane %v1403, %v1408
        %v1411 = vunpack.c.l.s4 1934713408
        %v1412 = vunpack.c.0.s8 %v1411
        %v1413 = vperm.slane %v1405, %v1412
        %v1414 = vrot.slane %v1401, 4
        %v1415 = vsel %vm1024, %v1414, %v1395
        %v1416 = vrot.slane %v1395, 4
        %v1417 = vsel %vm1024, %v1401, %v1416
        %v1419 = vunpack.c.l.s4 1934713408
        %v1420 = vunpack.c.0.s8 %v1419
        %v1421 = vperm.slane %v1415, %v1420
        %v1423 = vunpack.c.l.s4 1934713408
        %v1424 = vunpack.c.0.s8 %v1423
        %v1425 = vperm.slane %v1417, %v1424
        %v1426 = vrot.slane %v1421, 4
        %v1427 = vsel %vm1024, %v1426, %v1409
        %v1428 = vrot.slane %v1409, 4
        %v1429 = vsel %vm1024, %v1421, %v1428
        %v1430 = vrot.slane %v1425, 4
        %v1431 = vsel %vm1024, %v1430, %v1413
        %v1432 = vrot.slane %v1413, 4
        %v1433 = vsel %vm1024, %v1425, %v1432
        %v1434 = vsel %vm1024, %v1374, %v1355
        %v1436 = vunpack.c.l.s4 1983009808
        %v1437 = vunpack.c.0.s8 %v1436
        %v1438 = vperm.slane %v1434, %v1437
        %v1439 = vrot.slane %v1375, 4
        %v1440 = vsel %vm1024, %v1439, %v1373
        %v1442 = vunpack.c.l.s4 1983009808
        %v1443 = vunpack.c.0.s8 %v1442
        %v1444 = vperm.slane %v1440, %v1443
        %v1445 = vsel %vm1024, %v1378, %v1367
        %v1447 = vunpack.c.l.s4 1983009808
        %v1448 = vunpack.c.0.s8 %v1447
        %v1449 = vperm.slane %v1445, %v1448
        %v1450 = vrot.slane %v1379, 4
        %v1451 = vsel %vm1024, %v1450, %v1377
        %v1453 = vunpack.c.l.s4 1983009808
        %v1454 = vunpack.c.0.s8 %v1453
        %v1455 = vperm.slane %v1451, %v1454
        %v1456 = vrot.slane %v1444, 4
        %v1457 = vsel %vm1024, %v1456, %v1438
        %v1458 = vrot.slane %v1438, 4
        %v1459 = vsel %vm1024, %v1444, %v1458
        %v1461 = vunpack.c.l.s4 1934713408
        %v1462 = vunpack.c.0.s8 %v1461
        %v1463 = vperm.slane %v1457, %v1462
        %v1465 = vunpack.c.l.s4 1934713408
        %v1466 = vunpack.c.0.s8 %v1465
        %v1467 = vperm.slane %v1459, %v1466
        %v1468 = vrot.slane %v1455, 4
        %v1469 = vsel %vm1024, %v1468, %v1449
        %v1470 = vrot.slane %v1449, 4
        %v1471 = vsel %vm1024, %v1455, %v1470
        %v1473 = vunpack.c.l.s4 1934713408
        %v1474 = vunpack.c.0.s8 %v1473
        %v1475 = vperm.slane %v1469, %v1474
        %v1477 = vunpack.c.l.s4 1934713408
        %v1478 = vunpack.c.0.s8 %v1477
        %v1479 = vperm.slane %v1471, %v1478
        %v1480 = vrot.slane %v1475, 4
        %v1481 = vsel %vm1024, %v1480, %v1463
        %v1482 = vrot.slane %v1463, 4
        %v1483 = vsel %vm1024, %v1475, %v1482
        %v1484 = vrot.slane %v1479, 4
        %v1485 = vsel %vm1024, %v1484, %v1467
        %v1486 = vrot.slane %v1467, 4
        %v1487 = vsel %vm1024, %v1479, %v1486
        %v1488 = vld [vmem:[#allocation15 + $0x5] sm:$0x1]
        %v1489 = vld [vmem:[#allocation15 + $0x6] sm:$0x1]
        %vm1490 = vcmask 64512
        %v1491 = vsel %vm1490, %v1183, 0.0
        %1492 = vadd.xlane.f32.xlu0 %v1491
        %v1493 = vpop.xlane.xlu0 %1492
        %v1494 = vsel %vm1490, %v1237, 0.0
        %1495 = vadd.xlane.f32.xlu0 %v1494
        %v1496 = vpop.xlane.xlu0 %1495
        %v1497 = vsel %vm1490, %v1185, 0.0
        %1498 = vadd.xlane.f32.xlu0 %v1497
        %v1499 = vpop.xlane.xlu0 %1498
        %v1500 = vsel %vm1490, %v1239, 0.0
        %1501 = vadd.xlane.f32.xlu0 %v1500
        %v1502 = vpop.xlane.xlu0 %1501
        %v1503 = vsel %vm1490, %v1187, 0.0
        %1504 = vadd.xlane.f32.xlu0 %v1503
        %v1505 = vpop.xlane.xlu0 %1504
        %v1506 = vsel %vm1490, %v1241, 0.0
        %1507 = vadd.xlane.f32.xlu0 %v1506
        %v1508 = vpop.xlane.xlu0 %1507
        %v1509 = vsel %vm1490, %v1189, 0.0
        %1510 = vadd.xlane.f32.xlu0 %v1509
        %v1511 = vpop.xlane.xlu0 %1510
        %v1512 = vsel %vm1490, %v1243, 0.0
        %1513 = vadd.xlane.f32.xlu0 %v1512
        %v1514 = vpop.xlane.xlu0 %1513
        %v1515 = vrcp.pop 8.0
        %v1516 = vmul.f32 8.0, %v1515
        %v1517 = vsub.f32 1.0, %v1516
        %v1518 = vmul.f32 %v1515, %v1517
        %v1519 = vadd.f32 %v1515, %v1518
        %vm1520 = vweird.f32 %v1515
        %v1521 = vsel %vm1520, %v1515, %v1519
        %v1522 = vmul.f32 %v1493, %v1521
        %v1523 = vmul.f32 %v1496, %v1521
        %v1524 = vmul.f32 %v1499, %v1521
        %v1525 = vmul.f32 %v1502, %v1521
        %v1526 = vmul.f32 %v1505, %v1521
        %v1527 = vmul.f32 %v1508, %v1521
        %v1528 = vmul.f32 %v1511, %v1521
        %v1529 = vmul.f32 %v1514, %v1521
        %v1530 = vmul.f32 %v1183, %v1183
        %v1531 = vmul.f32 %v1237, %v1237
        %v1532 = vmul.f32 %v1185, %v1185
        %v1533 = vmul.f32 %v1239, %v1239
        %v1534 = vmul.f32 %v1187, %v1187
        %v1535 = vmul.f32 %v1241, %v1241
        %v1536 = vmul.f32 %v1189, %v1189
        %v1537 = vmul.f32 %v1243, %v1243
        %v1538 = vsel %vm1490, %v1530, 0.0
        %1539 = vadd.xlane.f32.xlu0 %v1538
        %v1540 = vpop.xlane.xlu0 %1539
        %v1541 = vsel %vm1490, %v1531, 0.0
        %1542 = vadd.xlane.f32.xlu0 %v1541
        %v1543 = vpop.xlane.xlu0 %1542
        %v1544 = vsel %vm1490, %v1532, 0.0
        %1545 = vadd.xlane.f32.xlu0 %v1544
        %v1546 = vpop.xlane.xlu0 %1545
        %v1547 = vsel %vm1490, %v1533, 0.0
        %1548 = vadd.xlane.f32.xlu0 %v1547
        %v1549 = vpop.xlane.xlu0 %1548
        %v1550 = vsel %vm1490, %v1534, 0.0
        %1551 = vadd.xlane.f32.xlu0 %v1550
        %v1552 = vpop.xlane.xlu0 %1551
        %v1553 = vsel %vm1490, %v1535, 0.0
        %1554 = vadd.xlane.f32.xlu0 %v1553
        %v1555 = vpop.xlane.xlu0 %1554
        %v1556 = vsel %vm1490, %v1536, 0.0
        %1557 = vadd.xlane.f32.xlu0 %v1556
        %v1558 = vpop.xlane.xlu0 %1557
        %v1559 = vsel %vm1490, %v1537, 0.0
        %1560 = vadd.xlane.f32.xlu0 %v1559
        %v1561 = vpop.xlane.xlu0 %1560
        %v1562 = vmul.f32 %v1540, %v1521
        %v1563 = vmul.f32 %v1543, %v1521
        %v1564 = vmul.f32 %v1546, %v1521
        %v1565 = vmul.f32 %v1549, %v1521
        %v1566 = vmul.f32 %v1552, %v1521
        %v1567 = vmul.f32 %v1555, %v1521
        %v1568 = vmul.f32 %v1558, %v1521
        %v1569 = vmul.f32 %v1561, %v1521
        %v1570 = vmul.f32 %v1522, %v1522
        %v1571 = vmul.f32 %v1523, %v1523
        %v1572 = vmul.f32 %v1524, %v1524
        %v1573 = vmul.f32 %v1525, %v1525
        %v1574 = vmul.f32 %v1526, %v1526
        %v1575 = vmul.f32 %v1527, %v1527
        %v1576 = vmul.f32 %v1528, %v1528
        %v1577 = vmul.f32 %v1529, %v1529
        %v1578 = vsub.f32 %v1562, %v1570
        %v1579 = vsub.f32 %v1563, %v1571
        %v1580 = vsub.f32 %v1564, %v1572
        %v1581 = vsub.f32 %v1565, %v1573
        %v1582 = vsub.f32 %v1566, %v1574
        %v1583 = vsub.f32 %v1567, %v1575
        %v1584 = vsub.f32 %v1568, %v1576
        %v1585 = vsub.f32 %v1569, %v1577
        %v1586 = vmax.f32 %v1578, 0.0
        %v1587 = vmax.f32 %v1579, 0.0
        %v1588 = vmax.f32 %v1580, 0.0
        %v1589 = vmax.f32 %v1581, 0.0
        %v1590 = vmax.f32 %v1582, 0.0
        %v1591 = vmax.f32 %v1583, 0.0
        %v1592 = vmax.f32 %v1584, 0.0
        %v1593 = vmax.f32 %v1585, 0.0
        %v1594 = vsub.f32 %v1183, %v1522
        %v1595 = vsub.f32 %v1237, %v1523
        %v1596 = vsub.f32 %v1185, %v1524
        %v1597 = vsub.f32 %v1239, %v1525
        %v1598 = vsub.f32 %v1187, %v1526
        %v1599 = vsub.f32 %v1241, %v1527
        %v1600 = vsub.f32 %v1189, %v1528
        %v1601 = vsub.f32 %v1243, %v1529
        %v1602 = vadd.f32 %v1586, 1e-05
        %v1603 = vadd.f32 %v1587, 1e-05
        %v1604 = vadd.f32 %v1588, 1e-05
        %v1605 = vadd.f32 %v1589, 1e-05
        %v1606 = vadd.f32 %v1590, 1e-05
        %v1607 = vadd.f32 %v1591, 1e-05
        %v1608 = vadd.f32 %v1592, 1e-05
        %v1609 = vadd.f32 %v1593, 1e-05
        %v1610 = vrsqrt.pop %v1602
        %v1611 = vmul.f32 %v1610, %v1602
        %v1612 = vmul.f32 %v1611, %v1610
        %v1613 = vmul.f32 0.5, %v1612
        %v1614 = vsub.f32 1.5, %v1613
        %v1615 = vmul.f32 %v1610, %v1614
        %vm1616 = vweird.f32 %v1602
        %vm1617 = vweird.f32 %v1610
        %vm1618 = vmor %vm1616, %vm1617
        %v1619 = vsel %vm1618, %v1610, %v1615
        %v1620 = vrsqrt.pop %v1603
        %v1621 = vmul.f32 %v1620, %v1603
        %v1622 = vmul.f32 %v1621, %v1620
        %v1623 = vmul.f32 0.5, %v1622
        %v1624 = vsub.f32 1.5, %v1623
        %v1625 = vmul.f32 %v1620, %v1624
        %vm1626 = vweird.f32 %v1603
        %vm1627 = vweird.f32 %v1620
        %vm1628 = vmor %vm1626, %vm1627
        %v1629 = vsel %vm1628, %v1620, %v1625
        %v1630 = vrsqrt.pop %v1604
        %v1631 = vmul.f32 %v1630, %v1604
        %v1632 = vmul.f32 %v1631, %v1630
        %v1633 = vmul.f32 0.5, %v1632
        %v1634 = vsub.f32 1.5, %v1633
        %v1635 = vmul.f32 %v1630, %v1634
        %vm1636 = vweird.f32 %v1604
        %vm1637 = vweird.f32 %v1630
        %vm1638 = vmor %vm1636, %vm1637
        %v1639 = vsel %vm1638, %v1630, %v1635
        %v1640 = vrsqrt.pop %v1605
        %v1641 = vmul.f32 %v1640, %v1605
        %v1642 = vmul.f32 %v1641, %v1640
        %v1643 = vmul.f32 0.5, %v1642
        %v1644 = vsub.f32 1.5, %v1643
        %v1645 = vmul.f32 %v1640, %v1644
        %vm1646 = vweird.f32 %v1605
        %vm1647 = vweird.f32 %v1640
        %vm1648 = vmor %vm1646, %vm1647
        %v1649 = vsel %vm1648, %v1640, %v1645
        %v1650 = vrsqrt.pop %v1606
        %v1651 = vmul.f32 %v1650, %v1606
        %v1652 = vmul.f32 %v1651, %v1650
        %v1653 = vmul.f32 0.5, %v1652
        %v1654 = vsub.f32 1.5, %v1653
        %v1655 = vmul.f32 %v1650, %v1654
        %vm1656 = vweird.f32 %v1606
        %vm1657 = vweird.f32 %v1650
        %vm1658 = vmor %vm1656, %vm1657
        %v1659 = vsel %vm1658, %v1650, %v1655
        %v1660 = vrsqrt.pop %v1607
        %v1661 = vmul.f32 %v1660, %v1607
        %v1662 = vmul.f32 %v1661, %v1660
        %v1663 = vmul.f32 0.5, %v1662
        %v1664 = vsub.f32 1.5, %v1663
        %v1665 = vmul.f32 %v1660, %v1664
        %vm1666 = vweird.f32 %v1607
        %vm1667 = vweird.f32 %v1660
        %vm1668 = vmor %vm1666, %vm1667
        %v1669 = vsel %vm1668, %v1660, %v1665
        %v1670 = vrsqrt.pop %v1608
        %v1671 = vmul.f32 %v1670, %v1608
        %v1672 = vmul.f32 %v1671, %v1670
        %v1673 = vmul.f32 0.5, %v1672
        %v1674 = vsub.f32 1.5, %v1673
        %v1675 = vmul.f32 %v1670, %v1674
        %vm1676 = vweird.f32 %v1608
        %vm1677 = vweird.f32 %v1670
        %vm1678 = vmor %vm1676, %vm1677
        %v1679 = vsel %vm1678, %v1670, %v1675
        %v1680 = vrsqrt.pop %v1609
        %v1681 = vmul.f32 %v1680, %v1609
        %v1682 = vmul.f32 %v1681, %v1680
        %v1683 = vmul.f32 0.5, %v1682
        %v1684 = vsub.f32 1.5, %v1683
        %v1685 = vmul.f32 %v1680, %v1684
        %vm1686 = vweird.f32 %v1609
        %vm1687 = vweird.f32 %v1680
        %vm1688 = vmor %vm1686, %vm1687
        %v1689 = vsel %vm1688, %v1680, %v1685
        %v1690 = vmul.f32 %v1594, %v1619
        %v1691 = vmul.f32 %v1595, %v1629
        %v1692 = vmul.f32 %v1596, %v1639
        %v1693 = vmul.f32 %v1597, %v1649
        %v1694 = vmul.f32 %v1598, %v1659
        %v1695 = vmul.f32 %v1599, %v1669
        %v1696 = vmul.f32 %v1600, %v1679
        %v1697 = vmul.f32 %v1601, %v1689
        %v1698 = vperm.slane %v1488, 0
        %v1699 = vmul.f32 %v1690, %v1698
        %v1700 = vmul.f32 %v1691, %v1698
        %v1701 = vmul.f32 %v1692, %v1698
        %v1702 = vmul.f32 %v1693, %v1698
        %v1703 = vmul.f32 %v1694, %v1698
        %v1704 = vmul.f32 %v1695, %v1698
        %v1705 = vmul.f32 %v1696, %v1698
        %v1706 = vmul.f32 %v1697, %v1698
        %v1707 = vperm.slane %v1489, 0
        %v1708 = vadd.f32 %v1699, %v1707
        %v1709 = vadd.f32 %v1700, %v1707
        %v1710 = vadd.f32 %v1701, %v1707
        %v1711 = vadd.f32 %v1702, %v1707
        %v1712 = vadd.f32 %v1703, %v1707
        %v1713 = vadd.f32 %v1704, %v1707
        %v1714 = vadd.f32 %v1705, %v1707
        %v1715 = vadd.f32 %v1706, %v1707
        %v1716 = vld [vmem:[#allocation2] sm:$0xff]
        %v1717 = vld [vmem:[#allocation2 + $0x8] sm:$0xff]
        %v1718 = vld [vmem:[#allocation2 + $0x10] sm:$0xff]
        %v1719 = vld [vmem:[#allocation2 + $0x18] sm:$0xff]
        %v1720 = vld [vmem:[#allocation2 + $0x20] sm:$0xff]
        %v1721 = vld [vmem:[#allocation2 + $0x28] sm:$0xff]
        %v1722 = vld [vmem:[#allocation2 + $0x30] sm:$0xff]
        %v1723 = vld [vmem:[#allocation2 + $0x38] sm:$0xff]
        %v1724 = vpack.c.bf16 %v1716, %v1716
        %v1725 = vpack.c.bf16 %v1717, %v1717
        %v1726 = vpack.c.bf16 %v1718, %v1718
        %v1727 = vpack.c.bf16 %v1719, %v1719
        %v1728 = vpack.c.bf16 %v1720, %v1720
        %v1729 = vpack.c.bf16 %v1721, %v1721
        %v1730 = vpack.c.bf16 %v1722, %v1722
        %v1731 = vpack.c.bf16 %v1723, %v1723
        %v1732 = vpack.c.bf16 %v1708, %v1708
        %v1733 = vpack.c.bf16 %v1709, %v1709
        %v1734 = vpack.c.bf16 %v1710, %v1710
        %v1735 = vpack.c.bf16 %v1711, %v1711
        %v1736 = vpack.c.bf16 %v1712, %v1712
        %v1737 = vpack.c.bf16 %v1713, %v1713
        %v1738 = vpack.c.bf16 %v1714, %v1714
        %v1739 = vpack.c.bf16 %v1715, %v1715
        %v1742 = vunpack.c.l.b16 %v1724
        %v1743 = vunpack.c.l.b16 %v1725
        %v1744 = vpack.c.b16 %v1743, %v1742
        %v1747 = vunpack.c.l.b16 %v1732
        %v1748 = vunpack.c.l.b16 %v1733
        %v1749 = vpack.c.b16 %v1748, %v1747
        %v1751 = vsel %vm1490, %v1744, 0
        %v1754 = vsel %vm1490, %v1749, 0
        %1756 = vmatpush.bf16.xpose.msra.mxu0 0
        %1757 = vmatpush.bf16.xpose.msra.mxu0 0
        %1758 = vmatpush.bf16.xpose.msra.mxu0 0
        %1759 = vmatpush.bf16.xpose.msra.mxu0 0
        %1760 = vmatpush.bf16.xpose.msra.mxu0 0
        %1761 = vmatpush.bf16.xpose.msra.mxu0 0
        %1762 = vmatpush.bf16.xpose.msra.mxu0 0
        %1763 = vmatpush.bf16.xpose.msra.mxu0 %v1754
        %1764 = vmatmul.bf16.gmra.mxu0 %v1751
        %v1765 = vpop.f32.mrf.mxu0
        %v1766 = vadd.f32 0.0, %v1765
        %v1767 = vpop.f32.mrf.mxu0
        %v1768 = vadd.f32 0.0, %v1767
        %1769 = vdwg.mxu0
        %v1772 = vunpack.c.l.b16 %v1726
        %v1773 = vunpack.c.l.b16 %v1727
        %v1774 = vpack.c.b16 %v1773, %v1772
        %v1777 = vunpack.c.l.b16 %v1734
        %v1778 = vunpack.c.l.b16 %v1735
        %v1779 = vpack.c.b16 %v1778, %v1777
        %v1781 = vsel %vm1490, %v1774, 0
        %v1784 = vsel %vm1490, %v1779, 0
        %1786 = vmatpush.bf16.xpose.msra.mxu0 0
        %1787 = vmatpush.bf16.xpose.msra.mxu0 0
        %1788 = vmatpush.bf16.xpose.msra.mxu0 0
        %1789 = vmatpush.bf16.xpose.msra.mxu0 0
        %1790 = vmatpush.bf16.xpose.msra.mxu0 0
        %1791 = vmatpush.bf16.xpose.msra.mxu0 0
        %1792 = vmatpush.bf16.xpose.msra.mxu0 0
        %1793 = vmatpush.bf16.xpose.msra.mxu0 %v1784
        %1794 = vmatmul.bf16.gmra.mxu0 %v1781
        %v1795 = vpop.f32.mrf.mxu0
        %v1796 = vadd.f32 0.0, %v1795
        %v1797 = vpop.f32.mrf.mxu0
        %v1798 = vadd.f32 0.0, %v1797
        %1799 = vdwg.mxu0
        %v1802 = vunpack.c.l.b16 %v1728
        %v1803 = vunpack.c.l.b16 %v1729
        %v1804 = vpack.c.b16 %v1803, %v1802
        %v1807 = vunpack.c.l.b16 %v1736
        %v1808 = vunpack.c.l.b16 %v1737
        %v1809 = vpack.c.b16 %v1808, %v1807
        %v1811 = vsel %vm1490, %v1804, 0
        %v1814 = vsel %vm1490, %v1809, 0
        %1816 = vmatpush.bf16.xpose.msra.mxu0 0
        %1817 = vmatpush.bf16.xpose.msra.mxu0 0
        %1818 = vmatpush.bf16.xpose.msra.mxu0 0
        %1819 = vmatpush.bf16.xpose.msra.mxu0 0
        %1820 = vmatpush.bf16.xpose.msra.mxu0 0
        %1821 = vmatpush.bf16.xpose.msra.mxu0 0
        %1822 = vmatpush.bf16.xpose.msra.mxu0 0
        %1823 = vmatpush.bf16.xpose.msra.mxu0 %v1814
        %1824 = vmatmul.bf16.gmra.mxu0 %v1811
        %v1825 = vpop.f32.mrf.mxu0
        %v1826 = vadd.f32 0.0, %v1825
        %v1827 = vpop.f32.mrf.mxu0
        %v1828 = vadd.f32 0.0, %v1827
        %1829 = vdwg.mxu0
        %v1832 = vunpack.c.l.b16 %v1730
        %v1833 = vunpack.c.l.b16 %v1731
        %v1834 = vpack.c.b16 %v1833, %v1832
        %v1837 = vunpack.c.l.b16 %v1738
        %v1838 = vunpack.c.l.b16 %v1739
        %v1839 = vpack.c.b16 %v1838, %v1837
        %v1841 = vsel %vm1490, %v1834, 0
        %v1844 = vsel %vm1490, %v1839, 0
        %1846 = vmatpush.bf16.xpose.msra.mxu0 0
        %1847 = vmatpush.bf16.xpose.msra.mxu0 0
        %1848 = vmatpush.bf16.xpose.msra.mxu0 0
        %1849 = vmatpush.bf16.xpose.msra.mxu0 0
        %1850 = vmatpush.bf16.xpose.msra.mxu0 0
        %1851 = vmatpush.bf16.xpose.msra.mxu0 0
        %1852 = vmatpush.bf16.xpose.msra.mxu0 0
        %1853 = vmatpush.bf16.xpose.msra.mxu0 %v1844
        %1854 = vmatmul.bf16.gmra.mxu0 %v1841
        %v1855 = vpop.f32.mrf.mxu0
        %v1856 = vadd.f32 0.0, %v1855
        %v1857 = vpop.f32.mrf.mxu0
        %v1858 = vadd.f32 0.0, %v1857
        %1859 = vdwg.mxu0
        %v1860 = vld [vmem:[#allocation3] sm:$0xff]
        %v1861 = vld [vmem:[#allocation3 + $0x8] sm:$0xff]
        %v1862 = vld [vmem:[#allocation3 + $0x10] sm:$0xff]
        %v1863 = vld [vmem:[#allocation3 + $0x18] sm:$0xff]
        %v1864 = vld [vmem:[#allocation3 + $0x20] sm:$0xff]
        %v1865 = vld [vmem:[#allocation3 + $0x28] sm:$0xff]
        %v1866 = vld [vmem:[#allocation3 + $0x30] sm:$0xff]
        %v1867 = vld [vmem:[#allocation3 + $0x38] sm:$0xff]
        %vm1868 = vcmask 130048
        %v1869 = vsel %vm1868, %v1766, -inf
        %1870 = vmax.xlane.f32.xlu0 %v1869
        %v1871 = vpop.xlane.xlu0 %1870
        %v1872 = vsel %vm1868, %v1768, -inf
        %1873 = vmax.xlane.f32.xlu0 %v1872
        %v1874 = vpop.xlane.xlu0 %1873
        %v1875 = vsel %vm1868, %v1796, -inf
        %1876 = vmax.xlane.f32.xlu0 %v1875
        %v1877 = vpop.xlane.xlu0 %1876
        %v1878 = vsel %vm1868, %v1798, -inf
        %1879 = vmax.xlane.f32.xlu0 %v1878
        %v1880 = vpop.xlane.xlu0 %1879
        %v1881 = vsel %vm1868, %v1826, -inf
        %1882 = vmax.xlane.f32.xlu0 %v1881
        %v1883 = vpop.xlane.xlu0 %1882
        %v1884 = vsel %vm1868, %v1828, -inf
        %1885 = vmax.xlane.f32.xlu0 %v1884
        %v1886 = vpop.xlane.xlu0 %1885
        %v1887 = vsel %vm1868, %v1856, -inf
        %1888 = vmax.xlane.f32.xlu0 %v1887
        %v1889 = vpop.xlane.xlu0 %1888
        %v1890 = vsel %vm1868, %v1858, -inf
        %1891 = vmax.xlane.f32.xlu0 %v1890
        %v1892 = vpop.xlane.xlu0 %1891
        %v1893 = vmax.f32 %v1860, %v1871
        %v1894 = vmax.f32 %v1861, %v1874
        %v1895 = vmax.f32 %v1862, %v1877
        %v1896 = vmax.f32 %v1863, %v1880
        %v1897 = vmax.f32 %v1864, %v1883
        %v1898 = vmax.f32 %v1865, %v1886
        %v1899 = vmax.f32 %v1866, %v1889
        %v1900 = vmax.f32 %v1867, %v1892
        %v1901 = vsub.f32 %v1860, %v1893
        %v1902 = vsub.f32 %v1861, %v1894
        %v1903 = vsub.f32 %v1862, %v1895
        %v1904 = vsub.f32 %v1863, %v1896
        %v1905 = vsub.f32 %v1864, %v1897
        %v1906 = vsub.f32 %v1865, %v1898
        %v1907 = vsub.f32 %v1866, %v1899
        %v1908 = vsub.f32 %v1867, %v1900
        %v1909 = vmul.f32 %v1901, 1.442695
        %v1910 = vpow.pop %v1909
        %v1911 = vmul.f32 %v1902, 1.442695
        %v1912 = vpow.pop %v1911
        %v1913 = vmul.f32 %v1903, 1.442695
        %v1914 = vpow.pop %v1913
        %v1915 = vmul.f32 %v1904, 1.442695
        %v1916 = vpow.pop %v1915
        %v1917 = vmul.f32 %v1905, 1.442695
        %v1918 = vpow.pop %v1917
        %v1919 = vmul.f32 %v1906, 1.442695
        %v1920 = vpow.pop %v1919
        %v1921 = vmul.f32 %v1907, 1.442695
        %v1922 = vpow.pop %v1921
        %v1923 = vmul.f32 %v1908, 1.442695
        %v1924 = vpow.pop %v1923
        %1926 = vset.pattern.permute.xlu0 0
        %1927 = vperm.xlu0 %1926, %v1893
        %v1928 = vpop.permute.xlu0 %1927
        %1931 = vset.pattern.permute.xlu0 0
        %1932 = vperm.xlu0 %1931, %v1894
        %v1933 = vpop.permute.xlu0 %1932
        %1936 = vset.pattern.permute.xlu0 0
        %1937 = vperm.xlu0 %1936, %v1895
        %v1938 = vpop.permute.xlu0 %1937
        %1941 = vset.pattern.permute.xlu0 0
        %1942 = vperm.xlu0 %1941, %v1896
        %v1943 = vpop.permute.xlu0 %1942
        %1946 = vset.pattern.permute.xlu0 0
        %1947 = vperm.xlu0 %1946, %v1897
        %v1948 = vpop.permute.xlu0 %1947
        %1951 = vset.pattern.permute.xlu0 0
        %1952 = vperm.xlu0 %1951, %v1898
        %v1953 = vpop.permute.xlu0 %1952
        %1956 = vset.pattern.permute.xlu0 0
        %1957 = vperm.xlu0 %1956, %v1899
        %v1958 = vpop.permute.xlu0 %1957
        %1961 = vset.pattern.permute.xlu0 0
        %1962 = vperm.xlu0 %1961, %v1900
        %v1963 = vpop.permute.xlu0 %1962
        %v1965 = vsub.f32 %v1766, %v1928
        %v1966 = vsub.f32 %v1768, %v1933
        %v1967 = vsub.f32 %v1796, %v1938
        %v1968 = vsub.f32 %v1798, %v1943
        %v1969 = vsub.f32 %v1826, %v1948
        %v1970 = vsub.f32 %v1828, %v1953
        %v1971 = vsub.f32 %v1856, %v1958
        %v1972 = vsub.f32 %v1858, %v1963
        %v1973 = vmul.f32 %v1965, 1.442695
        %v1974 = vpow.pop %v1973
        %v1975 = vmul.f32 %v1966, 1.442695
        %v1976 = vpow.pop %v1975
        %v1977 = vmul.f32 %v1967, 1.442695
        %v1978 = vpow.pop %v1977
        %v1979 = vmul.f32 %v1968, 1.442695
        %v1980 = vpow.pop %v1979
        %v1981 = vmul.f32 %v1969, 1.442695
        %v1982 = vpow.pop %v1981
        %v1983 = vmul.f32 %v1970, 1.442695
        %v1984 = vpow.pop %v1983
        %v1985 = vmul.f32 %v1971, 1.442695
        %v1986 = vpow.pop %v1985
        %v1987 = vmul.f32 %v1972, 1.442695
        %v1988 = vpow.pop %v1987
        %v1989 = vld [vmem:[#allocation4] sm:$0xff]
        %v1990 = vld [vmem:[#allocation4 + $0x8] sm:$0xff]
        %v1991 = vld [vmem:[#allocation4 + $0x10] sm:$0xff]
        %v1992 = vld [vmem:[#allocation4 + $0x18] sm:$0xff]
        %v1993 = vld [vmem:[#allocation4 + $0x20] sm:$0xff]
        %v1994 = vld [vmem:[#allocation4 + $0x28] sm:$0xff]
        %v1995 = vld [vmem:[#allocation4 + $0x30] sm:$0xff]
        %v1996 = vld [vmem:[#allocation4 + $0x38] sm:$0xff]
        %v1997 = vmul.f32 %v1910, %v1989
        %v1998 = vmul.f32 %v1912, %v1990
        %v1999 = vmul.f32 %v1914, %v1991
        %v2000 = vmul.f32 %v1916, %v1992
        %v2001 = vmul.f32 %v1918, %v1993
        %v2002 = vmul.f32 %v1920, %v1994
        %v2003 = vmul.f32 %v1922, %v1995
        %v2004 = vmul.f32 %v1924, %v1996
        %v2005 = vsel %vm1868, %v1974, 0.0
        %2006 = vadd.xlane.f32.xlu0 %v2005
        %v2007 = vpop.xlane.xlu0 %2006
        %v2008 = vsel %vm1868, %v1976, 0.0
        %2009 = vadd.xlane.f32.xlu0 %v2008
        %v2010 = vpop.xlane.xlu0 %2009
        %v2011 = vsel %vm1868, %v1978, 0.0
        %2012 = vadd.xlane.f32.xlu0 %v2011
        %v2013 = vpop.xlane.xlu0 %2012
        %v2014 = vsel %vm1868, %v1980, 0.0
        %2015 = vadd.xlane.f32.xlu0 %v2014
        %v2016 = vpop.xlane.xlu0 %2015
        %v2017 = vsel %vm1868, %v1982, 0.0
        %2018 = vadd.xlane.f32.xlu0 %v2017
        %v2019 = vpop.xlane.xlu0 %2018
        %v2020 = vsel %vm1868, %v1984, 0.0
        %2021 = vadd.xlane.f32.xlu0 %v2020
        %v2022 = vpop.xlane.xlu0 %2021
        %v2023 = vsel %vm1868, %v1986, 0.0
        %2024 = vadd.xlane.f32.xlu0 %v2023
        %v2025 = vpop.xlane.xlu0 %2024
        %v2026 = vsel %vm1868, %v1988, 0.0
        %2027 = vadd.xlane.f32.xlu0 %v2026
        %v2028 = vpop.xlane.xlu0 %2027
        %v2029 = vadd.f32 %v1997, %v2007
        %v2030 = vadd.f32 %v1998, %v2010
        %v2031 = vadd.f32 %v1999, %v2013
        %v2032 = vadd.f32 %v2000, %v2016
        %v2033 = vadd.f32 %v2001, %v2019
        %v2034 = vadd.f32 %v2002, %v2022
        %v2035 = vadd.f32 %v2003, %v2025
        %v2036 = vadd.f32 %v2004, %v2028
        %vm2037 = vcmask 7168
        %2038 = vst.msk [vmem:[#allocation4] sm:$0xff] %vm2037, %v2029
        %2039 = vst.msk [vmem:[#allocation4 + $0x8] sm:$0xff] %vm2037, %v2030
        %2040 = vst.msk [vmem:[#allocation4 + $0x10] sm:$0xff] %vm2037, %v2031
        %2041 = vst.msk [vmem:[#allocation4 + $0x18] sm:$0xff] %vm2037, %v2032
        %2042 = vst.msk [vmem:[#allocation4 + $0x20] sm:$0xff] %vm2037, %v2033
        %2043 = vst.msk [vmem:[#allocation4 + $0x28] sm:$0xff] %vm2037, %v2034
        %2044 = vst.msk [vmem:[#allocation4 + $0x30] sm:$0xff] %vm2037, %v2035
        %2045 = vst.msk [vmem:[#allocation4 + $0x38] sm:$0xff] %vm2037, %v2036
        %v2046 = vpack.c.bf16 %v1974, %v1974
        %v2047 = vpack.c.bf16 %v1976, %v1976
        %v2048 = vpack.c.bf16 %v1978, %v1978
        %v2049 = vpack.c.bf16 %v1980, %v1980
        %v2050 = vpack.c.bf16 %v1982, %v1982
        %v2051 = vpack.c.bf16 %v1984, %v1984
        %v2052 = vpack.c.bf16 %v1986, %v1986
        %v2053 = vpack.c.bf16 %v1988, %v1988
        %v2054 = vpack.c.bf16 %v1427, %v1427
        %v2055 = vpack.c.bf16 %v1481, %v1481
        %v2056 = vpack.c.bf16 %v1429, %v1429
        %v2057 = vpack.c.bf16 %v1483, %v1483
        %v2058 = vpack.c.bf16 %v1431, %v1431
        %v2059 = vpack.c.bf16 %v1485, %v1485
        %v2060 = vpack.c.bf16 %v1433, %v1433
        %v2061 = vpack.c.bf16 %v1487, %v1487
        %v2064 = vunpack.c.l.b16 %v2046
        %v2065 = vunpack.c.l.b16 %v2047
        %v2066 = vpack.c.b16 %v2065, %v2064
        %v2069 = vunpack.c.l.b16 %v2054
        %v2070 = vunpack.c.l.b16 %v2055
        %v2071 = vpack.c.b16 %v2070, %v2069
        %v2074 = vsel %vm1868, %v2066, 0
        %2076 = vmatpush.bf16.msra.mxu0 0
        %2077 = vmatpush.bf16.msra.mxu0 0
        %2078 = vmatpush.bf16.msra.mxu0 0
        %2079 = vmatpush.bf16.msra.mxu0 0
        %2080 = vmatpush.bf16.msra.mxu0 0
        %2081 = vmatpush.bf16.msra.mxu0 0
        %2082 = vmatpush.bf16.msra.mxu0 0
        %2083 = vmatpush.bf16.msra.mxu0 %v2071
        %2084 = vmatmul.bf16.gmra.mxu0 %v2074
        %v2085 = vpop.f32.mrf.mxu0
        %v2086 = vadd.f32 0.0, %v2085
        %v2087 = vpop.f32.mrf.mxu0
        %v2088 = vadd.f32 0.0, %v2087
        %2089 = vdwg.mxu0
        %v2092 = vunpack.c.l.b16 %v2048
        %v2093 = vunpack.c.l.b16 %v2049
        %v2094 = vpack.c.b16 %v2093, %v2092
        %v2097 = vunpack.c.l.b16 %v2056
        %v2098 = vunpack.c.l.b16 %v2057
        %v2099 = vpack.c.b16 %v2098, %v2097
        %v2102 = vsel %vm1868, %v2094, 0
        %2104 = vmatpush.bf16.msra.mxu0 0
        %2105 = vmatpush.bf16.msra.mxu0 0
        %2106 = vmatpush.bf16.msra.mxu0 0
        %2107 = vmatpush.bf16.msra.mxu0 0
        %2108 = vmatpush.bf16.msra.mxu0 0
        %2109 = vmatpush.bf16.msra.mxu0 0
        %2110 = vmatpush.bf16.msra.mxu0 0
        %2111 = vmatpush.bf16.msra.mxu0 %v2099
        %2112 = vmatmul.bf16.gmra.mxu0 %v2102
        %v2113 = vpop.f32.mrf.mxu0
        %v2114 = vadd.f32 0.0, %v2113
        %v2115 = vpop.f32.mrf.mxu0
        %v2116 = vadd.f32 0.0, %v2115
        %2117 = vdwg.mxu0
        %v2120 = vunpack.c.l.b16 %v2050
        %v2121 = vunpack.c.l.b16 %v2051
        %v2122 = vpack.c.b16 %v2121, %v2120
        %v2125 = vunpack.c.l.b16 %v2058
        %v2126 = vunpack.c.l.b16 %v2059
        %v2127 = vpack.c.b16 %v2126, %v2125
        %v2130 = vsel %vm1868, %v2122, 0
        %2132 = vmatpush.bf16.msra.mxu0 0
        %2133 = vmatpush.bf16.msra.mxu0 0
        %2134 = vmatpush.bf16.msra.mxu0 0
        %2135 = vmatpush.bf16.msra.mxu0 0
        %2136 = vmatpush.bf16.msra.mxu0 0
        %2137 = vmatpush.bf16.msra.mxu0 0
        %2138 = vmatpush.bf16.msra.mxu0 0
        %2139 = vmatpush.bf16.msra.mxu0 %v2127
        %2140 = vmatmul.bf16.gmra.mxu0 %v2130
        %v2141 = vpop.f32.mrf.mxu0
        %v2142 = vadd.f32 0.0, %v2141
        %v2143 = vpop.f32.mrf.mxu0
        %v2144 = vadd.f32 0.0, %v2143
        %2145 = vdwg.mxu0
        %v2148 = vunpack.c.l.b16 %v2052
        %v2149 = vunpack.c.l.b16 %v2053
        %v2150 = vpack.c.b16 %v2149, %v2148
        %v2153 = vunpack.c.l.b16 %v2060
        %v2154 = vunpack.c.l.b16 %v2061
        %v2155 = vpack.c.b16 %v2154, %v2153
        %v2158 = vsel %vm1868, %v2150, 0
        %2160 = vmatpush.bf16.msra.mxu0 0
        %2161 = vmatpush.bf16.msra.mxu0 0
        %2162 = vmatpush.bf16.msra.mxu0 0
        %2163 = vmatpush.bf16.msra.mxu0 0
        %2164 = vmatpush.bf16.msra.mxu0 0
        %2165 = vmatpush.bf16.msra.mxu0 0
        %2166 = vmatpush.bf16.msra.mxu0 0
        %2167 = vmatpush.bf16.msra.mxu0 %v2155
        %2168 = vmatmul.bf16.gmra.mxu0 %v2158
        %v2169 = vpop.f32.mrf.mxu0
        %v2170 = vadd.f32 0.0, %v2169
        %v2171 = vpop.f32.mrf.mxu0
        %v2172 = vadd.f32 0.0, %v2171
        %2173 = vdwg.mxu0
        %v2174 = vld [vmem:[#allocation5] sm:$0xff]
        %v2175 = vld [vmem:[#allocation5 + $0x8] sm:$0xff]
        %v2176 = vld [vmem:[#allocation5 + $0x10] sm:$0xff]
        %v2177 = vld [vmem:[#allocation5 + $0x18] sm:$0xff]
        %v2178 = vld [vmem:[#allocation5 + $0x20] sm:$0xff]
        %v2179 = vld [vmem:[#allocation5 + $0x28] sm:$0xff]
        %v2180 = vld [vmem:[#allocation5 + $0x30] sm:$0xff]
        %v2181 = vld [vmem:[#allocation5 + $0x38] sm:$0xff]
        %2183 = vset.pattern.permute.xlu0 0
        %2184 = vperm.xlu0 %2183, %v1910
        %v2185 = vpop.permute.xlu0 %2184
        %2188 = vset.pattern.permute.xlu0 0
        %2189 = vperm.xlu0 %2188, %v1912
        %v2190 = vpop.permute.xlu0 %2189
        %2193 = vset.pattern.permute.xlu0 0
        %2194 = vperm.xlu0 %2193, %v1914
        %v2195 = vpop.permute.xlu0 %2194
        %2198 = vset.pattern.permute.xlu0 0
        %2199 = vperm.xlu0 %2198, %v1916
        %v2200 = vpop.permute.xlu0 %2199
        %2203 = vset.pattern.permute.xlu0 0
        %2204 = vperm.xlu0 %2203, %v1918
        %v2205 = vpop.permute.xlu0 %2204
        %2208 = vset.pattern.permute.xlu0 0
        %2209 = vperm.xlu0 %2208, %v1920
        %v2210 = vpop.permute.xlu0 %2209
        %2213 = vset.pattern.permute.xlu0 0
        %2214 = vperm.xlu0 %2213, %v1922
        %v2215 = vpop.permute.xlu0 %2214
        %2218 = vset.pattern.permute.xlu0 0
        %2219 = vperm.xlu0 %2218, %v1924
        %v2220 = vpop.permute.xlu0 %2219
        %v2222 = vmul.f32 %v2185, %v2174
        %v2223 = vmul.f32 %v2190, %v2175
        %v2224 = vmul.f32 %v2195, %v2176
        %v2225 = vmul.f32 %v2200, %v2177
        %v2226 = vmul.f32 %v2205, %v2178
        %v2227 = vmul.f32 %v2210, %v2179
        %v2228 = vmul.f32 %v2215, %v2180
        %v2229 = vmul.f32 %v2220, %v2181
        %v2230 = vadd.f32 %v2222, %v2086
        %v2231 = vadd.f32 %v2223, %v2088
        %v2232 = vadd.f32 %v2224, %v2114
        %v2233 = vadd.f32 %v2225, %v2116
        %v2234 = vadd.f32 %v2226, %v2142
        %v2235 = vadd.f32 %v2227, %v2144
        %v2236 = vadd.f32 %v2228, %v2170
        %v2237 = vadd.f32 %v2229, %v2172
        %2238 = vst.msk [vmem:[#allocation5] sm:$0xff] %vm1490, %v2230
        %2239 = vst.msk [vmem:[#allocation5 + $0x8] sm:$0xff] %vm1490, %v2231
        %2240 = vst.msk [vmem:[#allocation5 + $0x10] sm:$0xff] %vm1490, %v2232
        %2241 = vst.msk [vmem:[#allocation5 + $0x18] sm:$0xff] %vm1490, %v2233
        %2242 = vst.msk [vmem:[#allocation5 + $0x20] sm:$0xff] %vm1490, %v2234
        %2243 = vst.msk [vmem:[#allocation5 + $0x28] sm:$0xff] %vm1490, %v2235
        %2244 = vst.msk [vmem:[#allocation5 + $0x30] sm:$0xff] %vm1490, %v2236
        %2245 = vst.msk [vmem:[#allocation5 + $0x38] sm:$0xff] %vm1490, %v2237
        %2246 = vst.msk [vmem:[#allocation3] sm:$0xff] %vm2037, %v1893
        %2247 = vst.msk [vmem:[#allocation3 + $0x8] sm:$0xff] %vm2037, %v1894
        %2248 = vst.msk [vmem:[#allocation3 + $0x10] sm:$0xff] %vm2037, %v1895
        %2249 = vst.msk [vmem:[#allocation3 + $0x18] sm:$0xff] %vm2037, %v1896
        %2250 = vst.msk [vmem:[#allocation3 + $0x20] sm:$0xff] %vm2037, %v1897
        %2251 = vst.msk [vmem:[#allocation3 + $0x28] sm:$0xff] %vm2037, %v1898
        %2252 = vst.msk [vmem:[#allocation3 + $0x30] sm:$0xff] %vm2037, %v1899
        %2253 = vst.msk [vmem:[#allocation3 + $0x38] sm:$0xff] %vm2037, %v1900
        // Predicated region
        $region73: #{tpu_custom_call.1} parent=43 // pred_check
          %p2254 = pneg %p411
        $region74: #{tpu_custom_call.1} parent=43 // pred_check_branch
          %2256 = sbr.rel (%p2254) target = $region76
        $region75: #{tpu_custom_call.1} parent=43 // pred_region
          %v2257 = vld [vmem:[#allocation5] sm:$0xff]
          %v2258 = vld [vmem:[#allocation5 + $0x8] sm:$0xff]
          %v2259 = vld [vmem:[#allocation5 + $0x10] sm:$0xff]
          %v2260 = vld [vmem:[#allocation5 + $0x18] sm:$0xff]
          %v2261 = vld [vmem:[#allocation5 + $0x20] sm:$0xff]
          %v2262 = vld [vmem:[#allocation5 + $0x28] sm:$0xff]
          %v2263 = vld [vmem:[#allocation5 + $0x30] sm:$0xff]
          %v2264 = vld [vmem:[#allocation5 + $0x38] sm:$0xff]
          %v2265 = vld [vmem:[#allocation4] sm:$0xff]
          %v2266 = vld [vmem:[#allocation4 + $0x8] sm:$0xff]
          %v2267 = vld [vmem:[#allocation4 + $0x10] sm:$0xff]
          %v2268 = vld [vmem:[#allocation4 + $0x18] sm:$0xff]
          %v2269 = vld [vmem:[#allocation4 + $0x20] sm:$0xff]
          %v2270 = vld [vmem:[#allocation4 + $0x28] sm:$0xff]
          %v2271 = vld [vmem:[#allocation4 + $0x30] sm:$0xff]
          %v2272 = vld [vmem:[#allocation4 + $0x38] sm:$0xff]
          %2274 = vset.pattern.permute.xlu0 0
          %2275 = vperm.xlu0 %2274, %v2265
          %v2276 = vpop.permute.xlu0 %2275
          %2279 = vset.pattern.permute.xlu0 0
          %2280 = vperm.xlu0 %2279, %v2266
          %v2281 = vpop.permute.xlu0 %2280
          %2284 = vset.pattern.permute.xlu0 0
          %2285 = vperm.xlu0 %2284, %v2267
          %v2286 = vpop.permute.xlu0 %2285
          %2289 = vset.pattern.permute.xlu0 0
          %2290 = vperm.xlu0 %2289, %v2268
          %v2291 = vpop.permute.xlu0 %2290
          %2294 = vset.pattern.permute.xlu0 0
          %2295 = vperm.xlu0 %2294, %v2269
          %v2296 = vpop.permute.xlu0 %2295
          %2299 = vset.pattern.permute.xlu0 0
          %2300 = vperm.xlu0 %2299, %v2270
          %v2301 = vpop.permute.xlu0 %2300
          %2304 = vset.pattern.permute.xlu0 0
          %2305 = vperm.xlu0 %2304, %v2271
          %v2306 = vpop.permute.xlu0 %2305
          %2309 = vset.pattern.permute.xlu0 0
          %2310 = vperm.xlu0 %2309, %v2272
          %v2311 = vpop.permute.xlu0 %2310
          %v2313 = vrcp.pop %v2276
          %v2314 = vmul.f32 %v2276, %v2313
          %v2315 = vsub.f32 1.0, %v2314
          %v2316 = vmul.f32 %v2313, %v2315
          %v2317 = vadd.f32 %v2313, %v2316
          %vm2318 = vweird.f32 %v2276
          %vm2319 = vweird.f32 %v2313
          %vm2320 = vmor %vm2318, %vm2319
          %v2321 = vsel %vm2320, %v2313, %v2317
          %v2322 = vand.u32 2147483647, %v2276
          %vm2323 = vcmp.eq.f32.partialorder %v2322, 8.507059e+37
          %v2324 = vand.u32 %v2276, 2147483648
          %v2325 = vor.u32 1.1754944e-38, %v2324
          %v2326 = vsel %vm2323, %v2325, %v2321
          %v2327 = vmul.f32 %v2257, %v2326
          %v2328 = vrcp.pop %v2281
          %v2329 = vmul.f32 %v2281, %v2328
          %v2330 = vsub.f32 1.0, %v2329
          %v2331 = vmul.f32 %v2328, %v2330
          %v2332 = vadd.f32 %v2328, %v2331
          %vm2333 = vweird.f32 %v2281
          %vm2334 = vweird.f32 %v2328
          %vm2335 = vmor %vm2333, %vm2334
          %v2336 = vsel %vm2335, %v2328, %v2332
          %v2337 = vand.u32 2147483647, %v2281
          %vm2338 = vcmp.eq.f32.partialorder %v2337, 8.507059e+37
          %v2339 = vand.u32 %v2281, 2147483648
          %v2340 = vor.u32 1.1754944e-38, %v2339
          %v2341 = vsel %vm2338, %v2340, %v2336
          %v2342 = vmul.f32 %v2258, %v2341
          %v2343 = vrcp.pop %v2286
          %v2344 = vmul.f32 %v2286, %v2343
          %v2345 = vsub.f32 1.0, %v2344
          %v2346 = vmul.f32 %v2343, %v2345
          %v2347 = vadd.f32 %v2343, %v2346
          %vm2348 = vweird.f32 %v2286
          %vm2349 = vweird.f32 %v2343
          %vm2350 = vmor %vm2348, %vm2349
          %v2351 = vsel %vm2350, %v2343, %v2347
          %v2352 = vand.u32 2147483647, %v2286
          %vm2353 = vcmp.eq.f32.partialorder %v2352, 8.507059e+37
          %v2354 = vand.u32 %v2286, 2147483648
          %v2355 = vor.u32 1.1754944e-38, %v2354
          %v2356 = vsel %vm2353, %v2355, %v2351
          %v2357 = vmul.f32 %v2259, %v2356
          %v2358 = vrcp.pop %v2291
          %v2359 = vmul.f32 %v2291, %v2358
          %v2360 = vsub.f32 1.0, %v2359
          %v2361 = vmul.f32 %v2358, %v2360
          %v2362 = vadd.f32 %v2358, %v2361
          %vm2363 = vweird.f32 %v2291
          %vm2364 = vweird.f32 %v2358
          %vm2365 = vmor %vm2363, %vm2364
          %v2366 = vsel %vm2365, %v2358, %v2362
          %v2367 = vand.u32 2147483647, %v2291
          %vm2368 = vcmp.eq.f32.partialorder %v2367, 8.507059e+37
          %v2369 = vand.u32 %v2291, 2147483648
          %v2370 = vor.u32 1.1754944e-38, %v2369
          %v2371 = vsel %vm2368, %v2370, %v2366
          %v2372 = vmul.f32 %v2260, %v2371
          %v2373 = vrcp.pop %v2296
          %v2374 = vmul.f32 %v2296, %v2373
          %v2375 = vsub.f32 1.0, %v2374
          %v2376 = vmul.f32 %v2373, %v2375
          %v2377 = vadd.f32 %v2373, %v2376
          %vm2378 = vweird.f32 %v2296
          %vm2379 = vweird.f32 %v2373
          %vm2380 = vmor %vm2378, %vm2379
          %v2381 = vsel %vm2380, %v2373, %v2377
          %v2382 = vand.u32 2147483647, %v2296
          %vm2383 = vcmp.eq.f32.partialorder %v2382, 8.507059e+37
          %v2384 = vand.u32 %v2296, 2147483648
          %v2385 = vor.u32 1.1754944e-38, %v2384
          %v2386 = vsel %vm2383, %v2385, %v2381
          %v2387 = vmul.f32 %v2261, %v2386
          %v2388 = vrcp.pop %v2301
          %v2389 = vmul.f32 %v2301, %v2388
          %v2390 = vsub.f32 1.0, %v2389
          %v2391 = vmul.f32 %v2388, %v2390
          %v2392 = vadd.f32 %v2388, %v2391
          %vm2393 = vweird.f32 %v2301
          %vm2394 = vweird.f32 %v2388
          %vm2395 = vmor %vm2393, %vm2394
          %v2396 = vsel %vm2395, %v2388, %v2392
          %v2397 = vand.u32 2147483647, %v2301
          %vm2398 = vcmp.eq.f32.partialorder %v2397, 8.507059e+37
          %v2399 = vand.u32 %v2301, 2147483648
          %v2400 = vor.u32 1.1754944e-38, %v2399
          %v2401 = vsel %vm2398, %v2400, %v2396
          %v2402 = vmul.f32 %v2262, %v2401
          %v2403 = vrcp.pop %v2306
          %v2404 = vmul.f32 %v2306, %v2403
          %v2405 = vsub.f32 1.0, %v2404
          %v2406 = vmul.f32 %v2403, %v2405
          %v2407 = vadd.f32 %v2403, %v2406
          %vm2408 = vweird.f32 %v2306
          %vm2409 = vweird.f32 %v2403
          %vm2410 = vmor %vm2408, %vm2409
          %v2411 = vsel %vm2410, %v2403, %v2407
          %v2412 = vand.u32 2147483647, %v2306
          %vm2413 = vcmp.eq.f32.partialorder %v2412, 8.507059e+37
          %v2414 = vand.u32 %v2306, 2147483648
          %v2415 = vor.u32 1.1754944e-38, %v2414
          %v2416 = vsel %vm2413, %v2415, %v2411
          %v2417 = vmul.f32 %v2263, %v2416
          %v2418 = vrcp.pop %v2311
          %v2419 = vmul.f32 %v2311, %v2418
          %v2420 = vsub.f32 1.0, %v2419
          %v2421 = vmul.f32 %v2418, %v2420
          %v2422 = vadd.f32 %v2418, %v2421
          %vm2423 = vweird.f32 %v2311
          %vm2424 = vweird.f32 %v2418
          %vm2425 = vmor %vm2423, %vm2424
          %v2426 = vsel %vm2425, %v2418, %v2422
          %v2427 = vand.u32 2147483647, %v2311
          %vm2428 = vcmp.eq.f32.partialorder %v2427, 8.507059e+37
          %v2429 = vand.u32 %v2311, 2147483648
          %v2430 = vor.u32 1.1754944e-38, %v2429
          %v2431 = vsel %vm2428, %v2430, %v2426
          %v2432 = vmul.f32 %v2264, %v2431
          %v2433 = vpack.c.bf16 %v2327, %v2327
          %v2434 = vpack.c.bf16 %v2342, %v2342
          %v2435 = vpack.c.bf16 %v2357, %v2357
          %v2436 = vpack.c.bf16 %v2372, %v2372
          %v2437 = vpack.c.bf16 %v2387, %v2387
          %v2438 = vpack.c.bf16 %v2402, %v2402
          %v2439 = vpack.c.bf16 %v2417, %v2417
          %v2440 = vpack.c.bf16 %v2432, %v2432
          %v2441 = vld [vmem:[#allocation14] sm:$0xf]
          %s2442 = scalar_lea.vmem [#allocation14], 4
          %v2443 = vld [vmem:[%s2442] sm:$0xf]
          %v2446 = vunpack.c.l.b16 %v2435
          %v2447 = vunpack.c.l.b16 %v2436
          %v2448 = vpack.c.b16 %v2447, %v2446
          %v2450 = vsel %vm1490, %v2448, 0
          %vm2452 = vcmask 1043456
          %v2454 = vsel %vm2452, %v2443, 0
          %2456 = vmatpush.bf16.msra.mxu0 0
          %2457 = vmatpush.bf16.msra.mxu0 0
          %2458 = vmatpush.bf16.msra.mxu0 0
          %2459 = vmatpush.bf16.msra.mxu0 0
          %2460 = vmatpush.bf16.msra.mxu0 0
          %2461 = vmatpush.bf16.msra.mxu0 0
          %2462 = vmatpush.bf16.msra.mxu0 0
          %2463 = vmatpush.bf16.msra.mxu0 %v2454
          %2464 = vmatmul.bf16.gmra.mxu0 %v2450
          %v2465 = vpop.f32.mrf.mxu0
          %v2466 = vadd.f32 0.0, %v2465
          %v2467 = vpop.f32.mrf.mxu0
          %v2468 = vadd.f32 0.0, %v2467
          %2469 = vdwg.mxu0
          %v2472 = vunpack.c.l.b16 %v2433
          %v2473 = vunpack.c.l.b16 %v2434
          %v2474 = vpack.c.b16 %v2473, %v2472
          %v2476 = vsel %vm1490, %v2474, 0
          %v2479 = vsel %vm2452, %v2441, 0
          %2481 = vmatpush.bf16.msra.mxu0 0
          %2482 = vmatpush.bf16.msra.mxu0 0
          %2483 = vmatpush.bf16.msra.mxu0 0
          %2484 = vmatpush.bf16.msra.mxu0 0
          %2485 = vmatpush.bf16.msra.mxu0 0
          %2486 = vmatpush.bf16.msra.mxu0 0
          %2487 = vmatpush.bf16.msra.mxu0 0
          %2488 = vmatpush.bf16.msra.mxu0 %v2479
          %2489 = vmatmul.bf16.gmra.mxu0 %v2476
          %v2490 = vpop.f32.mrf.mxu0
          %v2491 = vadd.f32 %v2466, %v2490
          %v2492 = vpop.f32.mrf.mxu0
          %v2493 = vadd.f32 %v2468, %v2492
          %2494 = vdwg.mxu0
          %s2495 = scalar_lea.vmem [#allocation14], 8
          %v2496 = vld [vmem:[%s2495] sm:$0xf]
          %v2499 = vunpack.c.l.b16 %v2437
          %v2500 = vunpack.c.l.b16 %v2438
          %v2501 = vpack.c.b16 %v2500, %v2499
          %v2503 = vsel %vm1490, %v2501, 0
          %v2506 = vsel %vm2452, %v2496, 0
          %2508 = vmatpush.bf16.msra.mxu0 0
          %2509 = vmatpush.bf16.msra.mxu0 0
          %2510 = vmatpush.bf16.msra.mxu0 0
          %2511 = vmatpush.bf16.msra.mxu0 0
          %2512 = vmatpush.bf16.msra.mxu0 0
          %2513 = vmatpush.bf16.msra.mxu0 0
          %2514 = vmatpush.bf16.msra.mxu0 0
          %2515 = vmatpush.bf16.msra.mxu0 %v2506
          %2516 = vmatmul.bf16.gmra.mxu0 %v2503
          %v2517 = vpop.f32.mrf.mxu0
          %v2518 = vadd.f32 0.0, %v2517
          %v2519 = vpop.f32.mrf.mxu0
          %v2520 = vadd.f32 0.0, %v2519
          %2521 = vdwg.mxu0
          %v2522 = vadd.f32 %v2491, %v2518
          %v2523 = vadd.f32 %v2493, %v2520
          %s2524 = scalar_lea.vmem [#allocation14], 12
          %v2525 = vld [vmem:[%s2524] sm:$0xf]
          %v2528 = vunpack.c.l.b16 %v2439
          %v2529 = vunpack.c.l.b16 %v2440
          %v2530 = vpack.c.b16 %v2529, %v2528
          %v2532 = vsel %vm1490, %v2530, 0
          %v2535 = vsel %vm2452, %v2525, 0
          %2537 = vmatpush.bf16.msra.mxu0 0
          %2538 = vmatpush.bf16.msra.mxu0 0
          %2539 = vmatpush.bf16.msra.mxu0 0
          %2540 = vmatpush.bf16.msra.mxu0 0
          %2541 = vmatpush.bf16.msra.mxu0 0
          %2542 = vmatpush.bf16.msra.mxu0 0
          %2543 = vmatpush.bf16.msra.mxu0 0
          %2544 = vmatpush.bf16.msra.mxu0 %v2535
          %2545 = vmatmul.bf16.gmra.mxu0 %v2532
          %v2546 = vpop.f32.mrf.mxu0
          %v2547 = vadd.f32 0.0, %v2546
          %v2548 = vpop.f32.mrf.mxu0
          %v2549 = vadd.f32 0.0, %v2548
          %2550 = vdwg.mxu0
          %v2551 = vadd.f32 %v2522, %v2547
          %v2552 = vadd.f32 %v2523, %v2549
          %v2553 = vld [vmem:[#allocation15 + $0x2] sm:$0x1]
          %v2554 = vperm.slane %v2553, 0
          %v2555 = vadd.f32 %v2551, %v2554
          %v2556 = vadd.f32 %v2552, %v2554
          %2557 = vst.msk [vmem:[%s406] sm:$0xff] %vm985, %v2555
          %2558 = vst.msk [vmem:[%s406 + $0x8] sm:$0xff] %vm985, %v2556
        $region76: #{tpu_custom_call.1} parent=43 // pred_fallthru
          _
        %s2559 = sand.u32 %s197, 1
        %s2560 = scalar_lea.sflag [#allocation8], %s2559
        %s2561 = sand.u32 %s197, 1
        %s2562 = smul.addr %s2561, 16
        %s2563 = scalar_lea.vmem [#allocation17], %s2562
        // Predicated region
        $region77: #{tpu_custom_call.1} parent=43 // pred_check
          %p2564 = pneg %p207
        $region78: #{tpu_custom_call.1} parent=43 // pred_check_branch
          %2566 = sbr.rel (%p2564) target = $region80
        $region79: #{tpu_custom_call.1} parent=43 // pred_region
          %s2567 = smul.u32 2, %s34
          %2569 = vsyncadd %s2560, 0
          %s2570 = smul.addr %s33, 2
          %s2571 = sadd.s32 %s2567, %s2570
          %s2572 = smul.addr %s2571, 8
          %s2573 = scalar_lea.hbm %s6, %s2572
          %s2574 = sshll.u32 %s2563, 4
          %s2575 = int_to_ptr.vmem [resolvable:$true] %s2574
          %s2576 = sshll.u32 %s2573, 4
          %s2577 = int_to_ptr.hbm [resolvable:$true] %s2576
          %2582 = dma.vmem_to_hbm [thread:$0]  %s2575, 256, %s2577, %s2560, 128, 128, 8
        $region80: #{tpu_custom_call.1} parent=43 // pred_fallthru
          _
      $region44: #{tpu_custom_call.1} parent=5 // pred_fallthru
        _
      %p2583 = scmp.le.s32.totalorder 2, %s23
      // Predicated region
      $region81: #{tpu_custom_call.1} parent=5 // pred_check
        %p2584 = pneg %p2583
      $region82: #{tpu_custom_call.1} parent=5 // pred_check_branch
        %2586 = sbr.rel (%p2584) target = $region84
      $region83: #{tpu_custom_call.1} parent=5 // pred_region
        %s2587 = ssub.s32 %s23, 2
        // Predicated region
        $region85: #{tpu_custom_call.1} parent=83 // pred_check
          %p2588 = pneg %p213
        $region86: #{tpu_custom_call.1} parent=83 // pred_check_branch
          %2590 = sbr.rel (%p2588) target = $region88
        $region87: #{tpu_custom_call.1} parent=83 // pred_region
          %s2591 = sand.u32 %s198, 1
          %s2592 = scalar_lea.sflag [#allocation8], %s2591
          %s2593 = sand.u32 %s198, 1
          %s2594 = smul.addr %s2593, 16
          %s2595 = scalar_lea.vmem [#allocation17], %s2594
          %2597 = dma.done %s2592, 256
        $region88: #{tpu_custom_call.1} parent=83 // pred_fallthru
          _
      $region84: #{tpu_custom_call.1} parent=5 // pred_fallthru
        _
    $region6: #{tpu_custom_call.1} parent=1 // loop_footer
      %s27 = sadd.s32 1, %s23
    $region7: #{tpu_custom_call.1} parent=1 // loop_footer_branch
      %22 = sbr.rel target = $region3
    $region8: #{tpu_custom_call.1} parent=1 // loop_exit
      _
    %2598 = vsyncpa [#allocation7], 1
    %s2599 = scalar_lea.sflag [#allocation7], 1
    %2600 = vsyncpa %s2599, 1
    %2601 = vsyncpa [#allocation10], 1
    %s2602 = scalar_lea.sflag [#allocation10], 1
    %2603 = vsyncpa %s2602, 1
    %2604 = vsyncpa [#allocation13], 1
    %2605 = vsyncpa [#allocation16], 1
    %2606 = vsyncpa [#allocation8], 1
    %s2607 = scalar_lea.sflag [#allocation8], 1
    %2608 = vsyncpa %s2607, 1

// kernel: tpu_custom_call.1
$region0: #{tpu_custom_call.1}
  #allocation0 [shape = 'u32[]', space=smem, size = 0x4, offset = 0x4, fixed_abs, tag = 'smem constant byte address 0x4 - core index']
  #allocation1 [shape = 'u32[72,128]{1,0:T(1,128)}', space=vmem, size = 0x9000, scoped, tag = 'internal scratch']
  #allocation2 [shape = 'f32[4,16,8]{2,1,0:T(8,128)}', space=vmem, size = 0x8000, scoped, tag = 'scratch operand']
  #allocation3 [shape = 'f32[4,16,1]{2,1,0:T(8,128)}', space=vmem, size = 0x8000, scoped, tag = 'scratch operand']
  #allocation4 [shape = 'f32[4,16,1]{2,1,0:T(8,128)}', space=vmem, size = 0x8000, scoped, tag = 'scratch operand']
  #allocation5 [shape = 'f32[4,16,8]{2,1,0:T(8,128)}', space=vmem, size = 0x8000, scoped, tag = 'scratch operand']
  %s0 = inlined_call_operand.hbm [shape: bf16[2,16,32], index: 0, kind: input, shape index: {}]
  %s1 = inlined_call_operand.hbm [shape: bf16[2,16,32], index: 1, kind: input, shape index: {}]
  %s2 = inlined_call_operand.hbm [shape: bf16[32,32], index: 2, kind: input, shape index: {}]
  %s3 = inlined_call_operand.hbm [shape: bf16[32,64], index: 3, kind: input, shape index: {}]
  %s4 = inlined_call_operand.hbm [shape: bf16[4,8,32], index: 4, kind: input, shape index: {}]
  %s5 = inlined_call_operand.hbm [shape: f32[8,64], index: 5, kind: input, shape index: {}]
  %s6 = inlined_call_operand.hbm [shape: f32[2,16,32], index: 6, kind: output, shape index: {}]
  %s7 = sld [smem:[#allocation0]]
  $region89: #{tpu_custom_call.1} parent=0
    _
  %s9 = ssub.s32 1, %s7
  %s10 = scalar_select 0, %s9, %s7
  $region1: #{tpu_custom_call.1} parent=0
    #allocation6 [shape = 'u8[8192]{0}', space=vmem, size = 0x2000, scoped, tag = 'input window, operand 0']
    #allocation7 [shape = 's32[2]{0}', space=sflag, size = 0x8, scoped, tag = 'scoped memory for tpu_custom_call.1']
    #allocation8 [shape = 's32[2]{0}', space=sflag, size = 0x8, scoped, tag = 'scoped memory for tpu_custom_call.1']
    #allocation9 [shape = 'u8[8192]{0}', space=vmem, size = 0x2000, scoped, tag = 'input window, operand 1']
    #allocation10 [shape = 's32[2]{0}', space=sflag, size = 0x8, scoped, tag = 'scoped memory for tpu_custom_call.1']
    #allocation11 [shape = 'u8[8192]{0}', space=vmem, size = 0x2000, scoped, tag = 'input window, operand 2, single buffered']
    #allocation12 [shape = 'u8[8192]{0}', space=vmem, size = 0x2000, scoped, tag = 'input window, operand 3, single buffered']
    #allocation13 [shape = 's32[1]{0}', space=sflag, size = 0x4, scoped, tag = 'scoped memory for tpu_custom_call.1']
    #allocation14 [shape = 'u8[8192]{0}', space=vmem, size = 0x2000, scoped, tag = 'input window, operand 4, single buffered']
    #allocation15 [shape = 'u8[4096]{0}', space=vmem, size = 0x1000, scoped, tag = 'input window, operand 5, single buffered']
    #allocation16 [shape = 's32[1]{0}', space=sflag, size = 0x4, scoped, tag = 'scoped memory for tpu_custom_call.1']
    #allocation17 [shape = 'u8[16384]{0}', space=vmem, size = 0x4000, scoped, tag = 'output window, operand 0']
    %11 = vsyncpa [#allocation7], 0
    %s12 = scalar_lea.sflag [#allocation7], 1
    %13 = vsyncpa %s12, 0
    %14 = vsyncpa [#allocation10], 0
    %s15 = scalar_lea.sflag [#allocation10], 1
    %16 = vsyncpa %s15, 0
    %17 = vsyncpa [#allocation13], 0
    %18 = vsyncpa [#allocation16], 0
    %19 = vsyncpa [#allocation8], 0
    %s20 = scalar_lea.sflag [#allocation8], 1
    %21 = vsyncpa %s20, 0
    loop: start=0, step=1, limit=4
    $region2: #{tpu_custom_call.1} parent=1 // loop_pre_header
      _
    $region3: #{tpu_custom_call.1} parent=1 // loop_header
      %s23 = sphi 0, %s27
      %p24 = scmp.ge.s32.totalorder %s23, 4
      %s30 = sphi 0, %s49
      %s31 = sphi 0, %s45
      %s32 = sphi 0, %s41
      %s33 = sphi 0, %s30
      %s34 = sphi 0, %s31
      %s35 = sphi 0, %s32
      %s36 = sphi 0, %s33
      %s37 = sphi 0, %s34
      %s38 = sphi 0, %s35
      %s54 = sphi 0, %s56
      %s57 = sphi 0, %s54
      %s58 = sphi 0, %s57
      %s74 = sphi 0, %s58
      %s82 = sphi 0, %s84
      %s85 = sphi 0, %s82
      %s86 = sphi 0, %s85
      %s102 = sphi 0, %s86
      %s106 = sphi 0, %s106
      %s108 = sphi 0, %s106
      %s109 = sphi 0, %s108
      %s123 = sphi 0, %s109
      %s127 = sphi 0, %s127
      %s129 = sphi 0, %s127
      %s130 = sphi 0, %s129
      %s144 = sphi 0, %s130
      %s148 = sphi 0, %s148
      %s150 = sphi 0, %s148
      %s151 = sphi 0, %s150
      %s165 = sphi 0, %s151
      %s169 = sphi 0, %s169
      %s171 = sphi 0, %s169
      %s172 = sphi 0, %s171
      %s186 = sphi 0, %s172
      %s194 = sphi 0, %s196
      %s197 = sphi 0, %s194
      %s198 = sphi 0, %s197
      %s214 = sphi 0, %s198
    $region4: #{tpu_custom_call.1} parent=1 // loop_header_branch
      %26 = sbr.rel (%p24) target = $region8
    $region5: #{tpu_custom_call.1} parent=1 // loop_body
      %s28 = ssub.s32 %s23, 1
      %s29 = ssub.s32 %s23, 2
      %s39 = sadd.s32 1, %s32
      %p40 = scmp.ge.s32.totalorder %s39, 1
      %s41 = scalar_select %p40, 0, %s39
      %s42 = sadd.s32 1, %s31
      %s43 = scalar_select %p40, %s42, %s31
      %p44 = scmp.ge.s32.totalorder %s43, 1
      %s45 = scalar_select %p44, 0, %s43
      %s46 = sadd.s32 1, %s30
      %s47 = scalar_select %p44, %s46, %s30
      %p48 = scmp.ge.s32.totalorder %s47, 2
      %s49 = scalar_select %p48, 0, %s47
      %s50 = ssub.s32 %s30, %s49
      %s51 = ssub.s32 %s31, %s45
      %s52 = sor.u32 %s50, %s51
      %p53 = scmp.eq.s32.totalorder %s52, 0
      %s55 = sadd.s32 %s54, 1
      %s56 = scalar_select %p53, %s54, %s55
      %p59 = pneg %p53
      %p60 = scmp.eq.s32.totalorder %s23, 1
      %p61 = por %p59, %p60
      %p62 = scmp.ne.s32.totalorder %s54, %s57
      %p63 = scmp.eq.s32.totalorder %s23, 0
      %p64 = por %p62, %p63
      %p65 = scmp.ne.s32.totalorder %s54, %s57
      %p66 = scmp.eq.s32.totalorder %s28, 1
      %p67 = por %p65, %p66
      %p68 = scmp.ne.s32.totalorder %s57, %s58
      %p69 = scmp.eq.s32.totalorder %s28, 0
      %p70 = por %p68, %p69
      %p71 = scmp.ne.s32.totalorder %s57, %s58
      %p72 = scmp.eq.s32.totalorder %s29, 1
      %p73 = por %p71, %p72
      %p75 = scmp.ne.s32.totalorder %s58, %s74
      %p76 = scmp.eq.s32.totalorder %s29, 0
      %p77 = por %p75, %p76
      %s78 = ssub.s32 %s30, %s49
      %s79 = ssub.s32 %s32, %s41
      %s80 = sor.u32 %s78, %s79
      %p81 = scmp.eq.s32.totalorder %s80, 0
      %s83 = sadd.s32 %s82, 1
      %s84 = scalar_select %p81, %s82, %s83
      %p87 = pneg %p81
      %p88 = scmp.eq.s32.totalorder %s23, 1
      %p89 = por %p87, %p88
      %p90 = scmp.ne.s32.totalorder %s82, %s85
      %p91 = scmp.eq.s32.totalorder %s23, 0
      %p92 = por %p90, %p91
      %p93 = scmp.ne.s32.totalorder %s82, %s85
      %p94 = scmp.eq.s32.totalorder %s28, 1
      %p95 = por %p93, %p94
      %p96 = scmp.ne.s32.totalorder %s85, %s86
      %p97 = scmp.eq.s32.totalorder %s28, 0
      %p98 = por %p96, %p97
      %p99 = scmp.ne.s32.totalorder %s85, %s86
      %p100 = scmp.eq.s32.totalorder %s29, 1
      %p101 = por %p99, %p100
      %p103 = scmp.ne.s32.totalorder %s86, %s102
      %p104 = scmp.eq.s32.totalorder %s29, 0
      %p105 = por %p103, %p104
      %s107 = sadd.s32 %s106, 1
      %p110 = scmp.eq.s32.totalorder %s23, 1
      %p111 = scmp.ne.s32.totalorder %s106, %s108
      %p112 = scmp.eq.s32.totalorder %s23, 0
      %p113 = por %p111, %p112
      %p114 = scmp.ne.s32.totalorder %s106, %s108
      %p115 = scmp.eq.s32.totalorder %s28, 1
      %p116 = por %p114, %p115
      %p117 = scmp.ne.s32.totalorder %s108, %s109
      %p118 = scmp.eq.s32.totalorder %s28, 0
      %p119 = por %p117, %p118
      %p120 = scmp.ne.s32.totalorder %s108, %s109
      %p121 = scmp.eq.s32.totalorder %s29, 1
      %p122 = por %p120, %p121
      %p124 = scmp.ne.s32.totalorder %s109, %s123
      %p125 = scmp.eq.s32.totalorder %s29, 0
      %p126 = por %p124, %p125
      %s128 = sadd.s32 %s127, 1
      %p131 = scmp.eq.s32.totalorder %s23, 1
      %p132 = scmp.ne.s32.totalorder %s127, %s129
      %p133 = scmp.eq.s32.totalorder %s23, 0
      %p134 = por %p132, %p133
      %p135 = scmp.ne.s32.totalorder %s127, %s129
      %p136 = scmp.eq.s32.totalorder %s28, 1
      %p137 = por %p135, %p136
      %p138 = scmp.ne.s32.totalorder %s129, %s130
      %p139 = scmp.eq.s32.totalorder %s28, 0
      %p140 = por %p138, %p139
      %p141 = scmp.ne.s32.totalorder %s129, %s130
      %p142 = scmp.eq.s32.totalorder %s29, 1
      %p143 = por %p141, %p142
      %p145 = scmp.ne.s32.totalorder %s130, %s144
      %p146 = scmp.eq.s32.totalorder %s29, 0
      %p147 = por %p145, %p146
      %s149 = sadd.s32 %s148, 1
      %p152 = scmp.eq.s32.totalorder %s23, 1
      %p153 = scmp.ne.s32.totalorder %s148, %s150
      %p154 = scmp.eq.s32.totalorder %s23, 0
      %p155 = por %p153, %p154
      %p156 = scmp.ne.s32.totalorder %s148, %s150
      %p157 = scmp.eq.s32.totalorder %s28, 1
      %p158 = por %p156, %p157
      %p159 = scmp.ne.s32.totalorder %s150, %s151
      %p160 = scmp.eq.s32.totalorder %s28, 0
      %p161 = por %p159, %p160
      %p162 = scmp.ne.s32.totalorder %s150, %s151
      %p163 = scmp.eq.s32.totalorder %s29, 1
      %p164 = por %p162, %p163
      %p166 = scmp.ne.s32.totalorder %s151, %s165
      %p167 = scmp.eq.s32.totalorder %s29, 0
      %p168 = por %p166, %p167
      %s170 = sadd.s32 %s169, 1
      %p173 = scmp.eq.s32.totalorder %s23, 1
      %p174 = scmp.ne.s32.totalorder %s169, %s171
      %p175 = scmp.eq.s32.totalorder %s23, 0
      %p176 = por %p174, %p175
      %p177 = scmp.ne.s32.totalorder %s169, %s171
      %p178 = scmp.eq.s32.totalorder %s28, 1
      %p179 = por %p177, %p178
      %p180 = scmp.ne.s32.totalorder %s171, %s172
      %p181 = scmp.eq.s32.totalorder %s28, 0
      %p182 = por %p180, %p181
      %p183 = scmp.ne.s32.totalorder %s171, %s172
      %p184 = scmp.eq.s32.totalorder %s29, 1
      %p185 = por %p183, %p184
      %p187 = scmp.ne.s32.totalorder %s172, %s186
      %p188 = scmp.eq.s32.totalorder %s29, 0
      %p189 = por %p187, %p188
      %s190 = ssub.s32 %s30, %s49
      %s191 = ssub.s32 %s31, %s45
      %s192 = sor.u32 %s190, %s191
      %p193 = scmp.eq.s32.totalorder %s192, 0
      %s195 = sadd.s32 %s194, 1
      %s196 = scalar_select %p193, %s194, %s195
      %p199 = pneg %p193
      %p200 = scmp.eq.s32.totalorder %s23, 1
      %p201 = por %p199, %p200
      %p202 = scmp.ne.s32.totalorder %s194, %s197
      %p203 = scmp.eq.s32.totalorder %s23, 0
      %p204 = por %p202, %p203
      %p205 = scmp.ne.s32.totalorder %s194, %s197
      %p206 = scmp.eq.s32.totalorder %s28, 1
      %p207 = por %p205, %p206
      %p208 = scmp.ne.s32.totalorder %s197, %s198
      %p209 = scmp.eq.s32.totalorder %s28, 0
      %p210 = por %p208, %p209
      %p211 = scmp.ne.s32.totalorder %s197, %s198
      %p212 = scmp.eq.s32.totalorder %s29, 1
      %p213 = por %p211, %p212
      %p215 = scmp.ne.s32.totalorder %s198, %s214
      %p216 = scmp.eq.s32.totalorder %s29, 0
      %p217 = por %p215, %p216
      %p218 = scmp.le.s32.totalorder 1, %s23
      %p219 = scmp.lt.s32.totalorder %s23, 3
      %p220 = pnand %p218, %p219
      %p221 = pneg %p220
      // Predicated region
      $region9: #{tpu_custom_call.1} parent=5 // pred_check
        _
      $region10: #{tpu_custom_call.1} parent=5 // pred_check_branch
        %223 = sbr.rel (%p220) target = $region12
      $region11: #{tpu_custom_call.1} parent=5 // pred_region
        %s224 = ssub.s32 %s23, 1
        // Predicated region
        $region13: #{tpu_custom_call.1} parent=11 // pred_check
          %p225 = pneg %p119
        $region14: #{tpu_custom_call.1} parent=11 // pred_check_branch
          %227 = sbr.rel (%p225) target = $region16
        $region15: #{tpu_custom_call.1} parent=11 // pred_region
          %229 = vsyncadd [#allocation10], 0
          %s230 = sshll.u32 %s2, 4
          %s231 = int_to_ptr.hbm [resolvable:$true] %s230
          %s232 = sshll.u32 [#allocation11], 4
          %s233 = int_to_ptr.vmem [resolvable:$true] %s232
          %238 = dma.hbm_to_vmem [thread:$0]  %s231, 256, %s233, [#allocation10], 64, 64, 4
        $region16: #{tpu_custom_call.1} parent=11 // pred_fallthru
          _
        // Predicated region
        $region17: #{tpu_custom_call.1} parent=11 // pred_check
          %p239 = pneg %p140
        $region18: #{tpu_custom_call.1} parent=11 // pred_check_branch
          %241 = sbr.rel (%p239) target = $region20
        $region19: #{tpu_custom_call.1} parent=11 // pred_region
          %243 = vsyncadd [#allocation13], 0
          %s244 = sshll.u32 %s3, 4
          %s245 = int_to_ptr.hbm [resolvable:$true] %s244
          %s246 = sshll.u32 [#allocation12], 4
          %s247 = int_to_ptr.vmem [resolvable:$true] %s246
          %252 = dma.hbm_to_vmem [thread:$0]  %s245, 256, %s247, [#allocation13], 64, 64, 4
        $region20: #{tpu_custom_call.1} parent=11 // pred_fallthru
          _
        // Predicated region
        $region21: #{tpu_custom_call.1} parent=11 // pred_check
          %p253 = pneg %p161
        $region22: #{tpu_custom_call.1} parent=11 // pred_check_branch
          %255 = sbr.rel (%p253) target = $region24
        $region23: #{tpu_custom_call.1} parent=11 // pred_region
          %257 = vsyncadd [#allocation13], 0
          %s258 = sshll.u32 %s4, 4
          %s259 = int_to_ptr.hbm [resolvable:$true] %s258
          %s260 = sshll.u32 [#allocation14], 4
          %s261 = int_to_ptr.vmem [resolvable:$true] %s260
          %266 = dma.hbm_to_vmem [thread:$0]  %s259, 256, %s261, [#allocation13], 64, 64, 4
        $region24: #{tpu_custom_call.1} parent=11 // pred_fallthru
          _
        // Predicated region
        $region25: #{tpu_custom_call.1} parent=11 // pred_check
          %p267 = pneg %p182
        $region26: #{tpu_custom_call.1} parent=11 // pred_check_branch
          %269 = sbr.rel (%p267) target = $region28
        $region27: #{tpu_custom_call.1} parent=11 // pred_region
          %271 = vsyncadd [#allocation16], 0
          %s273 = sshll.u32 %s5, 4
          %s274 = int_to_ptr.hbm [resolvable:$true] %s273
          %s275 = sshll.u32 [#allocation15], 4
          %s276 = int_to_ptr.vmem [resolvable:$true] %s275
          %278 = dma.hbm_to_vmem [thread:$0]  %s274, 128, %s276, [#allocation16]
        $region28: #{tpu_custom_call.1} parent=11 // pred_fallthru
          _
      $region12: #{tpu_custom_call.1} parent=5 // pred_fallthru
        _
      %p279 = scmp.lt.s32.totalorder %s23, 2
      // Predicated region
      $region29: #{tpu_custom_call.1} parent=5 // pred_check
        %p280 = pneg %p279
      $region30: #{tpu_custom_call.1} parent=5 // pred_check_branch
        %282 = sbr.rel (%p280) target = $region32
      $region31: #{tpu_custom_call.1} parent=5 // pred_region
        // Predicated region
        $region33: #{tpu_custom_call.1} parent=31 // pred_check
          %p283 = pneg %p64
        $region34: #{tpu_custom_call.1} parent=31 // pred_check_branch
          %285 = sbr.rel (%p283) target = $region36
        $region35: #{tpu_custom_call.1} parent=31 // pred_region
          %s286 = sand.u32 %s54, 1
          %s287 = scalar_lea.sflag [#allocation7], %s286
          %s288 = sand.u32 %s54, 1
          %s289 = smul.addr %s288, 8
          %s290 = scalar_lea.vmem [#allocation6], %s289
          %s291 = smul.u32 2, %s31
          %293 = vsyncadd %s287, 0
          %s294 = smul.addr %s30, 2
          %s295 = sadd.s32 %s291, %s294
          %s296 = smul.addr %s295, 4
          %s297 = scalar_lea.hbm %s0, %s296
          %s298 = sshll.u32 %s297, 4
          %s299 = int_to_ptr.hbm [resolvable:$true] %s298
          %s300 = sshll.u32 %s290, 4
          %s301 = int_to_ptr.vmem [resolvable:$true] %s300
          %306 = dma.hbm_to_vmem [thread:$0]  %s299, 128, %s301, %s287, 64, 64, 4
        $region36: #{tpu_custom_call.1} parent=31 // pred_fallthru
          _
        // Predicated region
        $region37: #{tpu_custom_call.1} parent=31 // pred_check
          %p307 = pneg %p92
        $region38: #{tpu_custom_call.1} parent=31 // pred_check_branch
          %309 = sbr.rel (%p307) target = $region40
        $region39: #{tpu_custom_call.1} parent=31 // pred_region
          %s310 = sand.u32 %s23, 1
          %s311 = scalar_lea.sflag [#allocation10], %s310
          %s312 = sand.u32 %s82, 1
          %s313 = smul.addr %s312, 8
          %s314 = scalar_lea.vmem [#allocation9], %s313
          %s315 = smul.u32 2, %s32
          %317 = vsyncadd %s311, 0
          %s318 = smul.addr %s30, 2
          %s319 = sadd.s32 %s315, %s318
          %s320 = smul.addr %s319, 4
          %s321 = scalar_lea.hbm %s1, %s320
          %s322 = sshll.u32 %s321, 4
          %s323 = int_to_ptr.hbm [resolvable:$true] %s322
          %s324 = sshll.u32 %s314, 4
          %s325 = int_to_ptr.vmem [resolvable:$true] %s324
          %330 = dma.hbm_to_vmem [thread:$0]  %s323, 128, %s325, %s311, 64, 64, 4
        $region40: #{tpu_custom_call.1} parent=31 // pred_fallthru
          _
      $region32: #{tpu_custom_call.1} parent=5 // pred_fallthru
        _
      %p331 = scmp.le.s32.totalorder 1, %s23
      %p332 = scmp.lt.s32.totalorder %s23, 3
      %p333 = pnand %p331, %p332
      %p334 = pneg %p333
      // Predicated region
      $region41: #{tpu_custom_call.1} parent=5 // pred_check
        _
      $region42: #{tpu_custom_call.1} parent=5 // pred_check_branch
        %336 = sbr.rel (%p333) target = $region44
      $region43: #{tpu_custom_call.1} parent=5 // pred_region
        %s337 = ssub.s32 %s23, 1
        %s338 = sand.u32 %s57, 1
        %s339 = scalar_lea.sflag [#allocation7], %s338
        %s340 = sand.u32 %s57, 1
        %s341 = smul.addr %s340, 8
        %s342 = scalar_lea.vmem [#allocation6], %s341
        // Predicated region
        $region45: #{tpu_custom_call.1} parent=43 // pred_check
          %p343 = pneg %p70
        $region46: #{tpu_custom_call.1} parent=43 // pred_check_branch
          %345 = sbr.rel (%p343) target = $region48
        $region47: #{tpu_custom_call.1} parent=43 // pred_region
          %347 = dma.done %s339, 128
        $region48: #{tpu_custom_call.1} parent=43 // pred_fallthru
          _
        %s348 = sand.u32 %s28, 1
        %s349 = scalar_lea.sflag [#allocation10], %s348
        %s350 = sand.u32 %s85, 1
        %s351 = smul.addr %s350, 8
        %s352 = scalar_lea.vmem [#allocation9], %s351
        // Predicated region
        $region49: #{tpu_custom_call.1} parent=43 // pred_check
          %p353 = pneg %p98
        $region50: #{tpu_custom_call.1} parent=43 // pred_check_branch
          %355 = sbr.rel (%p353) target = $region52
        $region51: #{tpu_custom_call.1} parent=43 // pred_region
          %357 = dma.done %s349, 128
        $region52: #{tpu_custom_call.1} parent=43 // pred_fallthru
          _
        // Predicated region
        $region53: #{tpu_custom_call.1} parent=43 // pred_check
          %p358 = pneg %p119
        $region54: #{tpu_custom_call.1} parent=43 // pred_check_branch
          %360 = sbr.rel (%p358) target = $region56
        $region55: #{tpu_custom_call.1} parent=43 // pred_region
          %362 = dma.done [#allocation10], 256
        $region56: #{tpu_custom_call.1} parent=43 // pred_fallthru
          _
        // Predicated region
        $region57: #{tpu_custom_call.1} parent=43 // pred_check
          %p363 = pneg %p140
        $region58: #{tpu_custom_call.1} parent=43 // pred_check_branch
          %365 = sbr.rel (%p363) target = $region60
        $region59: #{tpu_custom_call.1} parent=43 // pred_region
          %367 = dma.done [#allocation13], 256
        $region60: #{tpu_custom_call.1} parent=43 // pred_fallthru
          _
        // Predicated region
        $region61: #{tpu_custom_call.1} parent=43 // pred_check
          %p368 = pneg %p161
        $region62: #{tpu_custom_call.1} parent=43 // pred_check_branch
          %370 = sbr.rel (%p368) target = $region64
        $region63: #{tpu_custom_call.1} parent=43 // pred_region
          %372 = dma.done [#allocation13], 256
        $region64: #{tpu_custom_call.1} parent=43 // pred_fallthru
          _
        // Predicated region
        $region65: #{tpu_custom_call.1} parent=43 // pred_check
          %p373 = pneg %p182
        $region66: #{tpu_custom_call.1} parent=43 // pred_check_branch
          %375 = sbr.rel (%p373) target = $region68
        $region67: #{tpu_custom_call.1} parent=43 // pred_region
          %377 = dma.done [#allocation16], 128
        $region68: #{tpu_custom_call.1} parent=43 // pred_fallthru
          _
        %s378 = sand.u32 %s57, 1
        %s379 = scalar_lea.sflag [#allocation7], %s378
        %s380 = sand.u32 %s57, 1
        %s381 = smul.addr %s380, 8
        %s382 = scalar_lea.vmem [#allocation6], %s381
        %p383 = pneg %p70
        %p384 = pneg %p67
        %s385 = sand.u32 %s28, 1
        %s386 = scalar_lea.sflag [#allocation10], %s385
        %s387 = sand.u32 %s85, 1
        %s388 = smul.addr %s387, 8
        %s389 = scalar_lea.vmem [#allocation9], %s388
        %p390 = pneg %p98
        %p391 = pneg %p95
        %p392 = pneg %p119
        %p393 = pneg %p116
        %p394 = pneg %p140
        %p395 = pneg %p137
        %p396 = pneg %p161
        %p397 = pneg %p158
        %p398 = pneg %p182
        %p399 = pneg %p179
        %p400 = pneg %p210
        %p401 = pneg %p207
        %s402 = sand.u32 %s197, 1
        %s403 = scalar_lea.sflag [#allocation8], %s402
        %s404 = sand.u32 %s197, 1
        %s405 = smul.addr %s404, 16
        %s406 = scalar_lea.vmem [#allocation17], %s405
        %s407 = smul.u32 2, %s34
        %s408 = smul.u32 2, %s35
        %s409 = smul.u32 2, %s34
        %p411 = scmp.eq.s32.totalorder %s35, 0
        // Predicated region
        $region69: #{tpu_custom_call.1} parent=43 // pred_check
          %p412 = pneg %p411
        $region70: #{tpu_custom_call.1} parent=43 // pred_check_branch
          %414 = sbr.rel (%p412) target = $region72
        $region71: #{tpu_custom_call.1} parent=43 // pred_region
          %v415 = vld [vmem:[%s342] sm:$0xf]
          %v416 = vld [vmem:[%s342 + $0x4] sm:$0xf]
          %v417 = vld [vmem:[#allocation11] sm:$0xf]
          %v418 = vld [vmem:[#allocation11 + $0x4] sm:$0xf]
          %v419 = vld [vmem:[#allocation11 + $0x8] sm:$0xf]
          %v420 = vld [vmem:[#allocation11 + $0xc] sm:$0xf]
          %v421 = vld [vmem:[#allocation15] sm:$0x1]
          %v422 = vperm.slane %v421, 0
          %v425 = vunpack.c.l.b16 %v415
          %v426 = vunpack.c.l.b16 %v416
          %v427 = vpack.c.b16 %v426, %v425
          %v432 = vunpack.c.l.b16 %v417
          %v433 = vunpack.c.l.b16 %v418
          %v434 = vunpack.c.l.b16 %v419
          %v435 = vunpack.c.l.b16 %v420
          %v436 = vpack.c.b16 %v433, %v432
          %v437 = vpack.c.b16 %v435, %v434
          %vm440 = vcmask 261120
          %v442 = vsel %vm440, %v427, 0
          %444 = vmatpush.bf16.msra.mxu0 0
          %445 = vmatpush.bf16.msra.mxu0 0
          %446 = vmatpush.bf16.msra.mxu0 0
          %447 = vmatpush.bf16.msra.mxu0 0
          %448 = vmatpush.bf16.msra.mxu0 0
          %449 = vmatpush.bf16.msra.mxu0 0
          %450 = vmatpush.bf16.msra.mxu0 %v437
          %451 = vmatpush.bf16.msra.mxu0 %v436
          %452 = vmatmul.bf16.gmra.mxu0 %v442
          %v453 = vpop.f32.mrf.mxu0
          %v454 = vadd.f32 %v422, %v453
          %v455 = vpop.f32.mrf.mxu0
          %v456 = vadd.f32 %v422, %v455
          %457 = vdwg.mxu0
          %460 = vrot.lane.b32.xlu0 %v454, 120
          %v461 = vpop.permute.xlu0 %460
          %462 = vrot.lane.b32.xlu0 %v456, 120
          %v463 = vpop.permute.xlu0 %462
          %466 = vrot.lane.b32.xlu0 %v454, 112
          %v467 = vpop.permute.xlu0 %466
          %468 = vrot.lane.b32.xlu0 %v456, 112
          %v469 = vpop.permute.xlu0 %468
          %472 = vrot.lane.b32.xlu0 %v454, 104
          %v473 = vpop.permute.xlu0 %472
          %474 = vrot.lane.b32.xlu0 %v456, 104
          %v475 = vpop.permute.xlu0 %474
          %v478 = vrot.slane %v467, 4
          %vm479 = vcmask 1047556
          %v480 = vsel %vm479, %v478, %v454
          %v481 = vrot.slane %v454, 4
          %v482 = vsel %vm479, %v467, %v481
          %v484 = vunpack.c.l.s4 1983009808
          %v485 = vunpack.c.0.s8 %v484
          %v486 = vperm.slane %v480, %v485
          %v488 = vunpack.c.l.s4 1983009808
          %v489 = vunpack.c.0.s8 %v488
          %v490 = vperm.slane %v482, %v489
          %v491 = vrot.slane %v473, 4
          %v492 = vsel %vm479, %v491, %v461
          %v493 = vrot.slane %v461, 4
          %v494 = vsel %vm479, %v473, %v493
          %v496 = vunpack.c.l.s4 1983009808
          %v497 = vunpack.c.0.s8 %v496
          %v498 = vperm.slane %v492, %v497
          %v500 = vunpack.c.l.s4 1983009808
          %v501 = vunpack.c.0.s8 %v500
          %v502 = vperm.slane %v494, %v501
          %v503 = vrot.slane %v498, 4
          %v504 = vsel %vm479, %v503, %v486
          %v505 = vrot.slane %v486, 4
          %v506 = vsel %vm479, %v498, %v505
          %v508 = vunpack.c.l.s4 1934713408
          %v509 = vunpack.c.0.s8 %v508
          %v510 = vperm.slane %v504, %v509
          %v512 = vunpack.c.l.s4 1934713408
          %v513 = vunpack.c.0.s8 %v512
          %v514 = vperm.slane %v506, %v513
          %v515 = vrot.slane %v502, 4
          %v516 = vsel %vm479, %v515, %v490
          %v517 = vrot.slane %v490, 4
          %v518 = vsel %vm479, %v502, %v517
          %v520 = vunpack.c.l.s4 1934713408
          %v521 = vunpack.c.0.s8 %v520
          %v522 = vperm.slane %v516, %v521
          %v524 = vunpack.c.l.s4 1934713408
          %v525 = vunpack.c.0.s8 %v524
          %v526 = vperm.slane %v518, %v525
          %v527 = vrot.slane %v510, 4
          %v528 = vsel %vm479, 0.0, %v527
          %v529 = vrot.slane %v514, 4
          %v530 = vsel %vm479, 0.0, %v529
          %v531 = vrot.slane %v522, 4
          %v532 = vsel %vm479, 0.0, %v531
          %v533 = vrot.slane %v526, 4
          %v534 = vsel %vm479, 0.0, %v533
          %v535 = vrot.slane %v469, 4
          %v536 = vsel %vm479, %v535, %v456
          %v537 = vrot.slane %v456, 4
          %v538 = vsel %vm479, %v469, %v537
          %v540 = vunpack.c.l.s4 1983009808
          %v541 = vunpack.c.0.s8 %v540
          %v542 = vperm.slane %v536, %v541
          %v544 = vunpack.c.l.s4 1983009808
          %v545 = vunpack.c.0.s8 %v544
          %v546 = vperm.slane %v538, %v545
          %v547 = vrot.slane %v475, 4
          %v548 = vsel %vm479, %v547, %v463
          %v549 = vrot.slane %v463, 4
          %v550 = vsel %vm479, %v475, %v549
          %v552 = vunpack.c.l.s4 1983009808
          %v553 = vunpack.c.0.s8 %v552
          %v554 = vperm.slane %v548, %v553
          %v556 = vunpack.c.l.s4 1983009808
          %v557 = vunpack.c.0.s8 %v556
          %v558 = vperm.slane %v550, %v557
          %v559 = vrot.slane %v554, 4
          %v560 = vsel %vm479, %v559, %v542
          %v561 = vrot.slane %v542, 4
          %v562 = vsel %vm479, %v554, %v561
          %v564 = vunpack.c.l.s4 1934713408
          %v565 = vunpack.c.0.s8 %v564
          %v566 = vperm.slane %v560, %v565
          %v568 = vunpack.c.l.s4 1934713408
          %v569 = vunpack.c.0.s8 %v568
          %v570 = vperm.slane %v562, %v569
          %v571 = vrot.slane %v558, 4
          %v572 = vsel %vm479, %v571, %v546
          %v573 = vrot.slane %v546, 4
          %v574 = vsel %vm479, %v558, %v573
          %v576 = vunpack.c.l.s4 1934713408
          %v577 = vunpack.c.0.s8 %v576
          %v578 = vperm.slane %v572, %v577
          %v580 = vunpack.c.l.s4 1934713408
          %v581 = vunpack.c.0.s8 %v580
          %v582 = vperm.slane %v574, %v581
          %v583 = vrot.slane %v566, 4
          %v584 = vsel %vm479, 0.0, %v583
          %v585 = vrot.slane %v570, 4
          %v586 = vsel %vm479, 0.0, %v585
          %v587 = vrot.slane %v578, 4
          %v588 = vsel %vm479, 0.0, %v587
          %v589 = vrot.slane %v582, 4
          %v590 = vsel %vm479, 0.0, %v589
          %v591 = vsel %vm479, %v529, %v510
          %v593 = vunpack.c.l.s4 1983009808
          %v594 = vunpack.c.0.s8 %v593
          %v595 = vperm.slane %v591, %v594
          %v596 = vrot.slane %v530, 4
          %v597 = vsel %vm479, %v596, %v528
          %v599 = vunpack.c.l.s4 1983009808
          %v600 = vunpack.c.0.s8 %v599
          %v601 = vperm.slane %v597, %v600
          %v602 = vsel %vm479, %v533, %v522
          %v604 = vunpack.c.l.s4 1983009808
          %v605 = vunpack.c.0.s8 %v604
          %v606 = vperm.slane %v602, %v605
          %v607 = vrot.slane %v534, 4
          %v608 = vsel %vm479, %v607, %v532
          %v610 = vunpack.c.l.s4 1983009808
          %v611 = vunpack.c.0.s8 %v610
          %v612 = vperm.slane %v608, %v611
          %v613 = vrot.slane %v601, 4
          %v614 = vsel %vm479, %v613, %v595
          %v615 = vrot.slane %v595, 4
          %v616 = vsel %vm479, %v601, %v615
          %v618 = vunpack.c.l.s4 1934713408
          %v619 = vunpack.c.0.s8 %v618
          %v620 = vperm.slane %v614, %v619
          %v622 = vunpack.c.l.s4 1934713408
          %v623 = vunpack.c.0.s8 %v622
          %v624 = vperm.slane %v616, %v623
          %v625 = vrot.slane %v612, 4
          %v626 = vsel %vm479, %v625, %v606
          %v627 = vrot.slane %v606, 4
          %v628 = vsel %vm479, %v612, %v627
          %v630 = vunpack.c.l.s4 1934713408
          %v631 = vunpack.c.0.s8 %v630
          %v632 = vperm.slane %v626, %v631
          %v634 = vunpack.c.l.s4 1934713408
          %v635 = vunpack.c.0.s8 %v634
          %v636 = vperm.slane %v628, %v635
          %v637 = vrot.slane %v632, 4
          %v638 = vsel %vm479, %v637, %v620
          %v639 = vrot.slane %v620, 4
          %v640 = vsel %vm479, %v632, %v639
          %v641 = vrot.slane %v636, 4
          %v642 = vsel %vm479, %v641, %v624
          %v643 = vrot.slane %v624, 4
          %v644 = vsel %vm479, %v636, %v643
          %v645 = vsel %vm479, %v585, %v566
          %v647 = vunpack.c.l.s4 1983009808
          %v648 = vunpack.c.0.s8 %v647
          %v649 = vperm.slane %v645, %v648
          %v650 = vrot.slane %v586, 4
          %v651 = vsel %vm479, %v650, %v584
          %v653 = vunpack.c.l.s4 1983009808
          %v654 = vunpack.c.0.s8 %v653
          %v655 = vperm.slane %v651, %v654
          %v656 = vsel %vm479, %v589, %v578
          %v658 = vunpack.c.l.s4 1983009808
          %v659 = vunpack.c.0.s8 %v658
          %v660 = vperm.slane %v656, %v659
          %v661 = vrot.slane %v590, 4
          %v662 = vsel %vm479, %v661, %v588
          %v664 = vunpack.c.l.s4 1983009808
          %v665 = vunpack.c.0.s8 %v664
          %v666 = vperm.slane %v662, %v665
          %v667 = vrot.slane %v655, 4
          %v668 = vsel %vm479, %v667, %v649
          %v669 = vrot.slane %v649, 4
          %v670 = vsel %vm479, %v655, %v669
          %v672 = vunpack.c.l.s4 1934713408
          %v673 = vunpack.c.0.s8 %v672
          %v674 = vperm.slane %v668, %v673
          %v676 = vunpack.c.l.s4 1934713408
          %v677 = vunpack.c.0.s8 %v676
          %v678 = vperm.slane %v670, %v677
          %v679 = vrot.slane %v666, 4
          %v680 = vsel %vm479, %v679, %v660
          %v681 = vrot.slane %v660, 4
          %v682 = vsel %vm479, %v666, %v681
          %v684 = vunpack.c.l.s4 1934713408
          %v685 = vunpack.c.0.s8 %v684
          %v686 = vperm.slane %v680, %v685
          %v688 = vunpack.c.l.s4 1934713408
          %v689 = vunpack.c.0.s8 %v688
          %v690 = vperm.slane %v682, %v689
          %v691 = vrot.slane %v686, 4
          %v692 = vsel %vm479, %v691, %v674
          %v693 = vrot.slane %v674, 4
          %v694 = vsel %vm479, %v686, %v693
          %v695 = vrot.slane %v690, 4
          %v696 = vsel %vm479, %v695, %v678
          %v697 = vrot.slane %v678, 4
          %v698 = vsel %vm479, %v690, %v697
          %v699 = vld [vmem:[#allocation15 + $0x3] sm:$0x1]
          %v700 = vld [vmem:[#allocation15 + $0x4] sm:$0x1]
          %vm701 = vcmask 64512
          %v702 = vsel %vm701, %v638, 0.0
          %703 = vadd.xlane.f32.xlu0 %v702
          %v704 = vpop.xlane.xlu0 %703
          %v705 = vsel %vm701, %v692, 0.0
          %706 = vadd.xlane.f32.xlu0 %v705
          %v707 = vpop.xlane.xlu0 %706
          %v708 = vsel %vm701, %v640, 0.0
          %709 = vadd.xlane.f32.xlu0 %v708
          %v710 = vpop.xlane.xlu0 %709
          %v711 = vsel %vm701, %v694, 0.0
          %712 = vadd.xlane.f32.xlu0 %v711
          %v713 = vpop.xlane.xlu0 %712
          %v714 = vsel %vm701, %v642, 0.0
          %715 = vadd.xlane.f32.xlu0 %v714
          %v716 = vpop.xlane.xlu0 %715
          %v717 = vsel %vm701, %v696, 0.0
          %718 = vadd.xlane.f32.xlu0 %v717
          %v719 = vpop.xlane.xlu0 %718
          %v720 = vsel %vm701, %v644, 0.0
          %721 = vadd.xlane.f32.xlu0 %v720
          %v722 = vpop.xlane.xlu0 %721
          %v723 = vsel %vm701, %v698, 0.0
          %724 = vadd.xlane.f32.xlu0 %v723
          %v725 = vpop.xlane.xlu0 %724
          %v726 = vrcp.pop 8.0
          %v727 = vmul.f32 8.0, %v726
          %v728 = vsub.f32 1.0, %v727
          %v729 = vmul.f32 %v726, %v728
          %v730 = vadd.f32 %v726, %v729
          %vm731 = vweird.f32 %v726
          %v732 = vsel %vm731, %v726, %v730
          %v733 = vmul.f32 %v704, %v732
          %v734 = vmul.f32 %v707, %v732
          %v735 = vmul.f32 %v710, %v732
          %v736 = vmul.f32 %v713, %v732
          %v737 = vmul.f32 %v716, %v732
          %v738 = vmul.f32 %v719, %v732
          %v739 = vmul.f32 %v722, %v732
          %v740 = vmul.f32 %v725, %v732
          %v741 = vmul.f32 %v638, %v638
          %v742 = vmul.f32 %v692, %v692
          %v743 = vmul.f32 %v640, %v640
          %v744 = vmul.f32 %v694, %v694
          %v745 = vmul.f32 %v642, %v642
          %v746 = vmul.f32 %v696, %v696
          %v747 = vmul.f32 %v644, %v644
          %v748 = vmul.f32 %v698, %v698
          %v749 = vsel %vm701, %v741, 0.0
          %750 = vadd.xlane.f32.xlu0 %v749
          %v751 = vpop.xlane.xlu0 %750
          %v752 = vsel %vm701, %v742, 0.0
          %753 = vadd.xlane.f32.xlu0 %v752
          %v754 = vpop.xlane.xlu0 %753
          %v755 = vsel %vm701, %v743, 0.0
          %756 = vadd.xlane.f32.xlu0 %v755
          %v757 = vpop.xlane.xlu0 %756
          %v758 = vsel %vm701, %v744, 0.0
          %759 = vadd.xlane.f32.xlu0 %v758
          %v760 = vpop.xlane.xlu0 %759
          %v761 = vsel %vm701, %v745, 0.0
          %762 = vadd.xlane.f32.xlu0 %v761
          %v763 = vpop.xlane.xlu0 %762
          %v764 = vsel %vm701, %v746, 0.0
          %765 = vadd.xlane.f32.xlu0 %v764
          %v766 = vpop.xlane.xlu0 %765
          %v767 = vsel %vm701, %v747, 0.0
          %768 = vadd.xlane.f32.xlu0 %v767
          %v769 = vpop.xlane.xlu0 %768
          %v770 = vsel %vm701, %v748, 0.0
          %771 = vadd.xlane.f32.xlu0 %v770
          %v772 = vpop.xlane.xlu0 %771
          %v773 = vmul.f32 %v751, %v732
          %v774 = vmul.f32 %v754, %v732
          %v775 = vmul.f32 %v757, %v732
          %v776 = vmul.f32 %v760, %v732
          %v777 = vmul.f32 %v763, %v732
          %v778 = vmul.f32 %v766, %v732
          %v779 = vmul.f32 %v769, %v732
          %v780 = vmul.f32 %v772, %v732
          %v781 = vmul.f32 %v733, %v733
          %v782 = vmul.f32 %v734, %v734
          %v783 = vmul.f32 %v735, %v735
          %v784 = vmul.f32 %v736, %v736
          %v785 = vmul.f32 %v737, %v737
          %v786 = vmul.f32 %v738, %v738
          %v787 = vmul.f32 %v739, %v739
          %v788 = vmul.f32 %v740, %v740
          %v789 = vsub.f32 %v773, %v781
          %v790 = vsub.f32 %v774, %v782
          %v791 = vsub.f32 %v775, %v783
          %v792 = vsub.f32 %v776, %v784
          %v793 = vsub.f32 %v777, %v785
          %v794 = vsub.f32 %v778, %v786
          %v795 = vsub.f32 %v779, %v787
          %v796 = vsub.f32 %v780, %v788
          %v797 = vmax.f32 %v789, 0.0
          %v798 = vmax.f32 %v790, 0.0
          %v799 = vmax.f32 %v791, 0.0
          %v800 = vmax.f32 %v792, 0.0
          %v801 = vmax.f32 %v793, 0.0
          %v802 = vmax.f32 %v794, 0.0
          %v803 = vmax.f32 %v795, 0.0
          %v804 = vmax.f32 %v796, 0.0
          %v805 = vsub.f32 %v638, %v733
          %v806 = vsub.f32 %v692, %v734
          %v807 = vsub.f32 %v640, %v735
          %v808 = vsub.f32 %v694, %v736
          %v809 = vsub.f32 %v642, %v737
          %v810 = vsub.f32 %v696, %v738
          %v811 = vsub.f32 %v644, %v739
          %v812 = vsub.f32 %v698, %v740
          %v813 = vadd.f32 %v797, 1e-05
          %v814 = vadd.f32 %v798, 1e-05
          %v815 = vadd.f32 %v799, 1e-05
          %v816 = vadd.f32 %v800, 1e-05
          %v817 = vadd.f32 %v801, 1e-05
          %v818 = vadd.f32 %v802, 1e-05
          %v819 = vadd.f32 %v803, 1e-05
          %v820 = vadd.f32 %v804, 1e-05
          %v821 = vrsqrt.pop %v813
          %v822 = vmul.f32 %v821, %v813
          %v823 = vmul.f32 %v822, %v821
          %v824 = vmul.f32 0.5, %v823
          %v825 = vsub.f32 1.5, %v824
          %v826 = vmul.f32 %v821, %v825
          %vm827 = vweird.f32 %v813
          %vm828 = vweird.f32 %v821
          %vm829 = vmor %vm827, %vm828
          %v830 = vsel %vm829, %v821, %v826
          %v831 = vrsqrt.pop %v814
          %v832 = vmul.f32 %v831, %v814
          %v833 = vmul.f32 %v832, %v831
          %v834 = vmul.f32 0.5, %v833
          %v835 = vsub.f32 1.5, %v834
          %v836 = vmul.f32 %v831, %v835
          %vm837 = vweird.f32 %v814
          %vm838 = vweird.f32 %v831
          %vm839 = vmor %vm837, %vm838
          %v840 = vsel %vm839, %v831, %v836
          %v841 = vrsqrt.pop %v815
          %v842 = vmul.f32 %v841, %v815
          %v843 = vmul.f32 %v842, %v841
          %v844 = vmul.f32 0.5, %v843
          %v845 = vsub.f32 1.5, %v844
          %v846 = vmul.f32 %v841, %v845
          %vm847 = vweird.f32 %v815
          %vm848 = vweird.f32 %v841
          %vm849 = vmor %vm847, %vm848
          %v850 = vsel %vm849, %v841, %v846
          %v851 = vrsqrt.pop %v816
          %v852 = vmul.f32 %v851, %v816
          %v853 = vmul.f32 %v852, %v851
          %v854 = vmul.f32 0.5, %v853
          %v855 = vsub.f32 1.5, %v854
          %v856 = vmul.f32 %v851, %v855
          %vm857 = vweird.f32 %v816
          %vm858 = vweird.f32 %v851
          %vm859 = vmor %vm857, %vm858
          %v860 = vsel %vm859, %v851, %v856
          %v861 = vrsqrt.pop %v817
          %v862 = vmul.f32 %v861, %v817
          %v863 = vmul.f32 %v862, %v861
          %v864 = vmul.f32 0.5, %v863
          %v865 = vsub.f32 1.5, %v864
          %v866 = vmul.f32 %v861, %v865
          %vm867 = vweird.f32 %v817
          %vm868 = vweird.f32 %v861
          %vm869 = vmor %vm867, %vm868
          %v870 = vsel %vm869, %v861, %v866
          %v871 = vrsqrt.pop %v818
          %v872 = vmul.f32 %v871, %v818
          %v873 = vmul.f32 %v872, %v871
          %v874 = vmul.f32 0.5, %v873
          %v875 = vsub.f32 1.5, %v874
          %v876 = vmul.f32 %v871, %v875
          %vm877 = vweird.f32 %v818
          %vm878 = vweird.f32 %v871
          %vm879 = vmor %vm877, %vm878
          %v880 = vsel %vm879, %v871, %v876
          %v881 = vrsqrt.pop %v819
          %v882 = vmul.f32 %v881, %v819
          %v883 = vmul.f32 %v882, %v881
          %v884 = vmul.f32 0.5, %v883
          %v885 = vsub.f32 1.5, %v884
          %v886 = vmul.f32 %v881, %v885
          %vm887 = vweird.f32 %v819
          %vm888 = vweird.f32 %v881
          %vm889 = vmor %vm887, %vm888
          %v890 = vsel %vm889, %v881, %v886
          %v891 = vrsqrt.pop %v820
          %v892 = vmul.f32 %v891, %v820
          %v893 = vmul.f32 %v892, %v891
          %v894 = vmul.f32 0.5, %v893
          %v895 = vsub.f32 1.5, %v894
          %v896 = vmul.f32 %v891, %v895
          %vm897 = vweird.f32 %v820
          %vm898 = vweird.f32 %v891
          %vm899 = vmor %vm897, %vm898
          %v900 = vsel %vm899, %v891, %v896
          %v901 = vmul.f32 %v805, %v830
          %v902 = vmul.f32 %v806, %v840
          %v903 = vmul.f32 %v807, %v850
          %v904 = vmul.f32 %v808, %v860
          %v905 = vmul.f32 %v809, %v870
          %v906 = vmul.f32 %v810, %v880
          %v907 = vmul.f32 %v811, %v890
          %v908 = vmul.f32 %v812, %v900
          %v909 = vperm.slane %v699, 0
          %v910 = vmul.f32 %v901, %v909
          %v911 = vmul.f32 %v902, %v909
          %v912 = vmul.f32 %v903, %v909
          %v913 = vmul.f32 %v904, %v909
          %v914 = vmul.f32 %v905, %v909
          %v915 = vmul.f32 %v906, %v909
          %v916 = vmul.f32 %v907, %v909
          %v917 = vmul.f32 %v908, %v909
          %v918 = vperm.slane %v700, 0
          %v919 = vadd.f32 %v910, %v918
          %v920 = vadd.f32 %v911, %v918
          %v921 = vadd.f32 %v912, %v918
          %v922 = vadd.f32 %v913, %v918
          %v923 = vadd.f32 %v914, %v918
          %v924 = vadd.f32 %v915, %v918
          %v925 = vadd.f32 %v916, %v918
          %v926 = vadd.f32 %v917, %v918
          %927 = vst.msk [vmem:[#allocation2] sm:$0xff] %vm701, %v919
          %928 = vst.msk [vmem:[#allocation2 + $0x8] sm:$0xff] %vm701, %v920
          %929 = vst.msk [vmem:[#allocation2 + $0x10] sm:$0xff] %vm701, %v921
          %930 = vst.msk [vmem:[#allocation2 + $0x18] sm:$0xff] %vm701, %v922
          %931 = vst.msk [vmem:[#allocation2 + $0x20] sm:$0xff] %vm701, %v923
          %932 = vst.msk [vmem:[#allocation2 + $0x28] sm:$0xff] %vm701, %v924
          %933 = vst.msk [vmem:[#allocation2 + $0x30] sm:$0xff] %vm701, %v925
          %934 = vst.msk [vmem:[#allocation2 + $0x38] sm:$0xff] %vm701, %v926
          %vm935 = vcmask 7168
          %936 = vst.msk [vmem:[#allocation3] sm:$0xff] %vm935, -inf
          %937 = vst.msk [vmem:[#allocation3 + $0x8] sm:$0xff] %vm935, -inf
          %938 = vst.msk [vmem:[#allocation3 + $0x10] sm:$0xff] %vm935, -inf
          %939 = vst.msk [vmem:[#allocation3 + $0x18] sm:$0xff] %vm935, -inf
          %940 = vst.msk [vmem:[#allocation3 + $0x20] sm:$0xff] %vm935, -inf
          %941 = vst.msk [vmem:[#allocation3 + $0x28] sm:$0xff] %vm935, -inf
          %942 = vst.msk [vmem:[#allocation3 + $0x30] sm:$0xff] %vm935, -inf
          %943 = vst.msk [vmem:[#allocation3 + $0x38] sm:$0xff] %vm935, -inf
          %944 = vst.msk [vmem:[#allocation4] sm:$0xff] %vm935, 0.0
          %945 = vst.msk [vmem:[#allocation4 + $0x8] sm:$0xff] %vm935, 0.0
          %946 = vst.msk [vmem:[#allocation4 + $0x10] sm:$0xff] %vm935, 0.0
          %947 = vst.msk [vmem:[#allocation4 + $0x18] sm:$0xff] %vm935, 0.0
          %948 = vst.msk [vmem:[#allocation4 + $0x20] sm:$0xff] %vm935, 0.0
          %949 = vst.msk [vmem:[#allocation4 + $0x28] sm:$0xff] %vm935, 0.0
          %950 = vst.msk [vmem:[#allocation4 + $0x30] sm:$0xff] %vm935, 0.0
          %951 = vst.msk [vmem:[#allocation4 + $0x38] sm:$0xff] %vm935, 0.0
          %952 = vst.msk [vmem:[#allocation5] sm:$0xff] %vm701, 0.0
          %953 = vst.msk [vmem:[#allocation5 + $0x8] sm:$0xff] %vm701, 0.0
          %954 = vst.msk [vmem:[#allocation5 + $0x10] sm:$0xff] %vm701, 0.0
          %955 = vst.msk [vmem:[#allocation5 + $0x18] sm:$0xff] %vm701, 0.0
          %956 = vst.msk [vmem:[#allocation5 + $0x20] sm:$0xff] %vm701, 0.0
          %957 = vst.msk [vmem:[#allocation5 + $0x28] sm:$0xff] %vm701, 0.0
          %958 = vst.msk [vmem:[#allocation5 + $0x30] sm:$0xff] %vm701, 0.0
          %959 = vst.msk [vmem:[#allocation5 + $0x38] sm:$0xff] %vm701, 0.0
        $region72: #{tpu_custom_call.1} parent=43 // pred_fallthru
          _
        %v960 = vld [vmem:[%s352] sm:$0xf]
        %v961 = vld [vmem:[%s352 + $0x4] sm:$0xf]
        %v962 = vld [vmem:[#allocation12] sm:$0xf]
        %v963 = vld [vmem:[#allocation12 + $0x4] sm:$0xf]
        %v964 = vld [vmem:[#allocation12 + $0x8] sm:$0xf]
        %v965 = vld [vmem:[#allocation12 + $0xc] sm:$0xf]
        %v966 = vld [vmem:[#allocation15 + $0x1] sm:$0x1]
        %v967 = vperm.slane %v966, 0
        %v970 = vunpack.c.l.b16 %v960
        %v971 = vunpack.c.l.b16 %v961
        %v972 = vpack.c.b16 %v971, %v970
        %v977 = vunpack.c.l.b16 %v962
        %v978 = vunpack.c.l.b16 %v963
        %v979 = vunpack.c.l.b16 %v964
        %v980 = vunpack.c.l.b16 %v965
        %v981 = vpack.c.b16 %v978, %v977
        %v982 = vpack.c.b16 %v980, %v979
        %vm985 = vcmask 261120
        %v987 = vsel %vm985, %v972, 0
        %989 = vmatpush.bf16.msra.mxu0 0
        %990 = vmatpush.bf16.msra.mxu0 0
        %991 = vmatpush.bf16.msra.mxu0 0
        %992 = vmatpush.bf16.msra.mxu0 0
        %993 = vmatpush.bf16.msra.mxu0 0
        %994 = vmatpush.bf16.msra.mxu0 0
        %995 = vmatpush.bf16.msra.mxu0 %v982
        %996 = vmatpush.bf16.msra.mxu0 %v981
        %997 = vmatmul.bf16.gmra.mxu0 %v987
        %v998 = vpop.f32.mrf.mxu0
        %v999 = vadd.f32 %v967, %v998
        %v1000 = vpop.f32.mrf.mxu0
        %v1001 = vadd.f32 %v967, %v1000
        %1002 = vdwg.mxu0
        %1005 = vrot.lane.b32.xlu0 %v999, 120
        %v1006 = vpop.permute.xlu0 %1005
        %1007 = vrot.lane.b32.xlu0 %v1001, 120
        %v1008 = vpop.permute.xlu0 %1007
        %1011 = vrot.lane.b32.xlu0 %v999, 112
        %v1012 = vpop.permute.xlu0 %1011
        %1013 = vrot.lane.b32.xlu0 %v1001, 112
        %v1014 = vpop.permute.xlu0 %1013
        %1017 = vrot.lane.b32.xlu0 %v999, 104
        %v1018 = vpop.permute.xlu0 %1017
        %1019 = vrot.lane.b32.xlu0 %v1001, 104
        %v1020 = vpop.permute.xlu0 %1019
        %v1023 = vrot.slane %v1012, 4
        %vm1024 = vcmask 1047556
        %v1025 = vsel %vm1024, %v1023, %v999
        %v1026 = vrot.slane %v999, 4
        %v1027 = vsel %vm1024, %v1012, %v1026
        %v1029 = vunpack.c.l.s4 1983009808
        %v1030 = vunpack.c.0.s8 %v1029
        %v1031 = vperm.slane %v1025, %v1030
        %v1033 = vunpack.c.l.s4 1983009808
        %v1034 = vunpack.c.0.s8 %v1033
        %v1035 = vperm.slane %v1027, %v1034
        %v1036 = vrot.slane %v1018, 4
        %v1037 = vsel %vm1024, %v1036, %v1006
        %v1038 = vrot.slane %v1006, 4
        %v1039 = vsel %vm1024, %v1018, %v1038
        %v1041 = vunpack.c.l.s4 1983009808
        %v1042 = vunpack.c.0.s8 %v1041
        %v1043 = vperm.slane %v1037, %v1042
        %v1045 = vunpack.c.l.s4 1983009808
        %v1046 = vunpack.c.0.s8 %v1045
        %v1047 = vperm.slane %v1039, %v1046
        %v1048 = vrot.slane %v1043, 4
        %v1049 = vsel %vm1024, %v1048, %v1031
        %v1050 = vrot.slane %v1031, 4
        %v1051 = vsel %vm1024, %v1043, %v1050
        %v1053 = vunpack.c.l.s4 1934713408
        %v1054 = vunpack.c.0.s8 %v1053
        %v1055 = vperm.slane %v1049, %v1054
        %v1057 = vunpack.c.l.s4 1934713408
        %v1058 = vunpack.c.0.s8 %v1057
        %v1059 = vperm.slane %v1051, %v1058
        %v1060 = vrot.slane %v1047, 4
        %v1061 = vsel %vm1024, %v1060, %v1035
        %v1062 = vrot.slane %v1035, 4
        %v1063 = vsel %vm1024, %v1047, %v1062
        %v1065 = vunpack.c.l.s4 1934713408
        %v1066 = vunpack.c.0.s8 %v1065
        %v1067 = vperm.slane %v1061, %v1066
        %v1069 = vunpack.c.l.s4 1934713408
        %v1070 = vunpack.c.0.s8 %v1069
        %v1071 = vperm.slane %v1063, %v1070
        %v1072 = vrot.slane %v1055, 4
        %v1073 = vsel %vm1024, 0.0, %v1072
        %v1074 = vrot.slane %v1059, 4
        %v1075 = vsel %vm1024, 0.0, %v1074
        %v1076 = vrot.slane %v1067, 4
        %v1077 = vsel %vm1024, 0.0, %v1076
        %v1078 = vrot.slane %v1071, 4
        %v1079 = vsel %vm1024, 0.0, %v1078
        %v1080 = vrot.slane %v1014, 4
        %v1081 = vsel %vm1024, %v1080, %v1001
        %v1082 = vrot.slane %v1001, 4
        %v1083 = vsel %vm1024, %v1014, %v1082
        %v1085 = vunpack.c.l.s4 1983009808
        %v1086 = vunpack.c.0.s8 %v1085
        %v1087 = vperm.slane %v1081, %v1086
        %v1089 = vunpack.c.l.s4 1983009808
        %v1090 = vunpack.c.0.s8 %v1089
        %v1091 = vperm.slane %v1083, %v1090
        %v1092 = vrot.slane %v1020, 4
        %v1093 = vsel %vm1024, %v1092, %v1008
        %v1094 = vrot.slane %v1008, 4
        %v1095 = vsel %vm1024, %v1020, %v1094
        %v1097 = vunpack.c.l.s4 1983009808
        %v1098 = vunpack.c.0.s8 %v1097
        %v1099 = vperm.slane %v1093, %v1098
        %v1101 = vunpack.c.l.s4 1983009808
        %v1102 = vunpack.c.0.s8 %v1101
        %v1103 = vperm.slane %v1095, %v1102
        %v1104 = vrot.slane %v1099, 4
        %v1105 = vsel %vm1024, %v1104, %v1087
        %v1106 = vrot.slane %v1087, 4
        %v1107 = vsel %vm1024, %v1099, %v1106
        %v1109 = vunpack.c.l.s4 1934713408
        %v1110 = vunpack.c.0.s8 %v1109
        %v1111 = vperm.slane %v1105, %v1110
        %v1113 = vunpack.c.l.s4 1934713408
        %v1114 = vunpack.c.0.s8 %v1113
        %v1115 = vperm.slane %v1107, %v1114
        %v1116 = vrot.slane %v1103, 4
        %v1117 = vsel %vm1024, %v1116, %v1091
        %v1118 = vrot.slane %v1091, 4
        %v1119 = vsel %vm1024, %v1103, %v1118
        %v1121 = vunpack.c.l.s4 1934713408
        %v1122 = vunpack.c.0.s8 %v1121
        %v1123 = vperm.slane %v1117, %v1122
        %v1125 = vunpack.c.l.s4 1934713408
        %v1126 = vunpack.c.0.s8 %v1125
        %v1127 = vperm.slane %v1119, %v1126
        %v1128 = vrot.slane %v1111, 4
        %v1129 = vsel %vm1024, 0.0, %v1128
        %v1130 = vrot.slane %v1115, 4
        %v1131 = vsel %vm1024, 0.0, %v1130
        %v1132 = vrot.slane %v1123, 4
        %v1133 = vsel %vm1024, 0.0, %v1132
        %v1134 = vrot.slane %v1127, 4
        %v1135 = vsel %vm1024, 0.0, %v1134
        %v1136 = vsel %vm1024, %v1074, %v1055
        %v1138 = vunpack.c.l.s4 1983009808
        %v1139 = vunpack.c.0.s8 %v1138
        %v1140 = vperm.slane %v1136, %v1139
        %v1141 = vrot.slane %v1075, 4
        %v1142 = vsel %vm1024, %v1141, %v1073
        %v1144 = vunpack.c.l.s4 1983009808
        %v1145 = vunpack.c.0.s8 %v1144
        %v1146 = vperm.slane %v1142, %v1145
        %v1147 = vsel %vm1024, %v1078, %v1067
        %v1149 = vunpack.c.l.s4 1983009808
        %v1150 = vunpack.c.0.s8 %v1149
        %v1151 = vperm.slane %v1147, %v1150
        %v1152 = vrot.slane %v1079, 4
        %v1153 = vsel %vm1024, %v1152, %v1077
        %v1155 = vunpack.c.l.s4 1983009808
        %v1156 = vunpack.c.0.s8 %v1155
        %v1157 = vperm.slane %v1153, %v1156
        %v1158 = vrot.slane %v1146, 4
        %v1159 = vsel %vm1024, %v1158, %v1140
        %v1160 = vrot.slane %v1140, 4
        %v1161 = vsel %vm1024, %v1146, %v1160
        %v1163 = vunpack.c.l.s4 1934713408
        %v1164 = vunpack.c.0.s8 %v1163
        %v1165 = vperm.slane %v1159, %v1164
        %v1167 = vunpack.c.l.s4 1934713408
        %v1168 = vunpack.c.0.s8 %v1167
        %v1169 = vperm.slane %v1161, %v1168
        %v1170 = vrot.slane %v1157, 4
        %v1171 = vsel %vm1024, %v1170, %v1151
        %v1172 = vrot.slane %v1151, 4
        %v1173 = vsel %vm1024, %v1157, %v1172
        %v1175 = vunpack.c.l.s4 1934713408
        %v1176 = vunpack.c.0.s8 %v1175
        %v1177 = vperm.slane %v1171, %v1176
        %v1179 = vunpack.c.l.s4 1934713408
        %v1180 = vunpack.c.0.s8 %v1179
        %v1181 = vperm.slane %v1173, %v1180
        %v1182 = vrot.slane %v1177, 4
        %v1183 = vsel %vm1024, %v1182, %v1165
        %v1184 = vrot.slane %v1165, 4
        %v1185 = vsel %vm1024, %v1177, %v1184
        %v1186 = vrot.slane %v1181, 4
        %v1187 = vsel %vm1024, %v1186, %v1169
        %v1188 = vrot.slane %v1169, 4
        %v1189 = vsel %vm1024, %v1181, %v1188
        %v1190 = vsel %vm1024, %v1130, %v1111
        %v1192 = vunpack.c.l.s4 1983009808
        %v1193 = vunpack.c.0.s8 %v1192
        %v1194 = vperm.slane %v1190, %v1193
        %v1195 = vrot.slane %v1131, 4
        %v1196 = vsel %vm1024, %v1195, %v1129
        %v1198 = vunpack.c.l.s4 1983009808
        %v1199 = vunpack.c.0.s8 %v1198
        %v1200 = vperm.slane %v1196, %v1199
        %v1201 = vsel %vm1024, %v1134, %v1123
        %v1203 = vunpack.c.l.s4 1983009808
        %v1204 = vunpack.c.0.s8 %v1203
        %v1205 = vperm.slane %v1201, %v1204
        %v1206 = vrot.slane %v1135, 4
        %v1207 = vsel %vm1024, %v1206, %v1133
        %v1209 = vunpack.c.l.s4 1983009808
        %v1210 = vunpack.c.0.s8 %v1209
        %v1211 = vperm.slane %v1207, %v1210
        %v1212 = vrot.slane %v1200, 4
        %v1213 = vsel %vm1024, %v1212, %v1194
        %v1214 = vrot.slane %v1194, 4
        %v1215 = vsel %vm1024, %v1200, %v1214
        %v1217 = vunpack.c.l.s4 1934713408
        %v1218 = vunpack.c.0.s8 %v1217
        %v1219 = vperm.slane %v1213, %v1218
        %v1221 = vunpack.c.l.s4 1934713408
        %v1222 = vunpack.c.0.s8 %v1221
        %v1223 = vperm.slane %v1215, %v1222
        %v1224 = vrot.slane %v1211, 4
        %v1225 = vsel %vm1024, %v1224, %v1205
        %v1226 = vrot.slane %v1205, 4
        %v1227 = vsel %vm1024, %v1211, %v1226
        %v1229 = vunpack.c.l.s4 1934713408
        %v1230 = vunpack.c.0.s8 %v1229
        %v1231 = vperm.slane %v1225, %v1230
        %v1233 = vunpack.c.l.s4 1934713408
        %v1234 = vunpack.c.0.s8 %v1233
        %v1235 = vperm.slane %v1227, %v1234
        %v1236 = vrot.slane %v1231, 4
        %v1237 = vsel %vm1024, %v1236, %v1219
        %v1238 = vrot.slane %v1219, 4
        %v1239 = vsel %vm1024, %v1231, %v1238
        %v1240 = vrot.slane %v1235, 4
        %v1241 = vsel %vm1024, %v1240, %v1223
        %v1242 = vrot.slane %v1223, 4
        %v1243 = vsel %vm1024, %v1235, %v1242
        %1244 = vrot.lane.b32.xlu0 %v999, 96
        %v1245 = vpop.permute.xlu0 %1244
        %1246 = vrot.lane.b32.xlu0 %v1001, 96
        %v1247 = vpop.permute.xlu0 %1246
        %1248 = vrot.lane.b32.xlu0 %v1006, 96
        %v1249 = vpop.permute.xlu0 %1248
        %1250 = vrot.lane.b32.xlu0 %v1008, 96
        %v1251 = vpop.permute.xlu0 %1250
        %1252 = vrot.lane.b32.xlu0 %v1012, 96
        %v1253 = vpop.permute.xlu0 %1252
        %1254 = vrot.lane.b32.xlu0 %v1014, 96
        %v1255 = vpop.permute.xlu0 %1254
        %1256 = vrot.lane.b32.xlu0 %v1018, 96
        %v1257 = vpop.permute.xlu0 %1256
        %1258 = vrot.lane.b32.xlu0 %v1020, 96
        %v1259 = vpop.permute.xlu0 %1258
        %v1268 = vrot.slane %v1253, 4
        %v1269 = vsel %vm1024, %v1268, %v1245
        %v1270 = vrot.slane %v1245, 4
        %v1271 = vsel %vm1024, %v1253, %v1270
        %v1273 = vunpack.c.l.s4 1983009808
        %v1274 = vunpack.c.0.s8 %v1273
        %v1275 = vperm.slane %v1269, %v1274
        %v1277 = vunpack.c.l.s4 1983009808
        %v1278 = vunpack.c.0.s8 %v1277
        %v1279 = vperm.slane %v1271, %v1278
        %v1280 = vrot.slane %v1257, 4
        %v1281 = vsel %vm1024, %v1280, %v1249
        %v1282 = vrot.slane %v1249, 4
        %v1283 = vsel %vm1024, %v1257, %v1282
        %v1285 = vunpack.c.l.s4 1983009808
        %v1286 = vunpack.c.0.s8 %v1285
        %v1287 = vperm.slane %v1281, %v1286
        %v1289 = vunpack.c.l.s4 1983009808
        %v1290 = vunpack.c.0.s8 %v1289
        %v1291 = vperm.slane %v1283, %v1290
        %v1292 = vrot.slane %v1287, 4
        %v1293 = vsel %vm1024, %v1292, %v1275
        %v1294 = vrot.slane %v1275, 4
        %v1295 = vsel %vm1024, %v1287, %v1294
        %v1297 = vunpack.c.l.s4 1934713408
        %v1298 = vunpack.c.0.s8 %v1297
        %v1299 = vperm.slane %v1293, %v1298
        %v1301 = vunpack.c.l.s4 1934713408
        %v1302 = vunpack.c.0.s8 %v1301
        %v1303 = vperm.slane %v1295, %v1302
        %v1304 = vrot.slane %v1291, 4
        %v1305 = vsel %vm1024, %v1304, %v1279
        %v1306 = vrot.slane %v1279, 4
        %v1307 = vsel %vm1024, %v1291, %v1306
        %v1309 = vunpack.c.l.s4 1934713408
        %v1310 = vunpack.c.0.s8 %v1309
        %v1311 = vperm.slane %v1305, %v1310
        %v1313 = vunpack.c.l.s4 1934713408
        %v1314 = vunpack.c.0.s8 %v1313
        %v1315 = vperm.slane %v1307, %v1314
        %v1316 = vrot.slane %v1299, 4
        %v1317 = vsel %vm1024, 0.0, %v1316
        %v1318 = vrot.slane %v1303, 4
        %v1319 = vsel %vm1024, 0.0, %v1318
        %v1320 = vrot.slane %v1311, 4
        %v1321 = vsel %vm1024, 0.0, %v1320
        %v1322 = vrot.slane %v1315, 4
        %v1323 = vsel %vm1024, 0.0, %v1322
        %v1324 = vrot.slane %v1255, 4
        %v1325 = vsel %vm1024, %v1324, %v1247
        %v1326 = vrot.slane %v1247, 4
        %v1327 = vsel %vm1024, %v1255, %v1326
        %v1329 = vunpack.c.l.s4 1983009808
        %v1330 = vunpack.c.0.s8 %v1329
        %v1331 = vperm.slane %v1325, %v1330
        %v1333 = vunpack.c.l.s4 1983009808
        %v1334 = vunpack.c.0.s8 %v1333
        %v1335 = vperm.slane %v1327, %v1334
        %v1336 = vrot.slane %v1259, 4
        %v1337 = vsel %vm1024, %v1336, %v1251
        %v1338 = vrot.slane %v1251, 4
        %v1339 = vsel %vm1024, %v1259, %v1338
        %v1341 = vunpack.c.l.s4 1983009808
        %v1342 = vunpack.c.0.s8 %v1341
        %v1343 = vperm.slane %v1337, %v1342
        %v1345 = vunpack.c.l.s4 1983009808
        %v1346 = vunpack.c.0.s8 %v1345
        %v1347 = vperm.slane %v1339, %v1346
        %v1348 = vrot.slane %v1343, 4
        %v1349 = vsel %vm1024, %v1348, %v1331
        %v1350 = vrot.slane %v1331, 4
        %v1351 = vsel %vm1024, %v1343, %v1350
        %v1353 = vunpack.c.l.s4 1934713408
        %v1354 = vunpack.c.0.s8 %v1353
        %v1355 = vperm.slane %v1349, %v1354
        %v1357 = vunpack.c.l.s4 1934713408
        %v1358 = vunpack.c.0.s8 %v1357
        %v1359 = vperm.slane %v1351, %v1358
        %v1360 = vrot.slane %v1347, 4
        %v1361 = vsel %vm1024, %v1360, %v1335
        %v1362 = vrot.slane %v1335, 4
        %v1363 = vsel %vm1024, %v1347, %v1362
        %v1365 = vunpack.c.l.s4 1934713408
        %v1366 = vunpack.c.0.s8 %v1365
        %v1367 = vperm.slane %v1361, %v1366
        %v1369 = vunpack.c.l.s4 1934713408
        %v1370 = vunpack.c.0.s8 %v1369
        %v1371 = vperm.slane %v1363, %v1370
        %v1372 = vrot.slane %v1355, 4
        %v1373 = vsel %vm1024, 0.0, %v1372
        %v1374 = vrot.slane %v1359, 4
        %v1375 = vsel %vm1024, 0.0, %v1374
        %v1376 = vrot.slane %v1367, 4
        %v1377 = vsel %vm1024, 0.0, %v1376
        %v1378 = vrot.slane %v1371, 4
        %v1379 = vsel %vm1024, 0.0, %v1378
        %v1380 = vsel %vm1024, %v1318, %v1299
        %v1382 = vunpack.c.l.s4 1983009808
        %v1383 = vunpack.c.0.s8 %v1382
        %v1384 = vperm.slane %v1380, %v1383
        %v1385 = vrot.slane %v1319, 4
        %v1386 = vsel %vm1024, %v1385, %v1317
        %v1388 = vunpack.c.l.s4 1983009808
        %v1389 = vunpack.c.0.s8 %v1388
        %v1390 = vperm.slane %v1386, %v1389
        %v1391 = vsel %vm1024, %v1322, %v1311
        %v1393 = vunpack.c.l.s4 1983009808
        %v1394 = vunpack.c.0.s8 %v1393
        %v1395 = vperm.slane %v1391, %v1394
        %v1396 = vrot.slane %v1323, 4
        %v1397 = vsel %vm1024, %v1396, %v1321
        %v1399 = vunpack.c.l.s4 1983009808
        %v1400 = vunpack.c.0.s8 %v1399
        %v1401 = vperm.slane %v1397, %v1400
        %v1402 = vrot.slane %v1390, 4
        %v1403 = vsel %vm1024, %v1402, %v1384
        %v1404 = vrot.slane %v1384, 4
        %v1405 = vsel %vm1024, %v1390, %v1404
        %v1407 = vunpack.c.l.s4 1934713408
        %v1408 = vunpack.c.0.s8 %v1407
        %v1409 = vperm.slane %v1403, %v1408
        %v1411 = vunpack.c.l.s4 1934713408
        %v1412 = vunpack.c.0.s8 %v1411
        %v1413 = vperm.slane %v1405, %v1412
        %v1414 = vrot.slane %v1401, 4
        %v1415 = vsel %vm1024, %v1414, %v1395
        %v1416 = vrot.slane %v1395, 4
        %v1417 = vsel %vm1024, %v1401, %v1416
        %v1419 = vunpack.c.l.s4 1934713408
        %v1420 = vunpack.c.0.s8 %v1419
        %v1421 = vperm.slane %v1415, %v1420
        %v1423 = vunpack.c.l.s4 1934713408
        %v1424 = vunpack.c.0.s8 %v1423
        %v1425 = vperm.slane %v1417, %v1424
        %v1426 = vrot.slane %v1421, 4
        %v1427 = vsel %vm1024, %v1426, %v1409
        %v1428 = vrot.slane %v1409, 4
        %v1429 = vsel %vm1024, %v1421, %v1428
        %v1430 = vrot.slane %v1425, 4
        %v1431 = vsel %vm1024, %v1430, %v1413
        %v1432 = vrot.slane %v1413, 4
        %v1433 = vsel %vm1024, %v1425, %v1432
        %v1434 = vsel %vm1024, %v1374, %v1355
        %v1436 = vunpack.c.l.s4 1983009808
        %v1437 = vunpack.c.0.s8 %v1436
        %v1438 = vperm.slane %v1434, %v1437
        %v1439 = vrot.slane %v1375, 4
        %v1440 = vsel %vm1024, %v1439, %v1373
        %v1442 = vunpack.c.l.s4 1983009808
        %v1443 = vunpack.c.0.s8 %v1442
        %v1444 = vperm.slane %v1440, %v1443
        %v1445 = vsel %vm1024, %v1378, %v1367
        %v1447 = vunpack.c.l.s4 1983009808
        %v1448 = vunpack.c.0.s8 %v1447
        %v1449 = vperm.slane %v1445, %v1448
        %v1450 = vrot.slane %v1379, 4
        %v1451 = vsel %vm1024, %v1450, %v1377
        %v1453 = vunpack.c.l.s4 1983009808
        %v1454 = vunpack.c.0.s8 %v1453
        %v1455 = vperm.slane %v1451, %v1454
        %v1456 = vrot.slane %v1444, 4
        %v1457 = vsel %vm1024, %v1456, %v1438
        %v1458 = vrot.slane %v1438, 4
        %v1459 = vsel %vm1024, %v1444, %v1458
        %v1461 = vunpack.c.l.s4 1934713408
        %v1462 = vunpack.c.0.s8 %v1461
        %v1463 = vperm.slane %v1457, %v1462
        %v1465 = vunpack.c.l.s4 1934713408
        %v1466 = vunpack.c.0.s8 %v1465
        %v1467 = vperm.slane %v1459, %v1466
        %v1468 = vrot.slane %v1455, 4
        %v1469 = vsel %vm1024, %v1468, %v1449
        %v1470 = vrot.slane %v1449, 4
        %v1471 = vsel %vm1024, %v1455, %v1470
        %v1473 = vunpack.c.l.s4 1934713408
        %v1474 = vunpack.c.0.s8 %v1473
        %v1475 = vperm.slane %v1469, %v1474
        %v1477 = vunpack.c.l.s4 1934713408
        %v1478 = vunpack.c.0.s8 %v1477
        %v1479 = vperm.slane %v1471, %v1478
        %v1480 = vrot.slane %v1475, 4
        %v1481 = vsel %vm1024, %v1480, %v1463
        %v1482 = vrot.slane %v1463, 4
        %v1483 = vsel %vm1024, %v1475, %v1482
        %v1484 = vrot.slane %v1479, 4
        %v1485 = vsel %vm1024, %v1484, %v1467
        %v1486 = vrot.slane %v1467, 4
        %v1487 = vsel %vm1024, %v1479, %v1486
        %v1488 = vld [vmem:[#allocation15 + $0x5] sm:$0x1]
        %v1489 = vld [vmem:[#allocation15 + $0x6] sm:$0x1]
        %vm1490 = vcmask 64512
        %v1491 = vsel %vm1490, %v1183, 0.0
        %1492 = vadd.xlane.f32.xlu0 %v1491
        %v1493 = vpop.xlane.xlu0 %1492
        %v1494 = vsel %vm1490, %v1237, 0.0
        %1495 = vadd.xlane.f32.xlu0 %v1494
        %v1496 = vpop.xlane.xlu0 %1495
        %v1497 = vsel %vm1490, %v1185, 0.0
        %1498 = vadd.xlane.f32.xlu0 %v1497
        %v1499 = vpop.xlane.xlu0 %1498
        %v1500 = vsel %vm1490, %v1239, 0.0
        %1501 = vadd.xlane.f32.xlu0 %v1500
        %v1502 = vpop.xlane.xlu0 %1501
        %v1503 = vsel %vm1490, %v1187, 0.0
        %1504 = vadd.xlane.f32.xlu0 %v1503
        %v1505 = vpop.xlane.xlu0 %1504
        %v1506 = vsel %vm1490, %v1241, 0.0
        %1507 = vadd.xlane.f32.xlu0 %v1506
        %v1508 = vpop.xlane.xlu0 %1507
        %v1509 = vsel %vm1490, %v1189, 0.0
        %1510 = vadd.xlane.f32.xlu0 %v1509
        %v1511 = vpop.xlane.xlu0 %1510
        %v1512 = vsel %vm1490, %v1243, 0.0
        %1513 = vadd.xlane.f32.xlu0 %v1512
        %v1514 = vpop.xlane.xlu0 %1513
        %v1515 = vrcp.pop 8.0
        %v1516 = vmul.f32 8.0, %v1515
        %v1517 = vsub.f32 1.0, %v1516
        %v1518 = vmul.f32 %v1515, %v1517
        %v1519 = vadd.f32 %v1515, %v1518
        %vm1520 = vweird.f32 %v1515
        %v1521 = vsel %vm1520, %v1515, %v1519
        %v1522 = vmul.f32 %v1493, %v1521
        %v1523 = vmul.f32 %v1496, %v1521
        %v1524 = vmul.f32 %v1499, %v1521
        %v1525 = vmul.f32 %v1502, %v1521
        %v1526 = vmul.f32 %v1505, %v1521
        %v1527 = vmul.f32 %v1508, %v1521
        %v1528 = vmul.f32 %v1511, %v1521
        %v1529 = vmul.f32 %v1514, %v1521
        %v1530 = vmul.f32 %v1183, %v1183
        %v1531 = vmul.f32 %v1237, %v1237
        %v1532 = vmul.f32 %v1185, %v1185
        %v1533 = vmul.f32 %v1239, %v1239
        %v1534 = vmul.f32 %v1187, %v1187
        %v1535 = vmul.f32 %v1241, %v1241
        %v1536 = vmul.f32 %v1189, %v1189
        %v1537 = vmul.f32 %v1243, %v1243
        %v1538 = vsel %vm1490, %v1530, 0.0
        %1539 = vadd.xlane.f32.xlu0 %v1538
        %v1540 = vpop.xlane.xlu0 %1539
        %v1541 = vsel %vm1490, %v1531, 0.0
        %1542 = vadd.xlane.f32.xlu0 %v1541
        %v1543 = vpop.xlane.xlu0 %1542
        %v1544 = vsel %vm1490, %v1532, 0.0
        %1545 = vadd.xlane.f32.xlu0 %v1544
        %v1546 = vpop.xlane.xlu0 %1545
        %v1547 = vsel %vm1490, %v1533, 0.0
        %1548 = vadd.xlane.f32.xlu0 %v1547
        %v1549 = vpop.xlane.xlu0 %1548
        %v1550 = vsel %vm1490, %v1534, 0.0
        %1551 = vadd.xlane.f32.xlu0 %v1550
        %v1552 = vpop.xlane.xlu0 %1551
        %v1553 = vsel %vm1490, %v1535, 0.0
        %1554 = vadd.xlane.f32.xlu0 %v1553
        %v1555 = vpop.xlane.xlu0 %1554
        %v1556 = vsel %vm1490, %v1536, 0.0
        %1557 = vadd.xlane.f32.xlu0 %v1556
        %v1558 = vpop.xlane.xlu0 %1557
        %v1559 = vsel %vm1490, %v1537, 0.0
        %1560 = vadd.xlane.f32.xlu0 %v1559
        %v1561 = vpop.xlane.xlu0 %1560
        %v1562 = vmul.f32 %v1540, %v1521
        %v1563 = vmul.f32 %v1543, %v1521
        %v1564 = vmul.f32 %v1546, %v1521
        %v1565 = vmul.f32 %v1549, %v1521
        %v1566 = vmul.f32 %v1552, %v1521
        %v1567 = vmul.f32 %v1555, %v1521
        %v1568 = vmul.f32 %v1558, %v1521
        %v1569 = vmul.f32 %v1561, %v1521
        %v1570 = vmul.f32 %v1522, %v1522
        %v1571 = vmul.f32 %v1523, %v1523
        %v1572 = vmul.f32 %v1524, %v1524
        %v1573 = vmul.f32 %v1525, %v1525
        %v1574 = vmul.f32 %v1526, %v1526
        %v1575 = vmul.f32 %v1527, %v1527
        %v1576 = vmul.f32 %v1528, %v1528
        %v1577 = vmul.f32 %v1529, %v1529
        %v1578 = vsub.f32 %v1562, %v1570
        %v1579 = vsub.f32 %v1563, %v1571
        %v1580 = vsub.f32 %v1564, %v1572
        %v1581 = vsub.f32 %v1565, %v1573
        %v1582 = vsub.f32 %v1566, %v1574
        %v1583 = vsub.f32 %v1567, %v1575
        %v1584 = vsub.f32 %v1568, %v1576
        %v1585 = vsub.f32 %v1569, %v1577
        %v1586 = vmax.f32 %v1578, 0.0
        %v1587 = vmax.f32 %v1579, 0.0
        %v1588 = vmax.f32 %v1580, 0.0
        %v1589 = vmax.f32 %v1581, 0.0
        %v1590 = vmax.f32 %v1582, 0.0
        %v1591 = vmax.f32 %v1583, 0.0
        %v1592 = vmax.f32 %v1584, 0.0
        %v1593 = vmax.f32 %v1585, 0.0
        %v1594 = vsub.f32 %v1183, %v1522
        %v1595 = vsub.f32 %v1237, %v1523
        %v1596 = vsub.f32 %v1185, %v1524
        %v1597 = vsub.f32 %v1239, %v1525
        %v1598 = vsub.f32 %v1187, %v1526
        %v1599 = vsub.f32 %v1241, %v1527
        %v1600 = vsub.f32 %v1189, %v1528
        %v1601 = vsub.f32 %v1243, %v1529
        %v1602 = vadd.f32 %v1586, 1e-05
        %v1603 = vadd.f32 %v1587, 1e-05
        %v1604 = vadd.f32 %v1588, 1e-05
        %v1605 = vadd.f32 %v1589, 1e-05
        %v1606 = vadd.f32 %v1590, 1e-05
        %v1607 = vadd.f32 %v1591, 1e-05
        %v1608 = vadd.f32 %v1592, 1e-05
        %v1609 = vadd.f32 %v1593, 1e-05
        %v1610 = vrsqrt.pop %v1602
        %v1611 = vmul.f32 %v1610, %v1602
        %v1612 = vmul.f32 %v1611, %v1610
        %v1613 = vmul.f32 0.5, %v1612
        %v1614 = vsub.f32 1.5, %v1613
        %v1615 = vmul.f32 %v1610, %v1614
        %vm1616 = vweird.f32 %v1602
        %vm1617 = vweird.f32 %v1610
        %vm1618 = vmor %vm1616, %vm1617
        %v1619 = vsel %vm1618, %v1610, %v1615
        %v1620 = vrsqrt.pop %v1603
        %v1621 = vmul.f32 %v1620, %v1603
        %v1622 = vmul.f32 %v1621, %v1620
        %v1623 = vmul.f32 0.5, %v1622
        %v1624 = vsub.f32 1.5, %v1623
        %v1625 = vmul.f32 %v1620, %v1624
        %vm1626 = vweird.f32 %v1603
        %vm1627 = vweird.f32 %v1620
        %vm1628 = vmor %vm1626, %vm1627
        %v1629 = vsel %vm1628, %v1620, %v1625
        %v1630 = vrsqrt.pop %v1604
        %v1631 = vmul.f32 %v1630, %v1604
        %v1632 = vmul.f32 %v1631, %v1630
        %v1633 = vmul.f32 0.5, %v1632
        %v1634 = vsub.f32 1.5, %v1633
        %v1635 = vmul.f32 %v1630, %v1634
        %vm1636 = vweird.f32 %v1604
        %vm1637 = vweird.f32 %v1630
        %vm1638 = vmor %vm1636, %vm1637
        %v1639 = vsel %vm1638, %v1630, %v1635
        %v1640 = vrsqrt.pop %v1605
        %v1641 = vmul.f32 %v1640, %v1605
        %v1642 = vmul.f32 %v1641, %v1640
        %v1643 = vmul.f32 0.5, %v1642
        %v1644 = vsub.f32 1.5, %v1643
        %v1645 = vmul.f32 %v1640, %v1644
        %vm1646 = vweird.f32 %v1605
        %vm1647 = vweird.f32 %v1640
        %vm1648 = vmor %vm1646, %vm1647
        %v1649 = vsel %vm1648, %v1640, %v1645
        %v1650 = vrsqrt.pop %v1606
        %v1651 = vmul.f32 %v1650, %v1606
        %v1652 = vmul.f32 %v1651, %v1650
        %v1653 = vmul.f32 0.5, %v1652
        %v1654 = vsub.f32 1.5, %v1653
        %v1655 = vmul.f32 %v1650, %v1654
        %vm1656 = vweird.f32 %v1606
        %vm1657 = vweird.f32 %v1650
        %vm1658 = vmor %vm1656, %vm1657
        %v1659 = vsel %vm1658, %v1650, %v1655
        %v1660 = vrsqrt.pop %v1607
        %v1661 = vmul.f32 %v1660, %v1607
        %v1662 = vmul.f32 %v1661, %v1660
        %v1663 = vmul.f32 0.5, %v1662
        %v1664 = vsub.f32 1.5, %v1663
        %v1665 = vmul.f32 %v1660, %v1664
        %vm1666 = vweird.f32 %v1607
        %vm1667 = vweird.f32 %v1660
        %vm1668 = vmor %vm1666, %vm1667
        %v1669 = vsel %vm1668, %v1660, %v1665
        %v1670 = vrsqrt.pop %v1608
        %v1671 = vmul.f32 %v1670, %v1608
        %v1672 = vmul.f32 %v1671, %v1670
        %v1673 = vmul.f32 0.5, %v1672
        %v1674 = vsub.f32 1.5, %v1673
        %v1675 = vmul.f32 %v1670, %v1674
        %vm1676 = vweird.f32 %v1608
        %vm1677 = vweird.f32 %v1670
        %vm1678 = vmor %vm1676, %vm1677
        %v1679 = vsel %vm1678, %v1670, %v1675
        %v1680 = vrsqrt.pop %v1609
        %v1681 = vmul.f32 %v1680, %v1609
        %v1682 = vmul.f32 %v1681, %v1680
        %v1683 = vmul.f32 0.5, %v1682
        %v1684 = vsub.f32 1.5, %v1683
        %v1685 = vmul.f32 %v1680, %v1684
        %vm1686 = vweird.f32 %v1609
        %vm1687 = vweird.f32 %v1680
        %vm1688 = vmor %vm1686, %vm1687
        %v1689 = vsel %vm1688, %v1680, %v1685
        %v1690 = vmul.f32 %v1594, %v1619
        %v1691 = vmul.f32 %v1595, %v1629
        %v1692 = vmul.f32 %v1596, %v1639
        %v1693 = vmul.f32 %v1597, %v1649
        %v1694 = vmul.f32 %v1598, %v1659
        %v1695 = vmul.f32 %v1599, %v1669
        %v1696 = vmul.f32 %v1600, %v1679
        %v1697 = vmul.f32 %v1601, %v1689
        %v1698 = vperm.slane %v1488, 0
        %v1699 = vmul.f32 %v1690, %v1698
        %v1700 = vmul.f32 %v1691, %v1698
        %v1701 = vmul.f32 %v1692, %v1698
        %v1702 = vmul.f32 %v1693, %v1698
        %v1703 = vmul.f32 %v1694, %v1698
        %v1704 = vmul.f32 %v1695, %v1698
        %v1705 = vmul.f32 %v1696, %v1698
        %v1706 = vmul.f32 %v1697, %v1698
        %v1707 = vperm.slane %v1489, 0
        %v1708 = vadd.f32 %v1699, %v1707
        %v1709 = vadd.f32 %v1700, %v1707
        %v1710 = vadd.f32 %v1701, %v1707
        %v1711 = vadd.f32 %v1702, %v1707
        %v1712 = vadd.f32 %v1703, %v1707
        %v1713 = vadd.f32 %v1704, %v1707
        %v1714 = vadd.f32 %v1705, %v1707
        %v1715 = vadd.f32 %v1706, %v1707
        %v1716 = vld [vmem:[#allocation2] sm:$0xff]
        %v1717 = vld [vmem:[#allocation2 + $0x8] sm:$0xff]
        %v1718 = vld [vmem:[#allocation2 + $0x10] sm:$0xff]
        %v1719 = vld [vmem:[#allocation2 + $0x18] sm:$0xff]
        %v1720 = vld [vmem:[#allocation2 + $0x20] sm:$0xff]
        %v1721 = vld [vmem:[#allocation2 + $0x28] sm:$0xff]
        %v1722 = vld [vmem:[#allocation2 + $0x30] sm:$0xff]
        %v1723 = vld [vmem:[#allocation2 + $0x38] sm:$0xff]
        %v1724 = vpack.c.bf16 %v1716, %v1716
        %v1725 = vpack.c.bf16 %v1717, %v1717
        %v1726 = vpack.c.bf16 %v1718, %v1718
        %v1727 = vpack.c.bf16 %v1719, %v1719
        %v1728 = vpack.c.bf16 %v1720, %v1720
        %v1729 = vpack.c.bf16 %v1721, %v1721
        %v1730 = vpack.c.bf16 %v1722, %v1722
        %v1731 = vpack.c.bf16 %v1723, %v1723
        %v1732 = vpack.c.bf16 %v1708, %v1708
        %v1733 = vpack.c.bf16 %v1709, %v1709
        %v1734 = vpack.c.bf16 %v1710, %v1710
        %v1735 = vpack.c.bf16 %v1711, %v1711
        %v1736 = vpack.c.bf16 %v1712, %v1712
        %v1737 = vpack.c.bf16 %v1713, %v1713
        %v1738 = vpack.c.bf16 %v1714, %v1714
        %v1739 = vpack.c.bf16 %v1715, %v1715
        %v1742 = vunpack.c.l.b16 %v1724
        %v1743 = vunpack.c.l.b16 %v1725
        %v1744 = vpack.c.b16 %v1743, %v1742
        %v1747 = vunpack.c.l.b16 %v1732
        %v1748 = vunpack.c.l.b16 %v1733
        %v1749 = vpack.c.b16 %v1748, %v1747
        %v1751 = vsel %vm1490, %v1744, 0
        %v1754 = vsel %vm1490, %v1749, 0
        %1756 = vmatpush.bf16.xpose.msra.mxu0 0
        %1757 = vmatpush.bf16.xpose.msra.mxu0 0
        %1758 = vmatpush.bf16.xpose.msra.mxu0 0
        %1759 = vmatpush.bf16.xpose.msra.mxu0 0
        %1760 = vmatpush.bf16.xpose.msra.mxu0 0
        %1761 = vmatpush.bf16.xpose.msra.mxu0 0
        %1762 = vmatpush.bf16.xpose.msra.mxu0 0
        %1763 = vmatpush.bf16.xpose.msra.mxu0 %v1754
        %1764 = vmatmul.bf16.gmra.mxu0 %v1751
        %v1765 = vpop.f32.mrf.mxu0
        %v1766 = vadd.f32 0.0, %v1765
        %v1767 = vpop.f32.mrf.mxu0
        %v1768 = vadd.f32 0.0, %v1767
        %1769 = vdwg.mxu0
        %v1772 = vunpack.c.l.b16 %v1726
        %v1773 = vunpack.c.l.b16 %v1727
        %v1774 = vpack.c.b16 %v1773, %v1772
        %v1777 = vunpack.c.l.b16 %v1734
        %v1778 = vunpack.c.l.b16 %v1735
        %v1779 = vpack.c.b16 %v1778, %v1777
        %v1781 = vsel %vm1490, %v1774, 0
        %v1784 = vsel %vm1490, %v1779, 0
        %1786 = vmatpush.bf16.xpose.msra.mxu0 0
        %1787 = vmatpush.bf16.xpose.msra.mxu0 0
        %1788 = vmatpush.bf16.xpose.msra.mxu0 0
        %1789 = vmatpush.bf16.xpose.msra.mxu0 0
        %1790 = vmatpush.bf16.xpose.msra.mxu0 0
        %1791 = vmatpush.bf16.xpose.msra.mxu0 0
        %1792 = vmatpush.bf16.xpose.msra.mxu0 0
        %1793 = vmatpush.bf16.xpose.msra.mxu0 %v1784
        %1794 = vmatmul.bf16.gmra.mxu0 %v1781
        %v1795 = vpop.f32.mrf.mxu0
        %v1796 = vadd.f32 0.0, %v1795
        %v1797 = vpop.f32.mrf.mxu0
        %v1798 = vadd.f32 0.0, %v1797
        %1799 = vdwg.mxu0
        %v1802 = vunpack.c.l.b16 %v1728
        %v1803 = vunpack.c.l.b16 %v1729
        %v1804 = vpack.c.b16 %v1803, %v1802
        %v1807 = vunpack.c.l.b16 %v1736
        %v1808 = vunpack.c.l.b16 %v1737
        %v1809 = vpack.c.b16 %v1808, %v1807
        %v1811 = vsel %vm1490, %v1804, 0
        %v1814 = vsel %vm1490, %v1809, 0
        %1816 = vmatpush.bf16.xpose.msra.mxu0 0
        %1817 = vmatpush.bf16.xpose.msra.mxu0 0
        %1818 = vmatpush.bf16.xpose.msra.mxu0 0
        %1819 = vmatpush.bf16.xpose.msra.mxu0 0
        %1820 = vmatpush.bf16.xpose.msra.mxu0 0
        %1821 = vmatpush.bf16.xpose.msra.mxu0 0
        %1822 = vmatpush.bf16.xpose.msra.mxu0 0
        %1823 = vmatpush.bf16.xpose.msra.mxu0 %v1814
        %1824 = vmatmul.bf16.gmra.mxu0 %v1811
        %v1825 = vpop.f32.mrf.mxu0
        %v1826 = vadd.f32 0.0, %v1825
        %v1827 = vpop.f32.mrf.mxu0
        %v1828 = vadd.f32 0.0, %v1827
        %1829 = vdwg.mxu0
        %v1832 = vunpack.c.l.b16 %v1730
        %v1833 = vunpack.c.l.b16 %v1731
        %v1834 = vpack.c.b16 %v1833, %v1832
        %v1837 = vunpack.c.l.b16 %v1738
        %v1838 = vunpack.c.l.b16 %v1739
        %v1839 = vpack.c.b16 %v1838, %v1837
        %v1841 = vsel %vm1490, %v1834, 0
        %v1844 = vsel %vm1490, %v1839, 0
        %1846 = vmatpush.bf16.xpose.msra.mxu0 0
        %1847 = vmatpush.bf16.xpose.msra.mxu0 0
        %1848 = vmatpush.bf16.xpose.msra.mxu0 0
        %1849 = vmatpush.bf16.xpose.msra.mxu0 0
        %1850 = vmatpush.bf16.xpose.msra.mxu0 0
        %1851 = vmatpush.bf16.xpose.msra.mxu0 0
        %1852 = vmatpush.bf16.xpose.msra.mxu0 0
        %1853 = vmatpush.bf16.xpose.msra.mxu0 %v1844
        %1854 = vmatmul.bf16.gmra.mxu0 %v1841
        %v1855 = vpop.f32.mrf.mxu0
        %v1856 = vadd.f32 0.0, %v1855
        %v1857 = vpop.f32.mrf.mxu0
        %v1858 = vadd.f32 0.0, %v1857
        %1859 = vdwg.mxu0
        %v1860 = vld [vmem:[#allocation3] sm:$0xff]
        %v1861 = vld [vmem:[#allocation3 + $0x8] sm:$0xff]
        %v1862 = vld [vmem:[#allocation3 + $0x10] sm:$0xff]
        %v1863 = vld [vmem:[#allocation3 + $0x18] sm:$0xff]
        %v1864 = vld [vmem:[#allocation3 + $0x20] sm:$0xff]
        %v1865 = vld [vmem:[#allocation3 + $0x28] sm:$0xff]
        %v1866 = vld [vmem:[#allocation3 + $0x30] sm:$0xff]
        %v1867 = vld [vmem:[#allocation3 + $0x38] sm:$0xff]
        %vm1868 = vcmask 130048
        %v1869 = vsel %vm1868, %v1766, -inf
        %1870 = vmax.xlane.f32.xlu0 %v1869
        %v1871 = vpop.xlane.xlu0 %1870
        %v1872 = vsel %vm1868, %v1768, -inf
        %1873 = vmax.xlane.f32.xlu0 %v1872
        %v1874 = vpop.xlane.xlu0 %1873
        %v1875 = vsel %vm1868, %v1796, -inf
        %1876 = vmax.xlane.f32.xlu0 %v1875
        %v1877 = vpop.xlane.xlu0 %1876
        %v1878 = vsel %vm1868, %v1798, -inf
        %1879 = vmax.xlane.f32.xlu0 %v1878
        %v1880 = vpop.xlane.xlu0 %1879
        %v1881 = vsel %vm1868, %v1826, -inf
        %1882 = vmax.xlane.f32.xlu0 %v1881
        %v1883 = vpop.xlane.xlu0 %1882
        %v1884 = vsel %vm1868, %v1828, -inf
        %1885 = vmax.xlane.f32.xlu0 %v1884
        %v1886 = vpop.xlane.xlu0 %1885
        %v1887 = vsel %vm1868, %v1856, -inf
        %1888 = vmax.xlane.f32.xlu0 %v1887
        %v1889 = vpop.xlane.xlu0 %1888
        %v1890 = vsel %vm1868, %v1858, -inf
        %1891 = vmax.xlane.f32.xlu0 %v1890
        %v1892 = vpop.xlane.xlu0 %1891
        %v1893 = vmax.f32 %v1860, %v1871
        %v1894 = vmax.f32 %v1861, %v1874
        %v1895 = vmax.f32 %v1862, %v1877
        %v1896 = vmax.f32 %v1863, %v1880
        %v1897 = vmax.f32 %v1864, %v1883
        %v1898 = vmax.f32 %v1865, %v1886
        %v1899 = vmax.f32 %v1866, %v1889
        %v1900 = vmax.f32 %v1867, %v1892
        %v1901 = vsub.f32 %v1860, %v1893
        %v1902 = vsub.f32 %v1861, %v1894
        %v1903 = vsub.f32 %v1862, %v1895
        %v1904 = vsub.f32 %v1863, %v1896
        %v1905 = vsub.f32 %v1864, %v1897
        %v1906 = vsub.f32 %v1865, %v1898
        %v1907 = vsub.f32 %v1866, %v1899
        %v1908 = vsub.f32 %v1867, %v1900
        %v1909 = vmul.f32 %v1901, 1.442695
        %v1910 = vpow.pop %v1909
        %v1911 = vmul.f32 %v1902, 1.442695
        %v1912 = vpow.pop %v1911
        %v1913 = vmul.f32 %v1903, 1.442695
        %v1914 = vpow.pop %v1913
        %v1915 = vmul.f32 %v1904, 1.442695
        %v1916 = vpow.pop %v1915
        %v1917 = vmul.f32 %v1905, 1.442695
        %v1918 = vpow.pop %v1917
        %v1919 = vmul.f32 %v1906, 1.442695
        %v1920 = vpow.pop %v1919
        %v1921 = vmul.f32 %v1907, 1.442695
        %v1922 = vpow.pop %v1921
        %v1923 = vmul.f32 %v1908, 1.442695
        %v1924 = vpow.pop %v1923
        %1926 = vset.pattern.permute.xlu0 0
        %1927 = vperm.xlu0 %1926, %v1893
        %v1928 = vpop.permute.xlu0 %1927
        %1931 = vset.pattern.permute.xlu0 0
        %1932 = vperm.xlu0 %1931, %v1894
        %v1933 = vpop.permute.xlu0 %1932
        %1936 = vset.pattern.permute.xlu0 0
        %1937 = vperm.xlu0 %1936, %v1895
        %v1938 = vpop.permute.xlu0 %1937
        %1941 = vset.pattern.permute.xlu0 0
        %1942 = vperm.xlu0 %1941, %v1896
        %v1943 = vpop.permute.xlu0 %1942
        %1946 = vset.pattern.permute.xlu0 0
        %1947 = vperm.xlu0 %1946, %v1897
        %v1948 = vpop.permute.xlu0 %1947
        %1951 = vset.pattern.permute.xlu0 0
        %1952 = vperm.xlu0 %1951, %v1898
        %v1953 = vpop.permute.xlu0 %1952
        %1956 = vset.pattern.permute.xlu0 0
        %1957 = vperm.xlu0 %1956, %v1899
        %v1958 = vpop.permute.xlu0 %1957
        %1961 = vset.pattern.permute.xlu0 0
        %1962 = vperm.xlu0 %1961, %v1900
        %v1963 = vpop.permute.xlu0 %1962
        %v1965 = vsub.f32 %v1766, %v1928
        %v1966 = vsub.f32 %v1768, %v1933
        %v1967 = vsub.f32 %v1796, %v1938
        %v1968 = vsub.f32 %v1798, %v1943
        %v1969 = vsub.f32 %v1826, %v1948
        %v1970 = vsub.f32 %v1828, %v1953
        %v1971 = vsub.f32 %v1856, %v1958
        %v1972 = vsub.f32 %v1858, %v1963
        %v1973 = vmul.f32 %v1965, 1.442695
        %v1974 = vpow.pop %v1973
        %v1975 = vmul.f32 %v1966, 1.442695
        %v1976 = vpow.pop %v1975
        %v1977 = vmul.f32 %v1967, 1.442695
        %v1978 = vpow.pop %v1977
        %v1979 = vmul.f32 %v1968, 1.442695
        %v1980 = vpow.pop %v1979
        %v1981 = vmul.f32 %v1969, 1.442695
        %v1982 = vpow.pop %v1981
        %v1983 = vmul.f32 %v1970, 1.442695
        %v1984 = vpow.pop %v1983
        %v1985 = vmul.f32 %v1971, 1.442695
        %v1986 = vpow.pop %v1985
        %v1987 = vmul.f32 %v1972, 1.442695
        %v1988 = vpow.pop %v1987
        %v1989 = vld [vmem:[#allocation4] sm:$0xff]
        %v1990 = vld [vmem:[#allocation4 + $0x8] sm:$0xff]
        %v1991 = vld [vmem:[#allocation4 + $0x10] sm:$0xff]
        %v1992 = vld [vmem:[#allocation4 + $0x18] sm:$0xff]
        %v1993 = vld [vmem:[#allocation4 + $0x20] sm:$0xff]
        %v1994 = vld [vmem:[#allocation4 + $0x28] sm:$0xff]
        %v1995 = vld [vmem:[#allocation4 + $0x30] sm:$0xff]
        %v1996 = vld [vmem:[#allocation4 + $0x38] sm:$0xff]
        %v1997 = vmul.f32 %v1910, %v1989
        %v1998 = vmul.f32 %v1912, %v1990
        %v1999 = vmul.f32 %v1914, %v1991
        %v2000 = vmul.f32 %v1916, %v1992
        %v2001 = vmul.f32 %v1918, %v1993
        %v2002 = vmul.f32 %v1920, %v1994
        %v2003 = vmul.f32 %v1922, %v1995
        %v2004 = vmul.f32 %v1924, %v1996
        %v2005 = vsel %vm1868, %v1974, 0.0
        %2006 = vadd.xlane.f32.xlu0 %v2005
        %v2007 = vpop.xlane.xlu0 %2006
        %v2008 = vsel %vm1868, %v1976, 0.0
        %2009 = vadd.xlane.f32.xlu0 %v2008
        %v2010 = vpop.xlane.xlu0 %2009
        %v2011 = vsel %vm1868, %v1978, 0.0
        %2012 = vadd.xlane.f32.xlu0 %v2011
        %v2013 = vpop.xlane.xlu0 %2012
        %v2014 = vsel %vm1868, %v1980, 0.0
        %2015 = vadd.xlane.f32.xlu0 %v2014
        %v2016 = vpop.xlane.xlu0 %2015
        %v2017 = vsel %vm1868, %v1982, 0.0
        %2018 = vadd.xlane.f32.xlu0 %v2017
        %v2019 = vpop.xlane.xlu0 %2018
        %v2020 = vsel %vm1868, %v1984, 0.0
        %2021 = vadd.xlane.f32.xlu0 %v2020
        %v2022 = vpop.xlane.xlu0 %2021
        %v2023 = vsel %vm1868, %v1986, 0.0
        %2024 = vadd.xlane.f32.xlu0 %v2023
        %v2025 = vpop.xlane.xlu0 %2024
        %v2026 = vsel %vm1868, %v1988, 0.0
        %2027 = vadd.xlane.f32.xlu0 %v2026
        %v2028 = vpop.xlane.xlu0 %2027
        %v2029 = vadd.f32 %v1997, %v2007
        %v2030 = vadd.f32 %v1998, %v2010
        %v2031 = vadd.f32 %v1999, %v2013
        %v2032 = vadd.f32 %v2000, %v2016
        %v2033 = vadd.f32 %v2001, %v2019
        %v2034 = vadd.f32 %v2002, %v2022
        %v2035 = vadd.f32 %v2003, %v2025
        %v2036 = vadd.f32 %v2004, %v2028
        %vm2037 = vcmask 7168
        %2038 = vst.msk [vmem:[#allocation4] sm:$0xff] %vm2037, %v2029
        %2039 = vst.msk [vmem:[#allocation4 + $0x8] sm:$0xff] %vm2037, %v2030
        %2040 = vst.msk [vmem:[#allocation4 + $0x10] sm:$0xff] %vm2037, %v2031
        %2041 = vst.msk [vmem:[#allocation4 + $0x18] sm:$0xff] %vm2037, %v2032
        %2042 = vst.msk [vmem:[#allocation4 + $0x20] sm:$0xff] %vm2037, %v2033
        %2043 = vst.msk [vmem:[#allocation4 + $0x28] sm:$0xff] %vm2037, %v2034
        %2044 = vst.msk [vmem:[#allocation4 + $0x30] sm:$0xff] %vm2037, %v2035
        %2045 = vst.msk [vmem:[#allocation4 + $0x38] sm:$0xff] %vm2037, %v2036
        %v2046 = vpack.c.bf16 %v1974, %v1974
        %v2047 = vpack.c.bf16 %v1976, %v1976
        %v2048 = vpack.c.bf16 %v1978, %v1978
        %v2049 = vpack.c.bf16 %v1980, %v1980
        %v2050 = vpack.c.bf16 %v1982, %v1982
        %v2051 = vpack.c.bf16 %v1984, %v1984
        %v2052 = vpack.c.bf16 %v1986, %v1986
        %v2053 = vpack.c.bf16 %v1988, %v1988
        %v2054 = vpack.c.bf16 %v1427, %v1427
        %v2055 = vpack.c.bf16 %v1481, %v1481
        %v2056 = vpack.c.bf16 %v1429, %v1429
        %v2057 = vpack.c.bf16 %v1483, %v1483
        %v2058 = vpack.c.bf16 %v1431, %v1431
        %v2059 = vpack.c.bf16 %v1485, %v1485
        %v2060 = vpack.c.bf16 %v1433, %v1433
        %v2061 = vpack.c.bf16 %v1487, %v1487
        %v2064 = vunpack.c.l.b16 %v2046
        %v2065 = vunpack.c.l.b16 %v2047
        %v2066 = vpack.c.b16 %v2065, %v2064
        %v2069 = vunpack.c.l.b16 %v2054
        %v2070 = vunpack.c.l.b16 %v2055
        %v2071 = vpack.c.b16 %v2070, %v2069
        %v2074 = vsel %vm1868, %v2066, 0
        %2076 = vmatpush.bf16.msra.mxu0 0
        %2077 = vmatpush.bf16.msra.mxu0 0
        %2078 = vmatpush.bf16.msra.mxu0 0
        %2079 = vmatpush.bf16.msra.mxu0 0
        %2080 = vmatpush.bf16.msra.mxu0 0
        %2081 = vmatpush.bf16.msra.mxu0 0
        %2082 = vmatpush.bf16.msra.mxu0 0
        %2083 = vmatpush.bf16.msra.mxu0 %v2071
        %2084 = vmatmul.bf16.gmra.mxu0 %v2074
        %v2085 = vpop.f32.mrf.mxu0
        %v2086 = vadd.f32 0.0, %v2085
        %v2087 = vpop.f32.mrf.mxu0
        %v2088 = vadd.f32 0.0, %v2087
        %2089 = vdwg.mxu0
        %v2092 = vunpack.c.l.b16 %v2048
        %v2093 = vunpack.c.l.b16 %v2049
        %v2094 = vpack.c.b16 %v2093, %v2092
        %v2097 = vunpack.c.l.b16 %v2056
        %v2098 = vunpack.c.l.b16 %v2057
        %v2099 = vpack.c.b16 %v2098, %v2097
        %v2102 = vsel %vm1868, %v2094, 0
        %2104 = vmatpush.bf16.msra.mxu0 0
        %2105 = vmatpush.bf16.msra.mxu0 0
        %2106 = vmatpush.bf16.msra.mxu0 0
        %2107 = vmatpush.bf16.msra.mxu0 0
        %2108 = vmatpush.bf16.msra.mxu0 0
        %2109 = vmatpush.bf16.msra.mxu0 0
        %2110 = vmatpush.bf16.msra.mxu0 0
        %2111 = vmatpush.bf16.msra.mxu0 %v2099
        %2112 = vmatmul.bf16.gmra.mxu0 %v2102
        %v2113 = vpop.f32.mrf.mxu0
        %v2114 = vadd.f32 0.0, %v2113
        %v2115 = vpop.f32.mrf.mxu0
        %v2116 = vadd.f32 0.0, %v2115
        %2117 = vdwg.mxu0
        %v2120 = vunpack.c.l.b16 %v2050
        %v2121 = vunpack.c.l.b16 %v2051
        %v2122 = vpack.c.b16 %v2121, %v2120
        %v2125 = vunpack.c.l.b16 %v2058
        %v2126 = vunpack.c.l.b16 %v2059
        %v2127 = vpack.c.b16 %v2126, %v2125
        %v2130 = vsel %vm1868, %v2122, 0
        %2132 = vmatpush.bf16.msra.mxu0 0
        %2133 = vmatpush.bf16.msra.mxu0 0
        %2134 = vmatpush.bf16.msra.mxu0 0
        %2135 = vmatpush.bf16.msra.mxu0 0
        %2136 = vmatpush.bf16.msra.mxu0 0
        %2137 = vmatpush.bf16.msra.mxu0 0
        %2138 = vmatpush.bf16.msra.mxu0 0
        %2139 = vmatpush.bf16.msra.mxu0 %v2127
        %2140 = vmatmul.bf16.gmra.mxu0 %v2130
        %v2141 = vpop.f32.mrf.mxu0
        %v2142 = vadd.f32 0.0, %v2141
        %v2143 = vpop.f32.mrf.mxu0
        %v2144 = vadd.f32 0.0, %v2143
        %2145 = vdwg.mxu0
        %v2148 = vunpack.c.l.b16 %v2052
        %v2149 = vunpack.c.l.b16 %v2053
        %v2150 = vpack.c.b16 %v2149, %v2148
        %v2153 = vunpack.c.l.b16 %v2060
        %v2154 = vunpack.c.l.b16 %v2061
        %v2155 = vpack.c.b16 %v2154, %v2153
        %v2158 = vsel %vm1868, %v2150, 0
        %2160 = vmatpush.bf16.msra.mxu0 0
        %2161 = vmatpush.bf16.msra.mxu0 0
        %2162 = vmatpush.bf16.msra.mxu0 0
        %2163 = vmatpush.bf16.msra.mxu0 0
        %2164 = vmatpush.bf16.msra.mxu0 0
        %2165 = vmatpush.bf16.msra.mxu0 0
        %2166 = vmatpush.bf16.msra.mxu0 0
        %2167 = vmatpush.bf16.msra.mxu0 %v2155
        %2168 = vmatmul.bf16.gmra.mxu0 %v2158
        %v2169 = vpop.f32.mrf.mxu0
        %v2170 = vadd.f32 0.0, %v2169
        %v2171 = vpop.f32.mrf.mxu0
        %v2172 = vadd.f32 0.0, %v2171
        %2173 = vdwg.mxu0
        %v2174 = vld [vmem:[#allocation5] sm:$0xff]
        %v2175 = vld [vmem:[#allocation5 + $0x8] sm:$0xff]
        %v2176 = vld [vmem:[#allocation5 + $0x10] sm:$0xff]
        %v2177 = vld [vmem:[#allocation5 + $0x18] sm:$0xff]
        %v2178 = vld [vmem:[#allocation5 + $0x20] sm:$0xff]
        %v2179 = vld [vmem:[#allocation5 + $0x28] sm:$0xff]
        %v2180 = vld [vmem:[#allocation5 + $0x30] sm:$0xff]
        %v2181 = vld [vmem:[#allocation5 + $0x38] sm:$0xff]
        %2183 = vset.pattern.permute.xlu0 0
        %2184 = vperm.xlu0 %2183, %v1910
        %v2185 = vpop.permute.xlu0 %2184
        %2188 = vset.pattern.permute.xlu0 0
        %2189 = vperm.xlu0 %2188, %v1912
        %v2190 = vpop.permute.xlu0 %2189
        %2193 = vset.pattern.permute.xlu0 0
        %2194 = vperm.xlu0 %2193, %v1914
        %v2195 = vpop.permute.xlu0 %2194
        %2198 = vset.pattern.permute.xlu0 0
        %2199 = vperm.xlu0 %2198, %v1916
        %v2200 = vpop.permute.xlu0 %2199
        %2203 = vset.pattern.permute.xlu0 0
        %2204 = vperm.xlu0 %2203, %v1918
        %v2205 = vpop.permute.xlu0 %2204
        %2208 = vset.pattern.permute.xlu0 0
        %2209 = vperm.xlu0 %2208, %v1920
        %v2210 = vpop.permute.xlu0 %2209
        %2213 = vset.pattern.permute.xlu0 0
        %2214 = vperm.xlu0 %2213, %v1922
        %v2215 = vpop.permute.xlu0 %2214
        %2218 = vset.pattern.permute.xlu0 0
        %2219 = vperm.xlu0 %2218, %v1924
        %v2220 = vpop.permute.xlu0 %2219
        %v2222 = vmul.f32 %v2185, %v2174
        %v2223 = vmul.f32 %v2190, %v2175
        %v2224 = vmul.f32 %v2195, %v2176
        %v2225 = vmul.f32 %v2200, %v2177
        %v2226 = vmul.f32 %v2205, %v2178
        %v2227 = vmul.f32 %v2210, %v2179
        %v2228 = vmul.f32 %v2215, %v2180
        %v2229 = vmul.f32 %v2220, %v2181
        %v2230 = vadd.f32 %v2222, %v2086
        %v2231 = vadd.f32 %v2223, %v2088
        %v2232 = vadd.f32 %v2224, %v2114
        %v2233 = vadd.f32 %v2225, %v2116
        %v2234 = vadd.f32 %v2226, %v2142
        %v2235 = vadd.f32 %v2227, %v2144
        %v2236 = vadd.f32 %v2228, %v2170
        %v2237 = vadd.f32 %v2229, %v2172
        %2238 = vst.msk [vmem:[#allocation5] sm:$0xff] %vm1490, %v2230
        %2239 = vst.msk [vmem:[#allocation5 + $0x8] sm:$0xff] %vm1490, %v2231
        %2240 = vst.msk [vmem:[#allocation5 + $0x10] sm:$0xff] %vm1490, %v2232
        %2241 = vst.msk [vmem:[#allocation5 + $0x18] sm:$0xff] %vm1490, %v2233
        %2242 = vst.msk [vmem:[#allocation5 + $0x20] sm:$0xff] %vm1490, %v2234
        %2243 = vst.msk [vmem:[#allocation5 + $0x28] sm:$0xff] %vm1490, %v2235
        %2244 = vst.msk [vmem:[#allocation5 + $0x30] sm:$0xff] %vm1490, %v2236
        %2245 = vst.msk [vmem:[#allocation5 + $0x38] sm:$0xff] %vm1490, %v2237
        %2246 = vst.msk [vmem:[#allocation3] sm:$0xff] %vm2037, %v1893
        %2247 = vst.msk [vmem:[#allocation3 + $0x8] sm:$0xff] %vm2037, %v1894
        %2248 = vst.msk [vmem:[#allocation3 + $0x10] sm:$0xff] %vm2037, %v1895
        %2249 = vst.msk [vmem:[#allocation3 + $0x18] sm:$0xff] %vm2037, %v1896
        %2250 = vst.msk [vmem:[#allocation3 + $0x20] sm:$0xff] %vm2037, %v1897
        %2251 = vst.msk [vmem:[#allocation3 + $0x28] sm:$0xff] %vm2037, %v1898
        %2252 = vst.msk [vmem:[#allocation3 + $0x30] sm:$0xff] %vm2037, %v1899
        %2253 = vst.msk [vmem:[#allocation3 + $0x38] sm:$0xff] %vm2037, %v1900
        // Predicated region
        $region73: #{tpu_custom_call.1} parent=43 // pred_check
          %p2254 = pneg %p411
        $region74: #{tpu_custom_call.1} parent=43 // pred_check_branch
          %2256 = sbr.rel (%p2254) target = $region76
        $region75: #{tpu_custom_call.1} parent=43 // pred_region
          %v2257 = vld [vmem:[#allocation5] sm:$0xff]
          %v2258 = vld [vmem:[#allocation5 + $0x8] sm:$0xff]
          %v2259 = vld [vmem:[#allocation5 + $0x10] sm:$0xff]
          %v2260 = vld [vmem:[#allocation5 + $0x18] sm:$0xff]
          %v2261 = vld [vmem:[#allocation5 + $0x20] sm:$0xff]
          %v2262 = vld [vmem:[#allocation5 + $0x28] sm:$0xff]
          %v2263 = vld [vmem:[#allocation5 + $0x30] sm:$0xff]
          %v2264 = vld [vmem:[#allocation5 + $0x38] sm:$0xff]
          %v2265 = vld [vmem:[#allocation4] sm:$0xff]
          %v2266 = vld [vmem:[#allocation4 + $0x8] sm:$0xff]
          %v2267 = vld [vmem:[#allocation4 + $0x10] sm:$0xff]
          %v2268 = vld [vmem:[#allocation4 + $0x18] sm:$0xff]
          %v2269 = vld [vmem:[#allocation4 + $0x20] sm:$0xff]
          %v2270 = vld [vmem:[#allocation4 + $0x28] sm:$0xff]
          %v2271 = vld [vmem:[#allocation4 + $0x30] sm:$0xff]
          %v2272 = vld [vmem:[#allocation4 + $0x38] sm:$0xff]
          %2274 = vset.pattern.permute.xlu0 0
          %2275 = vperm.xlu0 %2274, %v2265
          %v2276 = vpop.permute.xlu0 %2275
          %2279 = vset.pattern.permute.xlu0 0
          %2280 = vperm.xlu0 %2279, %v2266
          %v2281 = vpop.permute.xlu0 %2280
          %2284 = vset.pattern.permute.xlu0 0
          %2285 = vperm.xlu0 %2284, %v2267
          %v2286 = vpop.permute.xlu0 %2285
          %2289 = vset.pattern.permute.xlu0 0
          %2290 = vperm.xlu0 %2289, %v2268
          %v2291 = vpop.permute.xlu0 %2290
          %2294 = vset.pattern.permute.xlu0 0
          %2295 = vperm.xlu0 %2294, %v2269
          %v2296 = vpop.permute.xlu0 %2295
          %2299 = vset.pattern.permute.xlu0 0
          %2300 = vperm.xlu0 %2299, %v2270
          %v2301 = vpop.permute.xlu0 %2300
          %2304 = vset.pattern.permute.xlu0 0
          %2305 = vperm.xlu0 %2304, %v2271
          %v2306 = vpop.permute.xlu0 %2305
          %2309 = vset.pattern.permute.xlu0 0
          %2310 = vperm.xlu0 %2309, %v2272
          %v2311 = vpop.permute.xlu0 %2310
          %v2313 = vrcp.pop %v2276
          %v2314 = vmul.f32 %v2276, %v2313
          %v2315 = vsub.f32 1.0, %v2314
          %v2316 = vmul.f32 %v2313, %v2315
          %v2317 = vadd.f32 %v2313, %v2316
          %vm2318 = vweird.f32 %v2276
          %vm2319 = vweird.f32 %v2313
          %vm2320 = vmor %vm2318, %vm2319
          %v2321 = vsel %vm2320, %v2313, %v2317
          %v2322 = vand.u32 2147483647, %v2276
          %vm2323 = vcmp.eq.f32.partialorder %v2322, 8.507059e+37
          %v2324 = vand.u32 %v2276, 2147483648
          %v2325 = vor.u32 1.1754944e-38, %v2324
          %v2326 = vsel %vm2323, %v2325, %v2321
          %v2327 = vmul.f32 %v2257, %v2326
          %v2328 = vrcp.pop %v2281
          %v2329 = vmul.f32 %v2281, %v2328
          %v2330 = vsub.f32 1.0, %v2329
          %v2331 = vmul.f32 %v2328, %v2330
          %v2332 = vadd.f32 %v2328, %v2331
          %vm2333 = vweird.f32 %v2281
          %vm2334 = vweird.f32 %v2328
          %vm2335 = vmor %vm2333, %vm2334
          %v2336 = vsel %vm2335, %v2328, %v2332
          %v2337 = vand.u32 2147483647, %v2281
          %vm2338 = vcmp.eq.f32.partialorder %v2337, 8.507059e+37
          %v2339 = vand.u32 %v2281, 2147483648
          %v2340 = vor.u32 1.1754944e-38, %v2339
          %v2341 = vsel %vm2338, %v2340, %v2336
          %v2342 = vmul.f32 %v2258, %v2341
          %v2343 = vrcp.pop %v2286
          %v2344 = vmul.f32 %v2286, %v2343
          %v2345 = vsub.f32 1.0, %v2344
          %v2346 = vmul.f32 %v2343, %v2345
          %v2347 = vadd.f32 %v2343, %v2346
          %vm2348 = vweird.f32 %v2286
          %vm2349 = vweird.f32 %v2343
          %vm2350 = vmor %vm2348, %vm2349
          %v2351 = vsel %vm2350, %v2343, %v2347
          %v2352 = vand.u32 2147483647, %v2286
          %vm2353 = vcmp.eq.f32.partialorder %v2352, 8.507059e+37
          %v2354 = vand.u32 %v2286, 2147483648
          %v2355 = vor.u32 1.1754944e-38, %v2354
          %v2356 = vsel %vm2353, %v2355, %v2351
          %v2357 = vmul.f32 %v2259, %v2356
          %v2358 = vrcp.pop %v2291
          %v2359 = vmul.f32 %v2291, %v2358
          %v2360 = vsub.f32 1.0, %v2359
          %v2361 = vmul.f32 %v2358, %v2360
          %v2362 = vadd.f32 %v2358, %v2361
          %vm2363 = vweird.f32 %v2291
          %vm2364 = vweird.f32 %v2358
          %vm2365 = vmor %vm2363, %vm2364
          %v2366 = vsel %vm2365, %v2358, %v2362
          %v2367 = vand.u32 2147483647, %v2291
          %vm2368 = vcmp.eq.f32.partialorder %v2367, 8.507059e+37
          %v2369 = vand.u32 %v2291, 2147483648
          %v2370 = vor.u32 1.1754944e-38, %v2369
          %v2371 = vsel %vm2368, %v2370, %v2366
          %v2372 = vmul.f32 %v2260, %v2371
          %v2373 = vrcp.pop %v2296
          %v2374 = vmul.f32 %v2296, %v2373
          %v2375 = vsub.f32 1.0, %v2374
          %v2376 = vmul.f32 %v2373, %v2375
          %v2377 = vadd.f32 %v2373, %v2376
          %vm2378 = vweird.f32 %v2296
          %vm2379 = vweird.f32 %v2373
          %vm2380 = vmor %vm2378, %vm2379
          %v2381 = vsel %vm2380, %v2373, %v2377
          %v2382 = vand.u32 2147483647, %v2296
          %vm2383 = vcmp.eq.f32.partialorder %v2382, 8.507059e+37
          %v2384 = vand.u32 %v2296, 2147483648
          %v2385 = vor.u32 1.1754944e-38, %v2384
          %v2386 = vsel %vm2383, %v2385, %v2381
          %v2387 = vmul.f32 %v2261, %v2386
          %v2388 = vrcp.pop %v2301
          %v2389 = vmul.f32 %v2301, %v2388
          %v2390 = vsub.f32 1.0, %v2389
          %v2391 = vmul.f32 %v2388, %v2390
          %v2392 = vadd.f32 %v2388, %v2391
          %vm2393 = vweird.f32 %v2301
          %vm2394 = vweird.f32 %v2388
          %vm2395 = vmor %vm2393, %vm2394
          %v2396 = vsel %vm2395, %v2388, %v2392
          %v2397 = vand.u32 2147483647, %v2301
          %vm2398 = vcmp.eq.f32.partialorder %v2397, 8.507059e+37
          %v2399 = vand.u32 %v2301, 2147483648
          %v2400 = vor.u32 1.1754944e-38, %v2399
          %v2401 = vsel %vm2398, %v2400, %v2396
          %v2402 = vmul.f32 %v2262, %v2401
          %v2403 = vrcp.pop %v2306
          %v2404 = vmul.f32 %v2306, %v2403
          %v2405 = vsub.f32 1.0, %v2404
          %v2406 = vmul.f32 %v2403, %v2405
          %v2407 = vadd.f32 %v2403, %v2406
          %vm2408 = vweird.f32 %v2306
          %vm2409 = vweird.f32 %v2403
          %vm2410 = vmor %vm2408, %vm2409
          %v2411 = vsel %vm2410, %v2403, %v2407
          %v2412 = vand.u32 2147483647, %v2306
          %vm2413 = vcmp.eq.f32.partialorder %v2412, 8.507059e+37
          %v2414 = vand.u32 %v2306, 2147483648
          %v2415 = vor.u32 1.1754944e-38, %v2414
          %v2416 = vsel %vm2413, %v2415, %v2411
          %v2417 = vmul.f32 %v2263, %v2416
          %v2418 = vrcp.pop %v2311
          %v2419 = vmul.f32 %v2311, %v2418
          %v2420 = vsub.f32 1.0, %v2419
          %v2421 = vmul.f32 %v2418, %v2420
          %v2422 = vadd.f32 %v2418, %v2421
          %vm2423 = vweird.f32 %v2311
          %vm2424 = vweird.f32 %v2418
          %vm2425 = vmor %vm2423, %vm2424
          %v2426 = vsel %vm2425, %v2418, %v2422
          %v2427 = vand.u32 2147483647, %v2311
          %vm2428 = vcmp.eq.f32.partialorder %v2427, 8.507059e+37
          %v2429 = vand.u32 %v2311, 2147483648
          %v2430 = vor.u32 1.1754944e-38, %v2429
          %v2431 = vsel %vm2428, %v2430, %v2426
          %v2432 = vmul.f32 %v2264, %v2431
          %v2433 = vpack.c.bf16 %v2327, %v2327
          %v2434 = vpack.c.bf16 %v2342, %v2342
          %v2435 = vpack.c.bf16 %v2357, %v2357
          %v2436 = vpack.c.bf16 %v2372, %v2372
          %v2437 = vpack.c.bf16 %v2387, %v2387
          %v2438 = vpack.c.bf16 %v2402, %v2402
          %v2439 = vpack.c.bf16 %v2417, %v2417
          %v2440 = vpack.c.bf16 %v2432, %v2432
          %v2441 = vld [vmem:[#allocation14] sm:$0xf]
          %s2442 = scalar_lea.vmem [#allocation14], 4
          %v2443 = vld [vmem:[%s2442] sm:$0xf]
          %v2446 = vunpack.c.l.b16 %v2435
          %v2447 = vunpack.c.l.b16 %v2436
          %v2448 = vpack.c.b16 %v2447, %v2446
          %v2450 = vsel %vm1490, %v2448, 0
          %vm2452 = vcmask 1043456
          %v2454 = vsel %vm2452, %v2443, 0
          %2456 = vmatpush.bf16.msra.mxu0 0
          %2457 = vmatpush.bf16.msra.mxu0 0
          %2458 = vmatpush.bf16.msra.mxu0 0
          %2459 = vmatpush.bf16.msra.mxu0 0
          %2460 = vmatpush.bf16.msra.mxu0 0
          %2461 = vmatpush.bf16.msra.mxu0 0
          %2462 = vmatpush.bf16.msra.mxu0 0
          %2463 = vmatpush.bf16.msra.mxu0 %v2454
          %2464 = vmatmul.bf16.gmra.mxu0 %v2450
          %v2465 = vpop.f32.mrf.mxu0
          %v2466 = vadd.f32 0.0, %v2465
          %v2467 = vpop.f32.mrf.mxu0
          %v2468 = vadd.f32 0.0, %v2467
          %2469 = vdwg.mxu0
          %v2472 = vunpack.c.l.b16 %v2433
          %v2473 = vunpack.c.l.b16 %v2434
          %v2474 = vpack.c.b16 %v2473, %v2472
          %v2476 = vsel %vm1490, %v2474, 0
          %v2479 = vsel %vm2452, %v2441, 0
          %2481 = vmatpush.bf16.msra.mxu0 0
          %2482 = vmatpush.bf16.msra.mxu0 0
          %2483 = vmatpush.bf16.msra.mxu0 0
          %2484 = vmatpush.bf16.msra.mxu0 0
          %2485 = vmatpush.bf16.msra.mxu0 0
          %2486 = vmatpush.bf16.msra.mxu0 0
          %2487 = vmatpush.bf16.msra.mxu0 0
          %2488 = vmatpush.bf16.msra.mxu0 %v2479
          %2489 = vmatmul.bf16.gmra.mxu0 %v2476
          %v2490 = vpop.f32.mrf.mxu0
          %v2491 = vadd.f32 %v2466, %v2490
          %v2492 = vpop.f32.mrf.mxu0
          %v2493 = vadd.f32 %v2468, %v2492
          %2494 = vdwg.mxu0
          %s2495 = scalar_lea.vmem [#allocation14], 8
          %v2496 = vld [vmem:[%s2495] sm:$0xf]
          %v2499 = vunpack.c.l.b16 %v2437
          %v2500 = vunpack.c.l.b16 %v2438
          %v2501 = vpack.c.b16 %v2500, %v2499
          %v2503 = vsel %vm1490, %v2501, 0
          %v2506 = vsel %vm2452, %v2496, 0
          %2508 = vmatpush.bf16.msra.mxu0 0
          %2509 = vmatpush.bf16.msra.mxu0 0
          %2510 = vmatpush.bf16.msra.mxu0 0
          %2511 = vmatpush.bf16.msra.mxu0 0
          %2512 = vmatpush.bf16.msra.mxu0 0
          %2513 = vmatpush.bf16.msra.mxu0 0
          %2514 = vmatpush.bf16.msra.mxu0 0
          %2515 = vmatpush.bf16.msra.mxu0 %v2506
          %2516 = vmatmul.bf16.gmra.mxu0 %v2503
          %v2517 = vpop.f32.mrf.mxu0
          %v2518 = vadd.f32 0.0, %v2517
          %v2519 = vpop.f32.mrf.mxu0
          %v2520 = vadd.f32 0.0, %v2519
          %2521 = vdwg.mxu0
          %v2522 = vadd.f32 %v2491, %v2518
          %v2523 = vadd.f32 %v2493, %v2520
          %s2524 = scalar_lea.vmem [#allocation14], 12
          %v2525 = vld [vmem:[%s2524] sm:$0xf]
          %v2528 = vunpack.c.l.b16 %v2439
          %v2529 = vunpack.c.l.b16 %v2440
          %v2530 = vpack.c.b16 %v2529, %v2528
          %v2532 = vsel %vm1490, %v2530, 0
          %v2535 = vsel %vm2452, %v2525, 0
          %2537 = vmatpush.bf16.msra.mxu0 0
          %2538 = vmatpush.bf16.msra.mxu0 0
          %2539 = vmatpush.bf16.msra.mxu0 0
          %2540 = vmatpush.bf16.msra.mxu0 0
          %2541 = vmatpush.bf16.msra.mxu0 0
          %2542 = vmatpush.bf16.msra.mxu0 0
          %2543 = vmatpush.bf16.msra.mxu0 0
          %2544 = vmatpush.bf16.msra.mxu0 %v2535
          %2545 = vmatmul.bf16.gmra.mxu0 %v2532
          %v2546 = vpop.f32.mrf.mxu0
          %v2547 = vadd.f32 0.0, %v2546
          %v2548 = vpop.f32.mrf.mxu0
          %v2549 = vadd.f32 0.0, %v2548
          %2550 = vdwg.mxu0
          %v2551 = vadd.f32 %v2522, %v2547
          %v2552 = vadd.f32 %v2523, %v2549
          %v2553 = vld [vmem:[#allocation15 + $0x2] sm:$0x1]
          %v2554 = vperm.slane %v2553, 0
          %v2555 = vadd.f32 %v2551, %v2554
          %v2556 = vadd.f32 %v2552, %v2554
          %2557 = vst.msk [vmem:[%s406] sm:$0xff] %vm985, %v2555
          %2558 = vst.msk [vmem:[%s406 + $0x8] sm:$0xff] %vm985, %v2556
        $region76: #{tpu_custom_call.1} parent=43 // pred_fallthru
          _
        %s2559 = sand.u32 %s197, 1
        %s2560 = scalar_lea.sflag [#allocation8], %s2559
        %s2561 = sand.u32 %s197, 1
        %s2562 = smul.addr %s2561, 16
        %s2563 = scalar_lea.vmem [#allocation17], %s2562
        // Predicated region
        $region77: #{tpu_custom_call.1} parent=43 // pred_check
          %p2564 = pneg %p207
        $region78: #{tpu_custom_call.1} parent=43 // pred_check_branch
          %2566 = sbr.rel (%p2564) target = $region80
        $region79: #{tpu_custom_call.1} parent=43 // pred_region
          %s2567 = smul.u32 2, %s34
          %2569 = vsyncadd %s2560, 0
          %s2570 = smul.addr %s33, 2
          %s2571 = sadd.s32 %s2567, %s2570
          %s2572 = smul.addr %s2571, 8
          %s2573 = scalar_lea.hbm %s6, %s2572
          %s2574 = sshll.u32 %s2563, 4
          %s2575 = int_to_ptr.vmem [resolvable:$true] %s2574
          %s2576 = sshll.u32 %s2573, 4
          %s2577 = int_to_ptr.hbm [resolvable:$true] %s2576
          %2582 = dma.vmem_to_hbm [thread:$0]  %s2575, 256, %s2577, %s2560, 128, 128, 8
        $region80: #{tpu_custom_call.1} parent=43 // pred_fallthru
          _
      $region44: #{tpu_custom_call.1} parent=5 // pred_fallthru
        _
      %p2583 = scmp.le.s32.totalorder 2, %s23
      // Predicated region
      $region81: #{tpu_custom_call.1} parent=5 // pred_check
        %p2584 = pneg %p2583
      $region82: #{tpu_custom_call.1} parent=5 // pred_check_branch
        %2586 = sbr.rel (%p2584) target = $region84
      $region83: #{tpu_custom_call.1} parent=5 // pred_region
        %s2587 = ssub.s32 %s23, 2
        // Predicated region
        $region85: #{tpu_custom_call.1} parent=83 // pred_check
          %p2588 = pneg %p213
        $region86: #{tpu_custom_call.1} parent=83 // pred_check_branch
          %2590 = sbr.rel (%p2588) target = $region88
        $region87: #{tpu_custom_call.1} parent=83 // pred_region
          %s2591 = sand.u32 %s198, 1
          %s2592 = scalar_lea.sflag [#allocation8], %s2591
          %s2593 = sand.u32 %s198, 1
          %s2594 = smul.addr %s2593, 16
          %s2595 = scalar_lea.vmem [#allocation17], %s2594
          %2597 = dma.done %s2592, 256
        $region88: #{tpu_custom_call.1} parent=83 // pred_fallthru
          _
      $region84: #{tpu_custom_call.1} parent=5 // pred_fallthru
        _
    $region6: #{tpu_custom_call.1} parent=1 // loop_footer
      %s27 = sadd.s32 1, %s23
    $region7: #{tpu_custom_call.1} parent=1 // loop_footer_branch
      %22 = sbr.rel target = $region3
    $region8: #{tpu_custom_call.1} parent=1 // loop_exit
      _
    %2598 = vsyncpa [#allocation7], 1
    %s2599 = scalar_lea.sflag [#allocation7], 1
    %2600 = vsyncpa %s2599, 1
    %2601 = vsyncpa [#allocation10], 1
    %s2602 = scalar_lea.sflag [#allocation10], 1
    %2603 = vsyncpa %s2602, 1
    %2604 = vsyncpa [#allocation13], 1
    %2605 = vsyncpa [#allocation16], 1
    %2606 = vsyncpa [#allocation8], 1
    %s2607 = scalar_lea.sflag [#allocation8], 1
    %2608 = vsyncpa %s2607, 1

</llo_original>
